<compile_context>
chip_gen: v7x
topology: tpu7x:2x2x1
jax: 0.10.0
libtpu: 0.0.40
codegen_flags: <defaults>
</compile_context>

<pallas_src>
import functools

import jax
import jax.numpy as jnp
from jax.experimental import pallas as pl
from jax.experimental.pallas import tpu as pltpu


def _round_up(x: int, m: int) -> int:
    return (x + m - 1) // m * m


def _cdiv(a: int, b: int) -> int:
    return -(-a // b)


def _qknorm_kernel(*refs, eps, groups, head_dim, use_bias):
    """One grid step normalizes one q row-tile and one k row-tile (full lane width)."""
    idx = 0
    q_ref, k_ref = refs[idx], refs[idx + 1]
    idx += 2
    if groups > 1:
        mask_ref, maskt_ref = refs[idx], refs[idx + 1]   # (L, G) / (G, L) one-hot f32
        idx += 2
    else:
        mask_ref = maskt_ref = None
    qw_ref, kw_ref = refs[idx], refs[idx + 1]
    idx += 2
    if use_bias:
        qb_ref, kb_ref = refs[idx], refs[idx + 1]
        idx += 2
    else:
        qb_ref = kb_ref = None
    qo_ref, ko_ref = refs[idx], refs[idx + 1]

    inv_d = jnp.float32(1.0 / head_dim)
    hp = jax.lax.Precision.HIGHEST      # keep f32 sums exact on the MXU

    def normalize(x_ref, w_ref, b_ref, o_ref):
        x = x_ref[...].astype(jnp.float32)                          # (T, L)
        if groups > 1:
            m = mask_ref[...]                                       # (L, G)
            mt = maskt_ref[...]                                     # (G, L)
            # Segment sums + broadcast-back on the (otherwise idle) MXU; keeps the
            # XLU free so HBM DMA stays the binding unit.
            s1 = jnp.dot(x, m, preferred_element_type=jnp.float32, precision=hp)
            mean_l = jnp.dot(s1 * inv_d, mt,
                             preferred_element_type=jnp.float32, precision=hp)
            xc = x - mean_l                                         # two-pass variance
            s2 = jnp.dot(xc * xc, m, preferred_element_type=jnp.float32, precision=hp)
            inv = jax.lax.rsqrt(s2 * inv_d + jnp.float32(eps))      # (T, G) on the EUP
            inv_l = jnp.dot(inv, mt, preferred_element_type=jnp.float32, precision=hp)
        else:
            mean = jnp.mean(x, axis=-1, keepdims=True)
            xc = x - mean
            var = jnp.mean(xc * xc, axis=-1, keepdims=True)
            inv_l = jax.lax.rsqrt(var + jnp.float32(eps))
        y = xc * inv_l * w_ref[...]            # w/b pre-tiled to lane width (f32)
        if use_bias:
            y = y + b_ref[...]
        o_ref[...] = y.astype(o_ref.dtype)

    normalize(q_ref, qw_ref, qb_ref, qo_ref)
    normalize(k_ref, kw_ref, kb_ref, ko_ref)


def qk_layernorm_fused(q, k, q_weight, k_weight, q_bias=None, k_bias=None, *,
                       eps=1e-5, out_dtype=None):
    """Fused LayerNorm over the last dim of q and k (independent params per stream)."""
    assert q.shape[-1] == k.shape[-1], "q/k head_dim mismatch"
    assert q.dtype == k.dtype
    d = q.shape[-1]
    out_dtype = out_dtype or q.dtype
    use_bias = q_bias is not None

    rows_q = q.size // d
    rows_k = k.size // d

    # Lane packing: put G = 128 // head_dim logical rows side by side on the 128-lane
    # axis so every HBM<->VMEM transfer and store is full lane width.  Pure reshape
    # (no extra HBM pass).  Falls back to G=1 (correct, but masked partial-lane
    # stores) if head_dim does not divide 128 or row counts are not divisible by G.
    g0 = 128 // d if (d < 128 and 128 % d == 0) else 1
    groups = 1
    for g in range(g0, 0, -1):
        if g0 % g == 0 and rows_q % g == 0 and rows_k % g == 0:
            groups = g
            break
    lane = groups * d
    pq, pk = rows_q // groups, rows_k // groups

    q2 = q.reshape(pq, lane)          # free reshape, no copy
    k2 = k.reshape(pk, lane)

    in_item = jnp.dtype(q.dtype).itemsize
    out_item = jnp.dtype(out_dtype).itemsize

    # Row tile: ~2 MiB of input per stream per step (a q tile AND a k tile are
    # processed each grid step), multiple of 8 sublanes.  Keep >= 2 row blocks when
    # possible so the "parallel" grid axis can shard across v7x's two TensorCores.
    tile = max(8, min(8192, ((2 << 20) // (lane * in_item)) // 8 * 8))
    max_rows = max(pq, pk)
    if max_rows >= 16:
        tile = min(tile, _round_up(_cdiv(max_rows, 2), 8))
    nq = max(1, _cdiv(pq, tile))
    nk = max(1, _cdiv(pk, tile))
    num_blocks = max(nq, nk)
    # The shorter stream's index maps clamp at its last block: no extra DMA traffic,
    # and the (cheap) recompute keeps every output buffer valid under "parallel".

    def lane_param(p):
        p32 = p.astype(jnp.float32)
        return (jnp.tile(p32, groups) if groups > 1 else p32).reshape(1, lane)

    args = [q2, k2]
    in_specs = [
        pl.BlockSpec((tile, lane), lambda i, _n=nq: (jnp.minimum(i, _n - 1), 0)),
        pl.BlockSpec((tile, lane), lambda i, _n=nk: (jnp.minimum(i, _n - 1), 0)),
    ]
    if groups > 1:
        seg = jnp.arange(lane, dtype=jnp.int32) // d
        mask = (seg[:, None] == jnp.arange(groups, dtype=jnp.int32)[None, :])
        mask = mask.astype(jnp.float32)                         # (lane, groups)
        args += [mask, mask.T]
        in_specs += [pl.BlockSpec((lane, groups), lambda i: (0, 0)),
                     pl.BlockSpec((groups, lane), lambda i: (0, 0))]
    param_spec = pl.BlockSpec((1, lane), lambda i: (0, 0))
    args += [lane_param(q_weight), lane_param(k_weight)]
    in_specs += [param_spec, param_spec]
    if use_bias:
        args += [lane_param(q_bias), lane_param(k_bias)]
        in_specs += [param_spec, param_spec]

    out_specs = (
        pl.BlockSpec((tile, lane), lambda i, _n=nq: (jnp.minimum(i, _n - 1), 0)),
        pl.BlockSpec((tile, lane), lambda i, _n=nk: (jnp.minimum(i, _n - 1), 0)),
    )
    out_shape = (jax.ShapeDtypeStruct((pq, lane), out_dtype),
                 jax.ShapeDtypeStruct((pk, lane), out_dtype))

    kernel = functools.partial(_qknorm_kernel, eps=float(eps), groups=groups,
                               head_dim=d, use_bias=use_bias)

    n_elems = (rows_q + rows_k) * d
    cost = pl.CostEstimate(
        flops=int(n_elems * (10 + 6 * groups)),
        transcendentals=int(rows_q + rows_k),
        bytes_accessed=int(n_elems * (in_item + out_item)),
    )

    # VMEM budget: per stream 2x double-buffered in + 2x out blocks, plus f32
    # intermediates; stays well inside v7x's 64 MiB.
    block_elems = tile * lane
    vmem_need = 4 * block_elems * (in_item + out_item) + 6 * block_elems * 4
    vmem_limit = int(min(max(vmem_need + (8 << 20), 16 << 20), 56 << 20))

    q_out, k_out = pl.pallas_call(
        kernel,
        out_shape=out_shape,
        grid_spec=pltpu.PrefetchScalarGridSpec(
            num_scalar_prefetch=0,
            grid=(num_blocks,),
            in_specs=in_specs,
            out_specs=out_specs,
        ),
        compiler_params=pltpu.CompilerParams(
            dimension_semantics=("parallel",),
            vmem_limit_bytes=vmem_limit,
        ),
        cost_estimate=cost,
    )(*args)

    return q_out.reshape(q.shape), k_out.reshape(k.shape)


class QKNormV2:
    """JAX/Pallas port of QKNormV2: independent LayerNorms (over head_dim) on q and k."""

    def __init__(self, head_dim: int, bias: bool, key: jax.Array):
        self.head_dim = head_dim
        self.use_bias = bias
        self.eps = 1e-5
        kq_w, kq_b, kk_w, kk_b = jax.random.split(key, 4)
        # Deterministic, non-trivial parameter init (synthetic; PyTorch default is w=1, b=0).
        self.q_weight = 1.0 + 0.01 * jax.random.normal(kq_w, (head_dim,), jnp.float32)
        self.k_weight = 1.0 + 0.01 * jax.random.normal(kk_w, (head_dim,), jnp.float32)
        self.q_bias = 0.01 * jax.random.normal(kq_b, (head_dim,), jnp.float32) if bias else None
        self.k_bias = 0.01 * jax.random.normal(kk_b, (head_dim,), jnp.float32) if bias else None

    def __call__(self, q: jax.Array, k: jax.Array):
        assert q.shape[-1] == self.head_dim and k.shape[-1] == self.head_dim
        return qk_layernorm_fused(q, k, self.q_weight, self.k_weight,
                                  self.q_bias, self.k_bias, eps=self.eps)


def _reference_layernorm(x, w, b, eps=1e-5):
    xf = x.astype(jnp.float32)
    mean = xf.mean(-1, keepdims=True)
    var = ((xf - mean) ** 2).mean(-1, keepdims=True)
    y = (xf - mean) * jax.lax.rsqrt(var + eps) * w
    if b is not None:
        y = y + b
    return y.astype(x.dtype)


if __name__ == "__main__":
    key = jax.random.PRNGKey(0)
    k_params, k_q, k_k, k_k2 = jax.random.split(key, 4)

    batch, num_heads, seq, head_dim = 2, 4, 8, 32
    q = jax.random.normal(k_q, (batch, num_heads, seq, head_dim), jnp.float32)
    k = jax.random.normal(k_k, (batch, num_heads, seq, head_dim), jnp.float32)

    # bias=True path
    mod = QKNormV2(head_dim=head_dim, bias=True, key=k_params)
    q_out, k_out = mod(q, k)
    jax.block_until_ready((q_out, k_out))
    assert jnp.allclose(q_out, _reference_layernorm(q, mod.q_weight, mod.q_bias),
                        atol=1e-5, rtol=1e-5)
    assert jnp.allclose(k_out, _reference_layernorm(k, mod.k_weight, mod.k_bias),
                        atol=1e-5, rtol=1e-5)

    # bias=False specialization (no bias DMA stream)
    mod_nb = QKNormV2(head_dim=head_dim, bias=False, key=k_params)
    q_out2, k_out2 = mod_nb(q, k)
    jax.block_until_ready((q_out2, k_out2))
    assert jnp.allclose(q_out2, _reference_layernorm(q, mod_nb.q_weight, None),
                        atol=1e-5, rtol=1e-5)
    assert jnp.allclose(k_out2, _reference_layernorm(k, mod_nb.k_weight, None),
                        atol=1e-5, rtol=1e-5)

    # GQA-shaped: k has fewer heads than q (independent per-stream block counts;
    # k is never padded or DMA'd up to q's length).
    k_small = jax.random.normal(k_k2, (batch, 2, seq, head_dim), jnp.float32)
    q_out3, k_out3 = mod(q, k_small)
    jax.block_until_ready((q_out3, k_out3))
    assert jnp.allclose(q_out3, _reference_layernorm(q, mod.q_weight, mod.q_bias),
                        atol=1e-5, rtol=1e-5)
    assert jnp.allclose(k_out3, _reference_layernorm(k_small, mod.k_weight, mod.k_bias),
                        atol=1e-5, rtol=1e-5)

    print("KERNEL_OK")
</pallas_src>

<mosaic_0001>
module attributes {stable_mosaic.version = 11 : i64} {
  func.func @_qknorm_kernel(%arg0: i32, %arg1: memref<8x128xf32, #tpu.memory_space<vmem>>, %arg2: memref<8x128xf32, #tpu.memory_space<vmem>>, %arg3: memref<128x4xf32, #tpu.memory_space<vmem>>, %arg4: memref<4x128xf32, #tpu.memory_space<vmem>>, %arg5: memref<1x128xf32, #tpu.memory_space<vmem>>, %arg6: memref<1x128xf32, #tpu.memory_space<vmem>>, %arg7: memref<1x128xf32, #tpu.memory_space<vmem>>, %arg8: memref<1x128xf32, #tpu.memory_space<vmem>>, %arg9: memref<8x128xf32, #tpu.memory_space<vmem>>, %arg10: memref<8x128xf32, #tpu.memory_space<vmem>>) attributes {dimension_semantics = [#tpu.dimension_semantics<parallel>], iteration_bounds = array<i64: 2>, scalar_prefetch = 0 : i64, scratch_operands = 0 : i64, tpu.core_type = #tpu.core_type<tc>, window_params = [{transform_indices = @transform_0, window_bounds = array<i64: 8, 128>}, {transform_indices = @transform_1, window_bounds = array<i64: 8, 128>}, {pipeline_mode = #tpu.pipeline_mode<synchronous>, transform_indices = @transform_2, window_bounds = array<i64: 128, 4>}, {pipeline_mode = #tpu.pipeline_mode<synchronous>, transform_indices = @transform_3, window_bounds = array<i64: 4, 128>}, {pipeline_mode = #tpu.pipeline_mode<synchronous>, transform_indices = @transform_4, window_bounds = array<i64: 1, 128>}, {pipeline_mode = #tpu.pipeline_mode<synchronous>, transform_indices = @transform_5, window_bounds = array<i64: 1, 128>}, {pipeline_mode = #tpu.pipeline_mode<synchronous>, transform_indices = @transform_6, window_bounds = array<i64: 1, 128>}, {pipeline_mode = #tpu.pipeline_mode<synchronous>, transform_indices = @transform_7, window_bounds = array<i64: 1, 128>}, {transform_indices = @transform_8, window_bounds = array<i64: 8, 128>}, {transform_indices = @transform_9, window_bounds = array<i64: 8, 128>}]} {
    %c0 = arith.constant 0 : index
    %c0_0 = arith.constant 0 : index
    %0 = vector.load %arg1[%c0, %c0_0] : memref<8x128xf32, #tpu.memory_space<vmem>>, vector<8x128xf32>
    %c0_1 = arith.constant 0 : index
    %c0_2 = arith.constant 0 : index
    %1 = vector.load %arg3[%c0_1, %c0_2] : memref<128x4xf32, #tpu.memory_space<vmem>>, vector<128x4xf32>
    %c0_3 = arith.constant 0 : index
    %c0_4 = arith.constant 0 : index
    %2 = vector.load %arg4[%c0_3, %c0_4] : memref<4x128xf32, #tpu.memory_space<vmem>>, vector<4x128xf32>
    %cst = arith.constant dense<0.000000e+00> : vector<8x4xf32>
    %3 = tpu.matmul %0, %1, %cst {dimension_numbers = #tpu.dot_dimension_numbers<[1], [0], [0], [1], [0, 0, 1, 1], [], []>, precision = #tpu.contract_precision<fp32>} : vector<8x128xf32>, vector<128x4xf32>, vector<8x4xf32> -> vector<8x4xf32>
    %cst_5 = arith.constant 3.125000e-02 : f32
    %4 = vector.broadcast %cst_5 : f32 to vector<8x4xf32>
    %5 = arith.mulf %3, %4 : vector<8x4xf32>
    %cst_6 = arith.constant dense<0.000000e+00> : vector<8x128xf32>
    %6 = tpu.matmul %5, %2, %cst_6 {dimension_numbers = #tpu.dot_dimension_numbers<[1], [0], [0], [1], [0, 0, 1, 1], [], []>, precision = #tpu.contract_precision<fp32>} : vector<8x4xf32>, vector<4x128xf32>, vector<8x128xf32> -> vector<8x128xf32>
    %7 = arith.subf %0, %6 : vector<8x128xf32>
    %8 = arith.mulf %7, %7 : vector<8x128xf32>
    %cst_7 = arith.constant dense<0.000000e+00> : vector<8x4xf32>
    %9 = tpu.matmul %8, %1, %cst_7 {dimension_numbers = #tpu.dot_dimension_numbers<[1], [0], [0], [1], [0, 0, 1, 1], [], []>, precision = #tpu.contract_precision<fp32>} : vector<8x128xf32>, vector<128x4xf32>, vector<8x4xf32> -> vector<8x4xf32>
    %cst_8 = arith.constant 3.125000e-02 : f32
    %10 = vector.broadcast %cst_8 : f32 to vector<8x4xf32>
    %11 = arith.mulf %9, %10 : vector<8x4xf32>
    %cst_9 = arith.constant 9.99999974E-6 : f32
    %12 = vector.broadcast %cst_9 : f32 to vector<8x4xf32>
    %13 = arith.addf %11, %12 : vector<8x4xf32>
    %14 = math.rsqrt %13 : vector<8x4xf32>
    %cst_10 = arith.constant dense<0.000000e+00> : vector<8x128xf32>
    %15 = tpu.matmul %14, %2, %cst_10 {dimension_numbers = #tpu.dot_dimension_numbers<[1], [0], [0], [1], [0, 0, 1, 1], [], []>, precision = #tpu.contract_precision<fp32>} : vector<8x4xf32>, vector<4x128xf32>, vector<8x128xf32> -> vector<8x128xf32>
    %16 = arith.mulf %7, %15 : vector<8x128xf32>
    %c0_11 = arith.constant 0 : index
    %c0_12 = arith.constant 0 : index
    %17 = vector.load %arg5[%c0_11, %c0_12] : memref<1x128xf32, #tpu.memory_space<vmem>>, vector<1x128xf32>
    %18 = vector.broadcast %17 : vector<1x128xf32> to vector<8x128xf32>
    %19 = arith.mulf %16, %18 : vector<8x128xf32>
    %c0_13 = arith.constant 0 : index
    %c0_14 = arith.constant 0 : index
    %20 = vector.load %arg7[%c0_13, %c0_14] : memref<1x128xf32, #tpu.memory_space<vmem>>, vector<1x128xf32>
    %21 = vector.broadcast %20 : vector<1x128xf32> to vector<8x128xf32>
    %22 = arith.addf %19, %21 : vector<8x128xf32>
    %c0_15 = arith.constant 0 : index
    %c0_16 = arith.constant 0 : index
    %23 = vector.load %arg9[%c0_15, %c0_16] : memref<8x128xf32, #tpu.memory_space<vmem>>, vector<8x128xf32>
    tpu.vector_store %arg9[%c0_15, %c0_16], %22 {strides = array<i32>} : memref<8x128xf32, #tpu.memory_space<vmem>>, vector<8x128xf32>,
    %c0_17 = arith.constant 0 : index
    %c0_18 = arith.constant 0 : index
    %24 = vector.load %arg2[%c0_17, %c0_18] : memref<8x128xf32, #tpu.memory_space<vmem>>, vector<8x128xf32>
    %c0_19 = arith.constant 0 : index
    %c0_20 = arith.constant 0 : index
    %25 = vector.load %arg3[%c0_19, %c0_20] : memref<128x4xf32, #tpu.memory_space<vmem>>, vector<128x4xf32>
    %c0_21 = arith.constant 0 : index
    %c0_22 = arith.constant 0 : index
    %26 = vector.load %arg4[%c0_21, %c0_22] : memref<4x128xf32, #tpu.memory_space<vmem>>, vector<4x128xf32>
    %cst_23 = arith.constant dense<0.000000e+00> : vector<8x4xf32>
    %27 = tpu.matmul %24, %25, %cst_23 {dimension_numbers = #tpu.dot_dimension_numbers<[1], [0], [0], [1], [0, 0, 1, 1], [], []>, precision = #tpu.contract_precision<fp32>} : vector<8x128xf32>, vector<128x4xf32>, vector<8x4xf32> -> vector<8x4xf32>
    %cst_24 = arith.constant 3.125000e-02 : f32
    %28 = vector.broadcast %cst_24 : f32 to vector<8x4xf32>
    %29 = arith.mulf %27, %28 : vector<8x4xf32>
    %cst_25 = arith.constant dense<0.000000e+00> : vector<8x128xf32>
    %30 = tpu.matmul %29, %26, %cst_25 {dimension_numbers = #tpu.dot_dimension_numbers<[1], [0], [0], [1], [0, 0, 1, 1], [], []>, precision = #tpu.contract_precision<fp32>} : vector<8x4xf32>, vector<4x128xf32>, vector<8x128xf32> -> vector<8x128xf32>
    %31 = arith.subf %24, %30 : vector<8x128xf32>
    %32 = arith.mulf %31, %31 : vector<8x128xf32>
    %cst_26 = arith.constant dense<0.000000e+00> : vector<8x4xf32>
    %33 = tpu.matmul %32, %25, %cst_26 {dimension_numbers = #tpu.dot_dimension_numbers<[1], [0], [0], [1], [0, 0, 1, 1], [], []>, precision = #tpu.contract_precision<fp32>} : vector<8x128xf32>, vector<128x4xf32>, vector<8x4xf32> -> vector<8x4xf32>
    %cst_27 = arith.constant 3.125000e-02 : f32
    %34 = vector.broadcast %cst_27 : f32 to vector<8x4xf32>
    %35 = arith.mulf %33, %34 : vector<8x4xf32>
    %cst_28 = arith.constant 9.99999974E-6 : f32
    %36 = vector.broadcast %cst_28 : f32 to vector<8x4xf32>
    %37 = arith.addf %35, %36 : vector<8x4xf32>
    %38 = math.rsqrt %37 : vector<8x4xf32>
    %cst_29 = arith.constant dense<0.000000e+00> : vector<8x128xf32>
    %39 = tpu.matmul %38, %26, %cst_29 {dimension_numbers = #tpu.dot_dimension_numbers<[1], [0], [0], [1], [0, 0, 1, 1], [], []>, precision = #tpu.contract_precision<fp32>} : vector<8x4xf32>, vector<4x128xf32>, vector<8x128xf32> -> vector<8x128xf32>
    %40 = arith.mulf %31, %39 : vector<8x128xf32>
    %c0_30 = arith.constant 0 : index
    %c0_31 = arith.constant 0 : index
    %41 = vector.load %arg6[%c0_30, %c0_31] : memref<1x128xf32, #tpu.memory_space<vmem>>, vector<1x128xf32>
    %42 = vector.broadcast %41 : vector<1x128xf32> to vector<8x128xf32>
    %43 = arith.mulf %40, %42 : vector<8x128xf32>
    %c0_32 = arith.constant 0 : index
    %c0_33 = arith.constant 0 : index
    %44 = vector.load %arg8[%c0_32, %c0_33] : memref<1x128xf32, #tpu.memory_space<vmem>>, vector<1x128xf32>
    %45 = vector.broadcast %44 : vector<1x128xf32> to vector<8x128xf32>
    %46 = arith.addf %43, %45 : vector<8x128xf32>
    %c0_34 = arith.constant 0 : index
    %c0_35 = arith.constant 0 : index
    %47 = vector.load %arg10[%c0_34, %c0_35] : memref<8x128xf32, #tpu.memory_space<vmem>>, vector<8x128xf32>
    tpu.vector_store %arg10[%c0_34, %c0_35], %46 {strides = array<i32>} : memref<8x128xf32, #tpu.memory_space<vmem>>, vector<8x128xf32>,
    return
  }
  func.func @transform_0(%arg0: i32) -> (i32, i32) {
    %c1_i32 = arith.constant 1 : i32
    %0 = arith.minsi %arg0, %c1_i32 : i32
    %c0_i32 = arith.constant 0 : i32
    %c0_i32_0 = arith.constant 0 : i32
    return %0, %c0_i32 : i32, i32
  }
  func.func @transform_1(%arg0: i32) -> (i32, i32) {
    %c1_i32 = arith.constant 1 : i32
    %0 = arith.minsi %arg0, %c1_i32 : i32
    %c0_i32 = arith.constant 0 : i32
    %c0_i32_0 = arith.constant 0 : i32
    return %0, %c0_i32 : i32, i32
  }
  func.func @transform_2(%arg0: i32) -> (i32, i32) {
    %c0_i32 = arith.constant 0 : i32
    %c0_i32_0 = arith.constant 0 : i32
    %c0_i32_1 = arith.constant 0 : i32
    return %c0_i32, %c0_i32_0 : i32, i32
  }
  func.func @transform_3(%arg0: i32) -> (i32, i32) {
    %c0_i32 = arith.constant 0 : i32
    %c0_i32_0 = arith.constant 0 : i32
    %c0_i32_1 = arith.constant 0 : i32
    return %c0_i32, %c0_i32_0 : i32, i32
  }
  func.func @transform_4(%arg0: i32) -> (i32, i32) {
    %c0_i32 = arith.constant 0 : i32
    %c0_i32_0 = arith.constant 0 : i32
    %c0_i32_1 = arith.constant 0 : i32
    return %c0_i32, %c0_i32_0 : i32, i32
  }
  func.func @transform_5(%arg0: i32) -> (i32, i32) {
    %c0_i32 = arith.constant 0 : i32
    %c0_i32_0 = arith.constant 0 : i32
    %c0_i32_1 = arith.constant 0 : i32
    return %c0_i32, %c0_i32_0 : i32, i32
  }
  func.func @transform_6(%arg0: i32) -> (i32, i32) {
    %c0_i32 = arith.constant 0 : i32
    %c0_i32_0 = arith.constant 0 : i32
    %c0_i32_1 = arith.constant 0 : i32
    return %c0_i32, %c0_i32_0 : i32, i32
  }
  func.func @transform_7(%arg0: i32) -> (i32, i32) {
    %c0_i32 = arith.constant 0 : i32
    %c0_i32_0 = arith.constant 0 : i32
    %c0_i32_1 = arith.constant 0 : i32
    return %c0_i32, %c0_i32_0 : i32, i32
  }
  func.func @transform_8(%arg0: i32) -> (i32, i32) {
    %c1_i32 = arith.constant 1 : i32
    %0 = arith.minsi %arg0, %c1_i32 : i32
    %c0_i32 = arith.constant 0 : i32
    %c0_i32_0 = arith.constant 0 : i32
    return %0, %c0_i32 : i32, i32
  }
  func.func @transform_9(%arg0: i32) -> (i32, i32) {
    %c1_i32 = arith.constant 1 : i32
    %0 = arith.minsi %arg0, %c1_i32 : i32
    %c0_i32 = arith.constant 0 : i32
    %c0_i32_0 = arith.constant 0 : i32
    return %0, %c0_i32 : i32, i32
  }
}

</mosaic_0001>

<llo_original>
// kernel: tpu_custom_call.1
$region0: #{tpu_custom_call.1}
  #allocation0 [shape = 'u32[]', space=smem, size = 0x4, offset = 0x4, fixed_abs, tag = 'smem constant byte address 0x4 - core index']
  #allocation1 [shape = 'u32[144,128]{1,0:T(1,128)}', space=vmem, size = 0x12000, scoped, tag = 'internal scratch']
  %s0 = inlined_call_operand.vmem [shape: f32[16,128], index: 0, kind: input, shape index: {}]
  %s1 = inlined_call_operand.vmem [shape: f32[16,128], index: 1, kind: input, shape index: {}]
  %s2 = inlined_call_operand.vmem [shape: f32[128,4], index: 2, kind: input, shape index: {}]
  %s3 = inlined_call_operand.vmem [shape: f32[4,128], index: 3, kind: input, shape index: {}]
  %s4 = inlined_call_operand.vmem [shape: f32[1,128], index: 4, kind: input, shape index: {}]
  %s5 = inlined_call_operand.vmem [shape: f32[1,128], index: 5, kind: input, shape index: {}]
  %s6 = inlined_call_operand.vmem [shape: f32[1,128], index: 6, kind: input, shape index: {}]
  %s7 = inlined_call_operand.vmem [shape: f32[1,128], index: 7, kind: input, shape index: {}]
  %s8 = inlined_call_operand.hbm [shape: f32[16,128], index: 8, kind: output, shape index: {0}]
  %s9 = inlined_call_operand.hbm [shape: f32[16,128], index: 9, kind: output, shape index: {1}]
  %10 = xla_tuple %s8, %s9
  %s11 = sld [smem:[#allocation0]]
  $region73: #{tpu_custom_call.1} parent=0
    _
  %s13 = ssub.s32 1, %s11
  %s14 = scalar_select 0, %s13, %s11
  $region1: #{tpu_custom_call.1} parent=0
    #allocation2 [shape = 'u8[8192]{0}', space=vmem, size = 0x2000, scoped, tag = 'output window, operand 0']
    #allocation3 [shape = 's32[2]{0}', space=sflag, size = 0x8, scoped, tag = 'scoped memory for tpu_custom_call.1']
    #allocation4 [shape = 'u8[8192]{0}', space=vmem, size = 0x2000, scoped, tag = 'output window, operand 1']
    #allocation5 [shape = 's32[2]{0}', space=sflag, size = 0x8, scoped, tag = 'scoped memory for tpu_custom_call.1']
    %15 = vsyncpa [#allocation3], 0
    %s16 = scalar_lea.sflag [#allocation3], 1
    %17 = vsyncpa %s16, 0
    %18 = vsyncpa [#allocation5], 0
    %s19 = scalar_lea.sflag [#allocation5], 1
    %20 = vsyncpa %s19, 0
    loop: start=0, step=1, limit=4
    $region2: #{tpu_custom_call.1} parent=1 // loop_pre_header
      _
    $region3: #{tpu_custom_call.1} parent=1 // loop_header
      %s22 = sphi 0, %s26
      %p23 = scmp.ge.s32.totalorder %s22, 4
      %s36 = sphi 0, %s38
      %s39 = sphi 0, %s36
      %s40 = sphi 0, %s39
      %s56 = sphi 0, %s40
      %s66 = sphi 0, %s68
      %s69 = sphi 0, %s66
      %s70 = sphi 0, %s69
      %s86 = sphi 0, %s70
      %s90 = sphi 0, %s90
      %s92 = sphi 0, %s90
      %s93 = sphi 0, %s92
      %s107 = sphi 0, %s93
      %s111 = sphi 0, %s111
      %s113 = sphi 0, %s111
      %s114 = sphi 0, %s113
      %s128 = sphi 0, %s114
      %s132 = sphi 0, %s132
      %s134 = sphi 0, %s132
      %s135 = sphi 0, %s134
      %s149 = sphi 0, %s135
      %s153 = sphi 0, %s153
      %s155 = sphi 0, %s153
      %s156 = sphi 0, %s155
      %s170 = sphi 0, %s156
      %s174 = sphi 0, %s174
      %s176 = sphi 0, %s174
      %s177 = sphi 0, %s176
      %s191 = sphi 0, %s177
      %s195 = sphi 0, %s195
      %s197 = sphi 0, %s195
      %s198 = sphi 0, %s197
      %s212 = sphi 0, %s198
      %s222 = sphi 0, %s224
      %s225 = sphi 0, %s222
      %s226 = sphi 0, %s225
      %s242 = sphi 0, %s226
      %s252 = sphi 0, %s254
      %s255 = sphi 0, %s252
      %s256 = sphi 0, %s255
      %s272 = sphi 0, %s256
    $region4: #{tpu_custom_call.1} parent=1 // loop_header_branch
      %25 = sbr.rel (%p23) target = $region8
    $region5: #{tpu_custom_call.1} parent=1 // loop_body
      %s27 = ssub.s32 %s22, 1
      %s28 = ssub.s32 %s22, 2
      %s29 = sadd.s32 %s22, 1
      %p30 = scmp.lt.s32.totalorder %s22, 1
      %s31 = scalar_select %p30, %s22, 1
      %p32 = scmp.lt.s32.totalorder %s29, 1
      %s33 = scalar_select %p32, %s29, 1
      %s34 = ssub.s32 %s31, %s33
      %p35 = scmp.eq.s32.totalorder %s34, 0
      %s37 = sadd.s32 %s36, 1
      %s38 = scalar_select %p35, %s36, %s37
      %p41 = pneg %p35
      %p42 = scmp.eq.s32.totalorder %s22, 1
      %p43 = por %p41, %p42
      %p44 = scmp.ne.s32.totalorder %s36, %s39
      %p45 = scmp.eq.s32.totalorder %s22, 0
      %p46 = por %p44, %p45
      %p47 = scmp.ne.s32.totalorder %s36, %s39
      %p48 = scmp.eq.s32.totalorder %s27, 1
      %p49 = por %p47, %p48
      %p50 = scmp.ne.s32.totalorder %s39, %s40
      %p51 = scmp.eq.s32.totalorder %s27, 0
      %p52 = por %p50, %p51
      %p53 = scmp.ne.s32.totalorder %s39, %s40
      %p54 = scmp.eq.s32.totalorder %s28, 1
      %p55 = por %p53, %p54
      %p57 = scmp.ne.s32.totalorder %s40, %s56
      %p58 = scmp.eq.s32.totalorder %s28, 0
      %p59 = por %p57, %p58
      %p60 = scmp.lt.s32.totalorder %s22, 1
      %s61 = scalar_select %p60, %s22, 1
      %p62 = scmp.lt.s32.totalorder %s29, 1
      %s63 = scalar_select %p62, %s29, 1
      %s64 = ssub.s32 %s61, %s63
      %p65 = scmp.eq.s32.totalorder %s64, 0
      %s67 = sadd.s32 %s66, 1
      %s68 = scalar_select %p65, %s66, %s67
      %p71 = pneg %p65
      %p72 = scmp.eq.s32.totalorder %s22, 1
      %p73 = por %p71, %p72
      %p74 = scmp.ne.s32.totalorder %s66, %s69
      %p75 = scmp.eq.s32.totalorder %s22, 0
      %p76 = por %p74, %p75
      %p77 = scmp.ne.s32.totalorder %s66, %s69
      %p78 = scmp.eq.s32.totalorder %s27, 1
      %p79 = por %p77, %p78
      %p80 = scmp.ne.s32.totalorder %s69, %s70
      %p81 = scmp.eq.s32.totalorder %s27, 0
      %p82 = por %p80, %p81
      %p83 = scmp.ne.s32.totalorder %s69, %s70
      %p84 = scmp.eq.s32.totalorder %s28, 1
      %p85 = por %p83, %p84
      %p87 = scmp.ne.s32.totalorder %s70, %s86
      %p88 = scmp.eq.s32.totalorder %s28, 0
      %p89 = por %p87, %p88
      %s91 = sadd.s32 %s90, 1
      %p94 = scmp.eq.s32.totalorder %s22, 1
      %p95 = scmp.ne.s32.totalorder %s90, %s92
      %p96 = scmp.eq.s32.totalorder %s22, 0
      %p97 = por %p95, %p96
      %p98 = scmp.ne.s32.totalorder %s90, %s92
      %p99 = scmp.eq.s32.totalorder %s27, 1
      %p100 = por %p98, %p99
      %p101 = scmp.ne.s32.totalorder %s92, %s93
      %p102 = scmp.eq.s32.totalorder %s27, 0
      %p103 = por %p101, %p102
      %p104 = scmp.ne.s32.totalorder %s92, %s93
      %p105 = scmp.eq.s32.totalorder %s28, 1
      %p106 = por %p104, %p105
      %p108 = scmp.ne.s32.totalorder %s93, %s107
      %p109 = scmp.eq.s32.totalorder %s28, 0
      %p110 = por %p108, %p109
      %s112 = sadd.s32 %s111, 1
      %p115 = scmp.eq.s32.totalorder %s22, 1
      %p116 = scmp.ne.s32.totalorder %s111, %s113
      %p117 = scmp.eq.s32.totalorder %s22, 0
      %p118 = por %p116, %p117
      %p119 = scmp.ne.s32.totalorder %s111, %s113
      %p120 = scmp.eq.s32.totalorder %s27, 1
      %p121 = por %p119, %p120
      %p122 = scmp.ne.s32.totalorder %s113, %s114
      %p123 = scmp.eq.s32.totalorder %s27, 0
      %p124 = por %p122, %p123
      %p125 = scmp.ne.s32.totalorder %s113, %s114
      %p126 = scmp.eq.s32.totalorder %s28, 1
      %p127 = por %p125, %p126
      %p129 = scmp.ne.s32.totalorder %s114, %s128
      %p130 = scmp.eq.s32.totalorder %s28, 0
      %p131 = por %p129, %p130
      %s133 = sadd.s32 %s132, 1
      %p136 = scmp.eq.s32.totalorder %s22, 1
      %p137 = scmp.ne.s32.totalorder %s132, %s134
      %p138 = scmp.eq.s32.totalorder %s22, 0
      %p139 = por %p137, %p138
      %p140 = scmp.ne.s32.totalorder %s132, %s134
      %p141 = scmp.eq.s32.totalorder %s27, 1
      %p142 = por %p140, %p141
      %p143 = scmp.ne.s32.totalorder %s134, %s135
      %p144 = scmp.eq.s32.totalorder %s27, 0
      %p145 = por %p143, %p144
      %p146 = scmp.ne.s32.totalorder %s134, %s135
      %p147 = scmp.eq.s32.totalorder %s28, 1
      %p148 = por %p146, %p147
      %p150 = scmp.ne.s32.totalorder %s135, %s149
      %p151 = scmp.eq.s32.totalorder %s28, 0
      %p152 = por %p150, %p151
      %s154 = sadd.s32 %s153, 1
      %p157 = scmp.eq.s32.totalorder %s22, 1
      %p158 = scmp.ne.s32.totalorder %s153, %s155
      %p159 = scmp.eq.s32.totalorder %s22, 0
      %p160 = por %p158, %p159
      %p161 = scmp.ne.s32.totalorder %s153, %s155
      %p162 = scmp.eq.s32.totalorder %s27, 1
      %p163 = por %p161, %p162
      %p164 = scmp.ne.s32.totalorder %s155, %s156
      %p165 = scmp.eq.s32.totalorder %s27, 0
      %p166 = por %p164, %p165
      %p167 = scmp.ne.s32.totalorder %s155, %s156
      %p168 = scmp.eq.s32.totalorder %s28, 1
      %p169 = por %p167, %p168
      %p171 = scmp.ne.s32.totalorder %s156, %s170
      %p172 = scmp.eq.s32.totalorder %s28, 0
      %p173 = por %p171, %p172
      %s175 = sadd.s32 %s174, 1
      %p178 = scmp.eq.s32.totalorder %s22, 1
      %p179 = scmp.ne.s32.totalorder %s174, %s176
      %p180 = scmp.eq.s32.totalorder %s22, 0
      %p181 = por %p179, %p180
      %p182 = scmp.ne.s32.totalorder %s174, %s176
      %p183 = scmp.eq.s32.totalorder %s27, 1
      %p184 = por %p182, %p183
      %p185 = scmp.ne.s32.totalorder %s176, %s177
      %p186 = scmp.eq.s32.totalorder %s27, 0
      %p187 = por %p185, %p186
      %p188 = scmp.ne.s32.totalorder %s176, %s177
      %p189 = scmp.eq.s32.totalorder %s28, 1
      %p190 = por %p188, %p189
      %p192 = scmp.ne.s32.totalorder %s177, %s191
      %p193 = scmp.eq.s32.totalorder %s28, 0
      %p194 = por %p192, %p193
      %s196 = sadd.s32 %s195, 1
      %p199 = scmp.eq.s32.totalorder %s22, 1
      %p200 = scmp.ne.s32.totalorder %s195, %s197
      %p201 = scmp.eq.s32.totalorder %s22, 0
      %p202 = por %p200, %p201
      %p203 = scmp.ne.s32.totalorder %s195, %s197
      %p204 = scmp.eq.s32.totalorder %s27, 1
      %p205 = por %p203, %p204
      %p206 = scmp.ne.s32.totalorder %s197, %s198
      %p207 = scmp.eq.s32.totalorder %s27, 0
      %p208 = por %p206, %p207
      %p209 = scmp.ne.s32.totalorder %s197, %s198
      %p210 = scmp.eq.s32.totalorder %s28, 1
      %p211 = por %p209, %p210
      %p213 = scmp.ne.s32.totalorder %s198, %s212
      %p214 = scmp.eq.s32.totalorder %s28, 0
      %p215 = por %p213, %p214
      %p216 = scmp.lt.s32.totalorder %s22, 1
      %s217 = scalar_select %p216, %s22, 1
      %p218 = scmp.lt.s32.totalorder %s29, 1
      %s219 = scalar_select %p218, %s29, 1
      %s220 = ssub.s32 %s217, %s219
      %p221 = scmp.eq.s32.totalorder %s220, 0
      %s223 = sadd.s32 %s222, 1
      %s224 = scalar_select %p221, %s222, %s223
      %p227 = pneg %p221
      %p228 = scmp.eq.s32.totalorder %s22, 1
      %p229 = por %p227, %p228
      %p230 = scmp.ne.s32.totalorder %s222, %s225
      %p231 = scmp.eq.s32.totalorder %s22, 0
      %p232 = por %p230, %p231
      %p233 = scmp.ne.s32.totalorder %s222, %s225
      %p234 = scmp.eq.s32.totalorder %s27, 1
      %p235 = por %p233, %p234
      %p236 = scmp.ne.s32.totalorder %s225, %s226
      %p237 = scmp.eq.s32.totalorder %s27, 0
      %p238 = por %p236, %p237
      %p239 = scmp.ne.s32.totalorder %s225, %s226
      %p240 = scmp.eq.s32.totalorder %s28, 1
      %p241 = por %p239, %p240
      %p243 = scmp.ne.s32.totalorder %s226, %s242
      %p244 = scmp.eq.s32.totalorder %s28, 0
      %p245 = por %p243, %p244
      %p246 = scmp.lt.s32.totalorder %s22, 1
      %s247 = scalar_select %p246, %s22, 1
      %p248 = scmp.lt.s32.totalorder %s29, 1
      %s249 = scalar_select %p248, %s29, 1
      %s250 = ssub.s32 %s247, %s249
      %p251 = scmp.eq.s32.totalorder %s250, 0
      %s253 = sadd.s32 %s252, 1
      %s254 = scalar_select %p251, %s252, %s253
      %p257 = pneg %p251
      %p258 = scmp.eq.s32.totalorder %s22, 1
      %p259 = por %p257, %p258
      %p260 = scmp.ne.s32.totalorder %s252, %s255
      %p261 = scmp.eq.s32.totalorder %s22, 0
      %p262 = por %p260, %p261
      %p263 = scmp.ne.s32.totalorder %s252, %s255
      %p264 = scmp.eq.s32.totalorder %s27, 1
      %p265 = por %p263, %p264
      %p266 = scmp.ne.s32.totalorder %s255, %s256
      %p267 = scmp.eq.s32.totalorder %s27, 0
      %p268 = por %p266, %p267
      %p269 = scmp.ne.s32.totalorder %s255, %s256
      %p270 = scmp.eq.s32.totalorder %s28, 1
      %p271 = por %p269, %p270
      %p273 = scmp.ne.s32.totalorder %s256, %s272
      %p274 = scmp.eq.s32.totalorder %s28, 0
      %p275 = por %p273, %p274
      %p276 = scmp.le.s32.totalorder 1, %s22
      %p277 = scmp.lt.s32.totalorder %s22, 3
      %p278 = pnand %p276, %p277
      %p279 = pneg %p278
      // Predicated region
      $region9: #{tpu_custom_call.1} parent=5 // pred_check
        _
      $region10: #{tpu_custom_call.1} parent=5 // pred_check_branch
        %281 = sbr.rel (%p278) target = $region12
      $region11: #{tpu_custom_call.1} parent=5 // pred_region
        %s282 = ssub.s32 %s22, 1
        // Predicated region
        $region13: #{tpu_custom_call.1} parent=11 // pred_check
          %p283 = pneg %p103
        $region14: #{tpu_custom_call.1} parent=11 // pred_check_branch
          %285 = sbr.rel (%p283) target = $region16
        $region15: #{tpu_custom_call.1} parent=11 // pred_region
          _
        $region16: #{tpu_custom_call.1} parent=11 // pred_fallthru
          _
        // Predicated region
        $region17: #{tpu_custom_call.1} parent=11 // pred_check
          %p286 = pneg %p124
        $region18: #{tpu_custom_call.1} parent=11 // pred_check_branch
          %288 = sbr.rel (%p286) target = $region20
        $region19: #{tpu_custom_call.1} parent=11 // pred_region
          _
        $region20: #{tpu_custom_call.1} parent=11 // pred_fallthru
          _
        // Predicated region
        $region21: #{tpu_custom_call.1} parent=11 // pred_check
          %p289 = pneg %p145
        $region22: #{tpu_custom_call.1} parent=11 // pred_check_branch
          %291 = sbr.rel (%p289) target = $region24
        $region23: #{tpu_custom_call.1} parent=11 // pred_region
          _
        $region24: #{tpu_custom_call.1} parent=11 // pred_fallthru
          _
        // Predicated region
        $region25: #{tpu_custom_call.1} parent=11 // pred_check
          %p292 = pneg %p166
        $region26: #{tpu_custom_call.1} parent=11 // pred_check_branch
          %294 = sbr.rel (%p292) target = $region28
        $region27: #{tpu_custom_call.1} parent=11 // pred_region
          _
        $region28: #{tpu_custom_call.1} parent=11 // pred_fallthru
          _
        // Predicated region
        $region29: #{tpu_custom_call.1} parent=11 // pred_check
          %p295 = pneg %p187
        $region30: #{tpu_custom_call.1} parent=11 // pred_check_branch
          %297 = sbr.rel (%p295) target = $region32
        $region31: #{tpu_custom_call.1} parent=11 // pred_region
          _
        $region32: #{tpu_custom_call.1} parent=11 // pred_fallthru
          _
        // Predicated region
        $region33: #{tpu_custom_call.1} parent=11 // pred_check
          %p298 = pneg %p208
        $region34: #{tpu_custom_call.1} parent=11 // pred_check_branch
          %300 = sbr.rel (%p298) target = $region36
        $region35: #{tpu_custom_call.1} parent=11 // pred_region
          _
        $region36: #{tpu_custom_call.1} parent=11 // pred_fallthru
          _
      $region12: #{tpu_custom_call.1} parent=5 // pred_fallthru
        _
      %p301 = scmp.lt.s32.totalorder %s22, 2
      // Predicated region
      $region37: #{tpu_custom_call.1} parent=5 // pred_check
        %p302 = pneg %p301
      $region38: #{tpu_custom_call.1} parent=5 // pred_check_branch
        %304 = sbr.rel (%p302) target = $region40
      $region39: #{tpu_custom_call.1} parent=5 // pred_region
        // Predicated region
        $region41: #{tpu_custom_call.1} parent=39 // pred_check
          %p305 = pneg %p46
        $region42: #{tpu_custom_call.1} parent=39 // pred_check_branch
          %307 = sbr.rel (%p305) target = $region44
        $region43: #{tpu_custom_call.1} parent=39 // pred_region
          %p308 = scmp.lt.s32.totalorder %s22, 1
          %s309 = scalar_select %p308, %s22, 1
          %p310 = scmp.lt.s32.totalorder %s309, 1
          %s311 = scalar_select %p310, %s309, 1
          %s312 = smul.addr %s311, 8
          %s313 = scalar_lea.vmem %s0, %s312
          %p314 = scmp.lt.s32.totalorder %s22, 1
          %s315 = scalar_select %p314, %s22, 1
        $region44: #{tpu_custom_call.1} parent=39 // pred_fallthru
          _
        // Predicated region
        $region45: #{tpu_custom_call.1} parent=39 // pred_check
          %p316 = pneg %p76
        $region46: #{tpu_custom_call.1} parent=39 // pred_check_branch
          %318 = sbr.rel (%p316) target = $region48
        $region47: #{tpu_custom_call.1} parent=39 // pred_region
          %p319 = scmp.lt.s32.totalorder %s22, 1
          %s320 = scalar_select %p319, %s22, 1
          %p321 = scmp.lt.s32.totalorder %s320, 1
          %s322 = scalar_select %p321, %s320, 1
          %s323 = smul.addr %s322, 8
          %s324 = scalar_lea.vmem %s1, %s323
          %p325 = scmp.lt.s32.totalorder %s22, 1
          %s326 = scalar_select %p325, %s22, 1
        $region48: #{tpu_custom_call.1} parent=39 // pred_fallthru
          _
      $region40: #{tpu_custom_call.1} parent=5 // pred_fallthru
        _
      %p327 = scmp.le.s32.totalorder 1, %s22
      %p328 = scmp.lt.s32.totalorder %s22, 3
      %p329 = pnand %p327, %p328
      %p330 = pneg %p329
      // Predicated region
      $region49: #{tpu_custom_call.1} parent=5 // pred_check
        _
      $region50: #{tpu_custom_call.1} parent=5 // pred_check_branch
        %332 = sbr.rel (%p329) target = $region52
      $region51: #{tpu_custom_call.1} parent=5 // pred_region
        %s333 = ssub.s32 %s22, 1
        %p334 = scmp.lt.s32.totalorder %s27, 1
        %s335 = scalar_select %p334, %s27, 1
        %p336 = scmp.lt.s32.totalorder %s335, 1
        %s337 = scalar_select %p336, %s335, 1
        %s338 = smul.addr %s337, 8
        %s339 = scalar_lea.vmem %s0, %s338
        %p340 = pneg %p52
        %p341 = pneg %p49
        %p342 = scmp.lt.s32.totalorder %s27, 1
        %s343 = scalar_select %p342, %s27, 1
        %p344 = scmp.lt.s32.totalorder %s343, 1
        %s345 = scalar_select %p344, %s343, 1
        %s346 = smul.addr %s345, 8
        %s347 = scalar_lea.vmem %s1, %s346
        %p348 = pneg %p82
        %p349 = pneg %p79
        %p350 = pneg %p103
        %p351 = pneg %p100
        %p352 = pneg %p124
        %p353 = pneg %p121
        %p354 = pneg %p145
        %p355 = pneg %p142
        %p356 = pneg %p166
        %p357 = pneg %p163
        %p358 = pneg %p187
        %p359 = pneg %p184
        %p360 = pneg %p208
        %p361 = pneg %p205
        %p362 = pneg %p238
        %p363 = pneg %p235
        %s364 = sand.u32 %s225, 1
        %s365 = scalar_lea.sflag [#allocation3], %s364
        %s366 = sand.u32 %s225, 1
        %s367 = smul.addr %s366, 8
        %s368 = scalar_lea.vmem [#allocation2], %s367
        %p369 = pneg %p268
        %p370 = pneg %p265
        %s371 = sand.u32 %s255, 1
        %s372 = scalar_lea.sflag [#allocation5], %s371
        %s373 = sand.u32 %s255, 1
        %s374 = smul.addr %s373, 8
        %s375 = scalar_lea.vmem [#allocation4], %s374
        %p376 = scmp.lt.s32.totalorder %s27, 1
        %s377 = scalar_select %p376, %s27, 1
        %p378 = scmp.lt.s32.totalorder %s377, 1
        %s379 = scalar_select %p378, %s377, 1
        %s380 = smul.addr %s379, 8
        %s381 = scalar_lea.vmem %s0, %s380
        %p382 = scmp.lt.s32.totalorder %s27, 1
        %s383 = scalar_select %p382, %s27, 1
        %p384 = scmp.lt.s32.totalorder %s27, 1
        %s385 = scalar_select %p384, %s27, 1
        %p386 = scmp.lt.s32.totalorder %s385, 1
        %s387 = scalar_select %p386, %s385, 1
        %s388 = smul.addr %s387, 8
        %s389 = scalar_lea.vmem %s1, %s388
        %p390 = scmp.lt.s32.totalorder %s27, 1
        %s391 = scalar_select %p390, %s27, 1
        %p392 = scmp.lt.s32.totalorder %s27, 1
        %s393 = scalar_select %p392, %s27, 1
        %p394 = scmp.lt.s32.totalorder %s27, 1
        %s395 = scalar_select %p394, %s27, 1
        %v396 = vld [vmem:[%s381] sm:$0xff]
        %v397 = vld [vmem:[%s2] sm:$0xff]
        %v398 = vld [vmem:[%s2 + $0x8] sm:$0xff]
        %v399 = vld [vmem:[%s2 + $0x10] sm:$0xff]
        %v400 = vld [vmem:[%s2 + $0x18] sm:$0xff]
        %v401 = vld [vmem:[%s2 + $0x20] sm:$0xff]
        %v402 = vld [vmem:[%s2 + $0x28] sm:$0xff]
        %v403 = vld [vmem:[%s2 + $0x30] sm:$0xff]
        %v404 = vld [vmem:[%s2 + $0x38] sm:$0xff]
        %v405 = vld [vmem:[%s2 + $0x40] sm:$0xff]
        %v406 = vld [vmem:[%s2 + $0x48] sm:$0xff]
        %v407 = vld [vmem:[%s2 + $0x50] sm:$0xff]
        %v408 = vld [vmem:[%s2 + $0x58] sm:$0xff]
        %v409 = vld [vmem:[%s2 + $0x60] sm:$0xff]
        %v410 = vld [vmem:[%s2 + $0x68] sm:$0xff]
        %v411 = vld [vmem:[%s2 + $0x70] sm:$0xff]
        %v412 = vld [vmem:[%s2 + $0x78] sm:$0xff]
        %v413 = vld [vmem:[%s3] sm:$0xf]
        %414 = vmatprep.subr.mxu0 0.0
        %v415 = vand.u32 %v397, 4294901760
        %416 = vmatpush1.msra.mxu0 %v415
        %417 = vmatprep.subr.mxu0 0.0
        %v418 = vand.u32 %v398, 4294901760
        %419 = vmatpush1.msra.mxu0 %v418
        %420 = vmatprep.subr.mxu0 0.0
        %v421 = vand.u32 %v399, 4294901760
        %422 = vmatpush1.msra.mxu0 %v421
        %423 = vmatprep.subr.mxu0 0.0
        %v424 = vand.u32 %v400, 4294901760
        %425 = vmatpush1.msra.mxu0 %v424
        %426 = vmatprep.subr.mxu0 0.0
        %v427 = vand.u32 %v401, 4294901760
        %428 = vmatpush1.msra.mxu0 %v427
        %429 = vmatprep.subr.mxu0 0.0
        %v430 = vand.u32 %v402, 4294901760
        %431 = vmatpush1.msra.mxu0 %v430
        %432 = vmatprep.subr.mxu0 0.0
        %v433 = vand.u32 %v403, 4294901760
        %434 = vmatpush1.msra.mxu0 %v433
        %435 = vmatprep.subr.mxu0 0.0
        %v436 = vand.u32 %v404, 4294901760
        %437 = vmatpush1.msra.mxu0 %v436
        %438 = vmatprep.subr.mxu0 0.0
        %v439 = vand.u32 %v405, 4294901760
        %440 = vmatpush1.msra.mxu0 %v439
        %441 = vmatprep.subr.mxu0 0.0
        %v442 = vand.u32 %v406, 4294901760
        %443 = vmatpush1.msra.mxu0 %v442
        %444 = vmatprep.subr.mxu0 0.0
        %v445 = vand.u32 %v407, 4294901760
        %446 = vmatpush1.msra.mxu0 %v445
        %447 = vmatprep.subr.mxu0 0.0
        %v448 = vand.u32 %v408, 4294901760
        %449 = vmatpush1.msra.mxu0 %v448
        %450 = vmatprep.subr.mxu0 0.0
        %v451 = vand.u32 %v409, 4294901760
        %452 = vmatpush1.msra.mxu0 %v451
        %453 = vmatprep.subr.mxu0 0.0
        %v454 = vand.u32 %v410, 4294901760
        %455 = vmatpush1.msra.mxu0 %v454
        %456 = vmatprep.subr.mxu0 0.0
        %v457 = vand.u32 %v411, 4294901760
        %458 = vmatpush1.msra.mxu0 %v457
        %459 = vmatprep.subr.mxu0 0.0
        %v460 = vand.u32 %v412, 4294901760
        %461 = vmatpush1.msra.mxu0 %v460
        %462 = vmatprep.subr.mxu0 0.0
        %463 = vmatpush1.msra.mxu0 0.0
        %464 = vmatprep.subr.mxu0 0.0
        %465 = vmatpush1.msra.mxu0 0.0
        %466 = vmatprep.subr.mxu0 0.0
        %467 = vmatpush1.msra.mxu0 0.0
        %468 = vmatprep.subr.mxu0 0.0
        %469 = vmatpush1.msra.mxu0 0.0
        %470 = vmatprep.subr.mxu0 0.0
        %471 = vmatpush1.msra.mxu0 0.0
        %472 = vmatprep.subr.mxu0 0.0
        %473 = vmatpush1.msra.mxu0 0.0
        %474 = vmatprep.subr.mxu0 0.0
        %475 = vmatpush1.msra.mxu0 0.0
        %476 = vmatprep.subr.mxu0 0.0
        %477 = vmatpush1.msra.mxu0 0.0
        %478 = vmatprep.subr.mxu0 0.0
        %479 = vmatpush1.msra.mxu0 0.0
        %480 = vmatprep.subr.mxu0 0.0
        %481 = vmatpush1.msra.mxu0 0.0
        %482 = vmatprep.subr.mxu0 0.0
        %483 = vmatpush1.msra.mxu0 0.0
        %484 = vmatprep.subr.mxu0 0.0
        %485 = vmatpush1.msra.mxu0 0.0
        %486 = vmatprep.subr.mxu0 0.0
        %487 = vmatpush1.msra.mxu0 0.0
        %488 = vmatprep.subr.mxu0 0.0
        %489 = vmatpush1.msra.mxu0 0.0
        %490 = vmatprep.subr.mxu0 0.0
        %491 = vmatpush1.msra.mxu0 0.0
        %492 = vmatprep.subr.mxu0 0.0
        %493 = vmatpush1.msra.mxu0 0.0
        %494 = vmatprep.mubr.f32.mxu0 0.0
        %v495 = vand.u32 %v396, 4294901760
        %v496 = vsub.f32 %v396, %v495
        %v497 = vand.u32 %v496, 4294901760
        %v498 = vsub.f32 %v496, %v497
        %v499 = vand.u32 %v498, 4294901760
        %500 = vmatmul.mubr.f32.gmra.mrb[0].mxu0 %v499
        %v501 = vpop.f32.mrb[0].mxu0
        %v502 = vadd.f32 0.0, %v501
        %v503 = vpop.f32.mrb[0].mxu0
        %504 = vdwg.mxu0
        %505 = vmatprep.subr.mxu0 0.0
        %v506 = vand.u32 %v397, 4294901760
        %v507 = vsub.f32 %v397, %v506
        %v508 = vand.u32 %v507, 4294901760
        %v509 = vsub.f32 %v507, %v508
        %v510 = vand.u32 %v509, 4294901760
        %511 = vmatpush1.msra.mxu0 %v510
        %512 = vmatprep.subr.mxu0 0.0
        %v513 = vand.u32 %v398, 4294901760
        %v514 = vsub.f32 %v398, %v513
        %v515 = vand.u32 %v514, 4294901760
        %v516 = vsub.f32 %v514, %v515
        %v517 = vand.u32 %v516, 4294901760
        %518 = vmatpush1.msra.mxu0 %v517
        %519 = vmatprep.subr.mxu0 0.0
        %v520 = vand.u32 %v399, 4294901760
        %v521 = vsub.f32 %v399, %v520
        %v522 = vand.u32 %v521, 4294901760
        %v523 = vsub.f32 %v521, %v522
        %v524 = vand.u32 %v523, 4294901760
        %525 = vmatpush1.msra.mxu0 %v524
        %526 = vmatprep.subr.mxu0 0.0
        %v527 = vand.u32 %v400, 4294901760
        %v528 = vsub.f32 %v400, %v527
        %v529 = vand.u32 %v528, 4294901760
        %v530 = vsub.f32 %v528, %v529
        %v531 = vand.u32 %v530, 4294901760
        %532 = vmatpush1.msra.mxu0 %v531
        %533 = vmatprep.subr.mxu0 0.0
        %v534 = vand.u32 %v401, 4294901760
        %v535 = vsub.f32 %v401, %v534
        %v536 = vand.u32 %v535, 4294901760
        %v537 = vsub.f32 %v535, %v536
        %v538 = vand.u32 %v537, 4294901760
        %539 = vmatpush1.msra.mxu0 %v538
        %540 = vmatprep.subr.mxu0 0.0
        %v541 = vand.u32 %v402, 4294901760
        %v542 = vsub.f32 %v402, %v541
        %v543 = vand.u32 %v542, 4294901760
        %v544 = vsub.f32 %v542, %v543
        %v545 = vand.u32 %v544, 4294901760
        %546 = vmatpush1.msra.mxu0 %v545
        %547 = vmatprep.subr.mxu0 0.0
        %v548 = vand.u32 %v403, 4294901760
        %v549 = vsub.f32 %v403, %v548
        %v550 = vand.u32 %v549, 4294901760
        %v551 = vsub.f32 %v549, %v550
        %v552 = vand.u32 %v551, 4294901760
        %553 = vmatpush1.msra.mxu0 %v552
        %554 = vmatprep.subr.mxu0 0.0
        %v555 = vand.u32 %v404, 4294901760
        %v556 = vsub.f32 %v404, %v555
        %v557 = vand.u32 %v556, 4294901760
        %v558 = vsub.f32 %v556, %v557
        %v559 = vand.u32 %v558, 4294901760
        %560 = vmatpush1.msra.mxu0 %v559
        %561 = vmatprep.subr.mxu0 0.0
        %v562 = vand.u32 %v405, 4294901760
        %v563 = vsub.f32 %v405, %v562
        %v564 = vand.u32 %v563, 4294901760
        %v565 = vsub.f32 %v563, %v564
        %v566 = vand.u32 %v565, 4294901760
        %567 = vmatpush1.msra.mxu0 %v566
        %568 = vmatprep.subr.mxu0 0.0
        %v569 = vand.u32 %v406, 4294901760
        %v570 = vsub.f32 %v406, %v569
        %v571 = vand.u32 %v570, 4294901760
        %v572 = vsub.f32 %v570, %v571
        %v573 = vand.u32 %v572, 4294901760
        %574 = vmatpush1.msra.mxu0 %v573
        %575 = vmatprep.subr.mxu0 0.0
        %v576 = vand.u32 %v407, 4294901760
        %v577 = vsub.f32 %v407, %v576
        %v578 = vand.u32 %v577, 4294901760
        %v579 = vsub.f32 %v577, %v578
        %v580 = vand.u32 %v579, 4294901760
        %581 = vmatpush1.msra.mxu0 %v580
        %582 = vmatprep.subr.mxu0 0.0
        %v583 = vand.u32 %v408, 4294901760
        %v584 = vsub.f32 %v408, %v583
        %v585 = vand.u32 %v584, 4294901760
        %v586 = vsub.f32 %v584, %v585
        %v587 = vand.u32 %v586, 4294901760
        %588 = vmatpush1.msra.mxu0 %v587
        %589 = vmatprep.subr.mxu0 0.0
        %v590 = vand.u32 %v409, 4294901760
        %v591 = vsub.f32 %v409, %v590
        %v592 = vand.u32 %v591, 4294901760
        %v593 = vsub.f32 %v591, %v592
        %v594 = vand.u32 %v593, 4294901760
        %595 = vmatpush1.msra.mxu0 %v594
        %596 = vmatprep.subr.mxu0 0.0
        %v597 = vand.u32 %v410, 4294901760
        %v598 = vsub.f32 %v410, %v597
        %v599 = vand.u32 %v598, 4294901760
        %v600 = vsub.f32 %v598, %v599
        %v601 = vand.u32 %v600, 4294901760
        %602 = vmatpush1.msra.mxu0 %v601
        %603 = vmatprep.subr.mxu0 0.0
        %v604 = vand.u32 %v411, 4294901760
        %v605 = vsub.f32 %v411, %v604
        %v606 = vand.u32 %v605, 4294901760
        %v607 = vsub.f32 %v605, %v606
        %v608 = vand.u32 %v607, 4294901760
        %609 = vmatpush1.msra.mxu0 %v608
        %610 = vmatprep.subr.mxu0 0.0
        %v611 = vand.u32 %v412, 4294901760
        %v612 = vsub.f32 %v412, %v611
        %v613 = vand.u32 %v612, 4294901760
        %v614 = vsub.f32 %v612, %v613
        %v615 = vand.u32 %v614, 4294901760
        %616 = vmatpush1.msra.mxu0 %v615
        %617 = vmatprep.subr.mxu0 0.0
        %618 = vmatpush1.msra.mxu0 0.0
        %619 = vmatprep.subr.mxu0 0.0
        %620 = vmatpush1.msra.mxu0 0.0
        %621 = vmatprep.subr.mxu0 0.0
        %622 = vmatpush1.msra.mxu0 0.0
        %623 = vmatprep.subr.mxu0 0.0
        %624 = vmatpush1.msra.mxu0 0.0
        %625 = vmatprep.subr.mxu0 0.0
        %626 = vmatpush1.msra.mxu0 0.0
        %627 = vmatprep.subr.mxu0 0.0
        %628 = vmatpush1.msra.mxu0 0.0
        %629 = vmatprep.subr.mxu0 0.0
        %630 = vmatpush1.msra.mxu0 0.0
        %631 = vmatprep.subr.mxu0 0.0
        %632 = vmatpush1.msra.mxu0 0.0
        %633 = vmatprep.subr.mxu0 0.0
        %634 = vmatpush1.msra.mxu0 0.0
        %635 = vmatprep.subr.mxu0 0.0
        %636 = vmatpush1.msra.mxu0 0.0
        %637 = vmatprep.subr.mxu0 0.0
        %638 = vmatpush1.msra.mxu0 0.0
        %639 = vmatprep.subr.mxu0 0.0
        %640 = vmatpush1.msra.mxu0 0.0
        %641 = vmatprep.subr.mxu0 0.0
        %642 = vmatpush1.msra.mxu0 0.0
        %643 = vmatprep.subr.mxu0 0.0
        %644 = vmatpush1.msra.mxu0 0.0
        %645 = vmatprep.subr.mxu0 0.0
        %646 = vmatpush1.msra.mxu0 0.0
        %647 = vmatprep.subr.mxu0 0.0
        %648 = vmatpush1.msra.mxu0 0.0
        %649 = vmatprep.mubr.f32.mxu0 0.0
        %v650 = vand.u32 %v396, 4294901760
        %651 = vmatmul.mubr.f32.gmra.mrb[0].mxu0 %v650
        %v652 = vpop.f32.mrb[0].mxu0
        %v653 = vadd.f32 %v502, %v652
        %v654 = vpop.f32.mrb[0].mxu0
        %655 = vdwg.mxu0
        %656 = vmatprep.subr.mxu0 0.0
        %v657 = vand.u32 %v397, 4294901760
        %v658 = vsub.f32 %v397, %v657
        %659 = vmatpush1.msra.mxu0 %v658
        %660 = vmatprep.subr.mxu0 0.0
        %v661 = vand.u32 %v398, 4294901760
        %v662 = vsub.f32 %v398, %v661
        %663 = vmatpush1.msra.mxu0 %v662
        %664 = vmatprep.subr.mxu0 0.0
        %v665 = vand.u32 %v399, 4294901760
        %v666 = vsub.f32 %v399, %v665
        %667 = vmatpush1.msra.mxu0 %v666
        %668 = vmatprep.subr.mxu0 0.0
        %v669 = vand.u32 %v400, 4294901760
        %v670 = vsub.f32 %v400, %v669
        %671 = vmatpush1.msra.mxu0 %v670
        %672 = vmatprep.subr.mxu0 0.0
        %v673 = vand.u32 %v401, 4294901760
        %v674 = vsub.f32 %v401, %v673
        %675 = vmatpush1.msra.mxu0 %v674
        %676 = vmatprep.subr.mxu0 0.0
        %v677 = vand.u32 %v402, 4294901760
        %v678 = vsub.f32 %v402, %v677
        %679 = vmatpush1.msra.mxu0 %v678
        %680 = vmatprep.subr.mxu0 0.0
        %v681 = vand.u32 %v403, 4294901760
        %v682 = vsub.f32 %v403, %v681
        %683 = vmatpush1.msra.mxu0 %v682
        %684 = vmatprep.subr.mxu0 0.0
        %v685 = vand.u32 %v404, 4294901760
        %v686 = vsub.f32 %v404, %v685
        %687 = vmatpush1.msra.mxu0 %v686
        %688 = vmatprep.subr.mxu0 0.0
        %v689 = vand.u32 %v405, 4294901760
        %v690 = vsub.f32 %v405, %v689
        %691 = vmatpush1.msra.mxu0 %v690
        %692 = vmatprep.subr.mxu0 0.0
        %v693 = vand.u32 %v406, 4294901760
        %v694 = vsub.f32 %v406, %v693
        %695 = vmatpush1.msra.mxu0 %v694
        %696 = vmatprep.subr.mxu0 0.0
        %v697 = vand.u32 %v407, 4294901760
        %v698 = vsub.f32 %v407, %v697
        %699 = vmatpush1.msra.mxu0 %v698
        %700 = vmatprep.subr.mxu0 0.0
        %v701 = vand.u32 %v408, 4294901760
        %v702 = vsub.f32 %v408, %v701
        %703 = vmatpush1.msra.mxu0 %v702
        %704 = vmatprep.subr.mxu0 0.0
        %v705 = vand.u32 %v409, 4294901760
        %v706 = vsub.f32 %v409, %v705
        %707 = vmatpush1.msra.mxu0 %v706
        %708 = vmatprep.subr.mxu0 0.0
        %v709 = vand.u32 %v410, 4294901760
        %v710 = vsub.f32 %v410, %v709
        %711 = vmatpush1.msra.mxu0 %v710
        %712 = vmatprep.subr.mxu0 0.0
        %v713 = vand.u32 %v411, 4294901760
        %v714 = vsub.f32 %v411, %v713
        %715 = vmatpush1.msra.mxu0 %v714
        %716 = vmatprep.subr.mxu0 0.0
        %v717 = vand.u32 %v412, 4294901760
        %v718 = vsub.f32 %v412, %v717
        %719 = vmatpush1.msra.mxu0 %v718
        %720 = vmatprep.subr.mxu0 0.0
        %721 = vmatpush1.msra.mxu0 0.0
        %722 = vmatprep.subr.mxu0 0.0
        %723 = vmatpush1.msra.mxu0 0.0
        %724 = vmatprep.subr.mxu0 0.0
        %725 = vmatpush1.msra.mxu0 0.0
        %726 = vmatprep.subr.mxu0 0.0
        %727 = vmatpush1.msra.mxu0 0.0
        %728 = vmatprep.subr.mxu0 0.0
        %729 = vmatpush1.msra.mxu0 0.0
        %730 = vmatprep.subr.mxu0 0.0
        %731 = vmatpush1.msra.mxu0 0.0
        %732 = vmatprep.subr.mxu0 0.0
        %733 = vmatpush1.msra.mxu0 0.0
        %734 = vmatprep.subr.mxu0 0.0
        %735 = vmatpush1.msra.mxu0 0.0
        %736 = vmatprep.subr.mxu0 0.0
        %737 = vmatpush1.msra.mxu0 0.0
        %738 = vmatprep.subr.mxu0 0.0
        %739 = vmatpush1.msra.mxu0 0.0
        %740 = vmatprep.subr.mxu0 0.0
        %741 = vmatpush1.msra.mxu0 0.0
        %742 = vmatprep.subr.mxu0 0.0
        %743 = vmatpush1.msra.mxu0 0.0
        %744 = vmatprep.subr.mxu0 0.0
        %745 = vmatpush1.msra.mxu0 0.0
        %746 = vmatprep.subr.mxu0 0.0
        %747 = vmatpush1.msra.mxu0 0.0
        %748 = vmatprep.subr.mxu0 0.0
        %749 = vmatpush1.msra.mxu0 0.0
        %750 = vmatprep.subr.mxu0 0.0
        %751 = vmatpush1.msra.mxu0 0.0
        %752 = vmatprep.mubr.f32.mxu0 0.0
        %v753 = vand.u32 %v396, 4294901760
        %v754 = vsub.f32 %v396, %v753
        %755 = vmatmul.mubr.f32.gmra.mrb[0].mxu0 %v754
        %v756 = vpop.f32.mrb[0].mxu0
        %v757 = vadd.f32 %v653, %v756
        %v758 = vpop.f32.mrb[0].mxu0
        %759 = vdwg.mxu0
        %760 = vmatprep.subr.mxu0 0.0
        %v761 = vand.u32 %v397, 4294901760
        %762 = vmatpush1.msra.mxu0 %v761
        %763 = vmatprep.subr.mxu0 0.0
        %v764 = vand.u32 %v398, 4294901760
        %765 = vmatpush1.msra.mxu0 %v764
        %766 = vmatprep.subr.mxu0 0.0
        %v767 = vand.u32 %v399, 4294901760
        %768 = vmatpush1.msra.mxu0 %v767
        %769 = vmatprep.subr.mxu0 0.0
        %v770 = vand.u32 %v400, 4294901760
        %771 = vmatpush1.msra.mxu0 %v770
        %772 = vmatprep.subr.mxu0 0.0
        %v773 = vand.u32 %v401, 4294901760
        %774 = vmatpush1.msra.mxu0 %v773
        %775 = vmatprep.subr.mxu0 0.0
        %v776 = vand.u32 %v402, 4294901760
        %777 = vmatpush1.msra.mxu0 %v776
        %778 = vmatprep.subr.mxu0 0.0
        %v779 = vand.u32 %v403, 4294901760
        %780 = vmatpush1.msra.mxu0 %v779
        %781 = vmatprep.subr.mxu0 0.0
        %v782 = vand.u32 %v404, 4294901760
        %783 = vmatpush1.msra.mxu0 %v782
        %784 = vmatprep.subr.mxu0 0.0
        %v785 = vand.u32 %v405, 4294901760
        %786 = vmatpush1.msra.mxu0 %v785
        %787 = vmatprep.subr.mxu0 0.0
        %v788 = vand.u32 %v406, 4294901760
        %789 = vmatpush1.msra.mxu0 %v788
        %790 = vmatprep.subr.mxu0 0.0
        %v791 = vand.u32 %v407, 4294901760
        %792 = vmatpush1.msra.mxu0 %v791
        %793 = vmatprep.subr.mxu0 0.0
        %v794 = vand.u32 %v408, 4294901760
        %795 = vmatpush1.msra.mxu0 %v794
        %796 = vmatprep.subr.mxu0 0.0
        %v797 = vand.u32 %v409, 4294901760
        %798 = vmatpush1.msra.mxu0 %v797
        %799 = vmatprep.subr.mxu0 0.0
        %v800 = vand.u32 %v410, 4294901760
        %801 = vmatpush1.msra.mxu0 %v800
        %802 = vmatprep.subr.mxu0 0.0
        %v803 = vand.u32 %v411, 4294901760
        %804 = vmatpush1.msra.mxu0 %v803
        %805 = vmatprep.subr.mxu0 0.0
        %v806 = vand.u32 %v412, 4294901760
        %807 = vmatpush1.msra.mxu0 %v806
        %808 = vmatprep.subr.mxu0 0.0
        %809 = vmatpush1.msra.mxu0 0.0
        %810 = vmatprep.subr.mxu0 0.0
        %811 = vmatpush1.msra.mxu0 0.0
        %812 = vmatprep.subr.mxu0 0.0
        %813 = vmatpush1.msra.mxu0 0.0
        %814 = vmatprep.subr.mxu0 0.0
        %815 = vmatpush1.msra.mxu0 0.0
        %816 = vmatprep.subr.mxu0 0.0
        %817 = vmatpush1.msra.mxu0 0.0
        %818 = vmatprep.subr.mxu0 0.0
        %819 = vmatpush1.msra.mxu0 0.0
        %820 = vmatprep.subr.mxu0 0.0
        %821 = vmatpush1.msra.mxu0 0.0
        %822 = vmatprep.subr.mxu0 0.0
        %823 = vmatpush1.msra.mxu0 0.0
        %824 = vmatprep.subr.mxu0 0.0
        %825 = vmatpush1.msra.mxu0 0.0
        %826 = vmatprep.subr.mxu0 0.0
        %827 = vmatpush1.msra.mxu0 0.0
        %828 = vmatprep.subr.mxu0 0.0
        %829 = vmatpush1.msra.mxu0 0.0
        %830 = vmatprep.subr.mxu0 0.0
        %831 = vmatpush1.msra.mxu0 0.0
        %832 = vmatprep.subr.mxu0 0.0
        %833 = vmatpush1.msra.mxu0 0.0
        %834 = vmatprep.subr.mxu0 0.0
        %835 = vmatpush1.msra.mxu0 0.0
        %836 = vmatprep.subr.mxu0 0.0
        %837 = vmatpush1.msra.mxu0 0.0
        %838 = vmatprep.subr.mxu0 0.0
        %839 = vmatpush1.msra.mxu0 0.0
        %840 = vmatprep.mubr.f32.mxu0 0.0
        %v841 = vand.u32 %v396, 4294901760
        %v842 = vsub.f32 %v396, %v841
        %v843 = vand.u32 %v842, 4294901760
        %844 = vmatmul.mubr.f32.gmra.mrb[0].mxu0 %v843
        %v845 = vpop.f32.mrb[0].mxu0
        %v846 = vadd.f32 %v757, %v845
        %v847 = vpop.f32.mrb[0].mxu0
        %848 = vdwg.mxu0
        %849 = vmatprep.subr.mxu0 0.0
        %v850 = vand.u32 %v397, 4294901760
        %v851 = vsub.f32 %v397, %v850
        %v852 = vand.u32 %v851, 4294901760
        %853 = vmatpush1.msra.mxu0 %v852
        %854 = vmatprep.subr.mxu0 0.0
        %v855 = vand.u32 %v398, 4294901760
        %v856 = vsub.f32 %v398, %v855
        %v857 = vand.u32 %v856, 4294901760
        %858 = vmatpush1.msra.mxu0 %v857
        %859 = vmatprep.subr.mxu0 0.0
        %v860 = vand.u32 %v399, 4294901760
        %v861 = vsub.f32 %v399, %v860
        %v862 = vand.u32 %v861, 4294901760
        %863 = vmatpush1.msra.mxu0 %v862
        %864 = vmatprep.subr.mxu0 0.0
        %v865 = vand.u32 %v400, 4294901760
        %v866 = vsub.f32 %v400, %v865
        %v867 = vand.u32 %v866, 4294901760
        %868 = vmatpush1.msra.mxu0 %v867
        %869 = vmatprep.subr.mxu0 0.0
        %v870 = vand.u32 %v401, 4294901760
        %v871 = vsub.f32 %v401, %v870
        %v872 = vand.u32 %v871, 4294901760
        %873 = vmatpush1.msra.mxu0 %v872
        %874 = vmatprep.subr.mxu0 0.0
        %v875 = vand.u32 %v402, 4294901760
        %v876 = vsub.f32 %v402, %v875
        %v877 = vand.u32 %v876, 4294901760
        %878 = vmatpush1.msra.mxu0 %v877
        %879 = vmatprep.subr.mxu0 0.0
        %v880 = vand.u32 %v403, 4294901760
        %v881 = vsub.f32 %v403, %v880
        %v882 = vand.u32 %v881, 4294901760
        %883 = vmatpush1.msra.mxu0 %v882
        %884 = vmatprep.subr.mxu0 0.0
        %v885 = vand.u32 %v404, 4294901760
        %v886 = vsub.f32 %v404, %v885
        %v887 = vand.u32 %v886, 4294901760
        %888 = vmatpush1.msra.mxu0 %v887
        %889 = vmatprep.subr.mxu0 0.0
        %v890 = vand.u32 %v405, 4294901760
        %v891 = vsub.f32 %v405, %v890
        %v892 = vand.u32 %v891, 4294901760
        %893 = vmatpush1.msra.mxu0 %v892
        %894 = vmatprep.subr.mxu0 0.0
        %v895 = vand.u32 %v406, 4294901760
        %v896 = vsub.f32 %v406, %v895
        %v897 = vand.u32 %v896, 4294901760
        %898 = vmatpush1.msra.mxu0 %v897
        %899 = vmatprep.subr.mxu0 0.0
        %v900 = vand.u32 %v407, 4294901760
        %v901 = vsub.f32 %v407, %v900
        %v902 = vand.u32 %v901, 4294901760
        %903 = vmatpush1.msra.mxu0 %v902
        %904 = vmatprep.subr.mxu0 0.0
        %v905 = vand.u32 %v408, 4294901760
        %v906 = vsub.f32 %v408, %v905
        %v907 = vand.u32 %v906, 4294901760
        %908 = vmatpush1.msra.mxu0 %v907
        %909 = vmatprep.subr.mxu0 0.0
        %v910 = vand.u32 %v409, 4294901760
        %v911 = vsub.f32 %v409, %v910
        %v912 = vand.u32 %v911, 4294901760
        %913 = vmatpush1.msra.mxu0 %v912
        %914 = vmatprep.subr.mxu0 0.0
        %v915 = vand.u32 %v410, 4294901760
        %v916 = vsub.f32 %v410, %v915
        %v917 = vand.u32 %v916, 4294901760
        %918 = vmatpush1.msra.mxu0 %v917
        %919 = vmatprep.subr.mxu0 0.0
        %v920 = vand.u32 %v411, 4294901760
        %v921 = vsub.f32 %v411, %v920
        %v922 = vand.u32 %v921, 4294901760
        %923 = vmatpush1.msra.mxu0 %v922
        %924 = vmatprep.subr.mxu0 0.0
        %v925 = vand.u32 %v412, 4294901760
        %v926 = vsub.f32 %v412, %v925
        %v927 = vand.u32 %v926, 4294901760
        %928 = vmatpush1.msra.mxu0 %v927
        %929 = vmatprep.subr.mxu0 0.0
        %930 = vmatpush1.msra.mxu0 0.0
        %931 = vmatprep.subr.mxu0 0.0
        %932 = vmatpush1.msra.mxu0 0.0
        %933 = vmatprep.subr.mxu0 0.0
        %934 = vmatpush1.msra.mxu0 0.0
        %935 = vmatprep.subr.mxu0 0.0
        %936 = vmatpush1.msra.mxu0 0.0
        %937 = vmatprep.subr.mxu0 0.0
        %938 = vmatpush1.msra.mxu0 0.0
        %939 = vmatprep.subr.mxu0 0.0
        %940 = vmatpush1.msra.mxu0 0.0
        %941 = vmatprep.subr.mxu0 0.0
        %942 = vmatpush1.msra.mxu0 0.0
        %943 = vmatprep.subr.mxu0 0.0
        %944 = vmatpush1.msra.mxu0 0.0
        %945 = vmatprep.subr.mxu0 0.0
        %946 = vmatpush1.msra.mxu0 0.0
        %947 = vmatprep.subr.mxu0 0.0
        %948 = vmatpush1.msra.mxu0 0.0
        %949 = vmatprep.subr.mxu0 0.0
        %950 = vmatpush1.msra.mxu0 0.0
        %951 = vmatprep.subr.mxu0 0.0
        %952 = vmatpush1.msra.mxu0 0.0
        %953 = vmatprep.subr.mxu0 0.0
        %954 = vmatpush1.msra.mxu0 0.0
        %955 = vmatprep.subr.mxu0 0.0
        %956 = vmatpush1.msra.mxu0 0.0
        %957 = vmatprep.subr.mxu0 0.0
        %958 = vmatpush1.msra.mxu0 0.0
        %959 = vmatprep.subr.mxu0 0.0
        %960 = vmatpush1.msra.mxu0 0.0
        %961 = vmatprep.mubr.f32.mxu0 0.0
        %v962 = vand.u32 %v396, 4294901760
        %963 = vmatmul.mubr.f32.gmra.mrb[0].mxu0 %v962
        %v964 = vpop.f32.mrb[0].mxu0
        %v965 = vadd.f32 %v846, %v964
        %v966 = vpop.f32.mrb[0].mxu0
        %967 = vdwg.mxu0
        %968 = vmatprep.subr.mxu0 0.0
        %v969 = vand.u32 %v397, 4294901760
        %970 = vmatpush1.msra.mxu0 %v969
        %971 = vmatprep.subr.mxu0 0.0
        %v972 = vand.u32 %v398, 4294901760
        %973 = vmatpush1.msra.mxu0 %v972
        %974 = vmatprep.subr.mxu0 0.0
        %v975 = vand.u32 %v399, 4294901760
        %976 = vmatpush1.msra.mxu0 %v975
        %977 = vmatprep.subr.mxu0 0.0
        %v978 = vand.u32 %v400, 4294901760
        %979 = vmatpush1.msra.mxu0 %v978
        %980 = vmatprep.subr.mxu0 0.0
        %v981 = vand.u32 %v401, 4294901760
        %982 = vmatpush1.msra.mxu0 %v981
        %983 = vmatprep.subr.mxu0 0.0
        %v984 = vand.u32 %v402, 4294901760
        %985 = vmatpush1.msra.mxu0 %v984
        %986 = vmatprep.subr.mxu0 0.0
        %v987 = vand.u32 %v403, 4294901760
        %988 = vmatpush1.msra.mxu0 %v987
        %989 = vmatprep.subr.mxu0 0.0
        %v990 = vand.u32 %v404, 4294901760
        %991 = vmatpush1.msra.mxu0 %v990
        %992 = vmatprep.subr.mxu0 0.0
        %v993 = vand.u32 %v405, 4294901760
        %994 = vmatpush1.msra.mxu0 %v993
        %995 = vmatprep.subr.mxu0 0.0
        %v996 = vand.u32 %v406, 4294901760
        %997 = vmatpush1.msra.mxu0 %v996
        %998 = vmatprep.subr.mxu0 0.0
        %v999 = vand.u32 %v407, 4294901760
        %1000 = vmatpush1.msra.mxu0 %v999
        %1001 = vmatprep.subr.mxu0 0.0
        %v1002 = vand.u32 %v408, 4294901760
        %1003 = vmatpush1.msra.mxu0 %v1002
        %1004 = vmatprep.subr.mxu0 0.0
        %v1005 = vand.u32 %v409, 4294901760
        %1006 = vmatpush1.msra.mxu0 %v1005
        %1007 = vmatprep.subr.mxu0 0.0
        %v1008 = vand.u32 %v410, 4294901760
        %1009 = vmatpush1.msra.mxu0 %v1008
        %1010 = vmatprep.subr.mxu0 0.0
        %v1011 = vand.u32 %v411, 4294901760
        %1012 = vmatpush1.msra.mxu0 %v1011
        %1013 = vmatprep.subr.mxu0 0.0
        %v1014 = vand.u32 %v412, 4294901760
        %1015 = vmatpush1.msra.mxu0 %v1014
        %1016 = vmatprep.subr.mxu0 0.0
        %1017 = vmatpush1.msra.mxu0 0.0
        %1018 = vmatprep.subr.mxu0 0.0
        %1019 = vmatpush1.msra.mxu0 0.0
        %1020 = vmatprep.subr.mxu0 0.0
        %1021 = vmatpush1.msra.mxu0 0.0
        %1022 = vmatprep.subr.mxu0 0.0
        %1023 = vmatpush1.msra.mxu0 0.0
        %1024 = vmatprep.subr.mxu0 0.0
        %1025 = vmatpush1.msra.mxu0 0.0
        %1026 = vmatprep.subr.mxu0 0.0
        %1027 = vmatpush1.msra.mxu0 0.0
        %1028 = vmatprep.subr.mxu0 0.0
        %1029 = vmatpush1.msra.mxu0 0.0
        %1030 = vmatprep.subr.mxu0 0.0
        %1031 = vmatpush1.msra.mxu0 0.0
        %1032 = vmatprep.subr.mxu0 0.0
        %1033 = vmatpush1.msra.mxu0 0.0
        %1034 = vmatprep.subr.mxu0 0.0
        %1035 = vmatpush1.msra.mxu0 0.0
        %1036 = vmatprep.subr.mxu0 0.0
        %1037 = vmatpush1.msra.mxu0 0.0
        %1038 = vmatprep.subr.mxu0 0.0
        %1039 = vmatpush1.msra.mxu0 0.0
        %1040 = vmatprep.subr.mxu0 0.0
        %1041 = vmatpush1.msra.mxu0 0.0
        %1042 = vmatprep.subr.mxu0 0.0
        %1043 = vmatpush1.msra.mxu0 0.0
        %1044 = vmatprep.subr.mxu0 0.0
        %1045 = vmatpush1.msra.mxu0 0.0
        %1046 = vmatprep.subr.mxu0 0.0
        %1047 = vmatpush1.msra.mxu0 0.0
        %1048 = vmatprep.mubr.f32.mxu0 0.0
        %v1049 = vand.u32 %v396, 4294901760
        %1050 = vmatmul.mubr.f32.gmra.mrb[0].mxu0 %v1049
        %v1051 = vpop.f32.mrb[0].mxu0
        %v1052 = vadd.f32 %v965, %v1051
        %v1053 = vpop.f32.mrb[0].mxu0
        %1054 = vdwg.mxu0
        %v1055 = vmul.f32 %v1052, 0.03125
        %vm1056 = vcmask 31744
        %v1058 = vsel %vm1056, %v1055, 0
        %vm1060 = vcmask 1043456
        %v1062 = vsel %vm1060, %v413, 0
        %1064 = vmatprep.subr.mxu0 0.0
        %v1065 = vand.u32 %v1062, 4294901760
        %1066 = vmatpush1.msra.mxu0 %v1065
        %1067 = vmatprep.subr.mxu0 0.0
        %1068 = vmatpush1.msra.mxu0 0.0
        %1069 = vmatprep.subr.mxu0 0.0
        %1070 = vmatpush1.msra.mxu0 0.0
        %1071 = vmatprep.subr.mxu0 0.0
        %1072 = vmatpush1.msra.mxu0 0.0
        %1073 = vmatprep.subr.mxu0 0.0
        %1074 = vmatpush1.msra.mxu0 0.0
        %1075 = vmatprep.subr.mxu0 0.0
        %1076 = vmatpush1.msra.mxu0 0.0
        %1077 = vmatprep.subr.mxu0 0.0
        %1078 = vmatpush1.msra.mxu0 0.0
        %1079 = vmatprep.subr.mxu0 0.0
        %1080 = vmatpush1.msra.mxu0 0.0
        %1081 = vmatprep.subr.mxu0 0.0
        %1082 = vmatpush1.msra.mxu0 0.0
        %1083 = vmatprep.subr.mxu0 0.0
        %1084 = vmatpush1.msra.mxu0 0.0
        %1085 = vmatprep.subr.mxu0 0.0
        %1086 = vmatpush1.msra.mxu0 0.0
        %1087 = vmatprep.subr.mxu0 0.0
        %1088 = vmatpush1.msra.mxu0 0.0
        %1089 = vmatprep.subr.mxu0 0.0
        %1090 = vmatpush1.msra.mxu0 0.0
        %1091 = vmatprep.subr.mxu0 0.0
        %1092 = vmatpush1.msra.mxu0 0.0
        %1093 = vmatprep.subr.mxu0 0.0
        %1094 = vmatpush1.msra.mxu0 0.0
        %1095 = vmatprep.subr.mxu0 0.0
        %1096 = vmatpush1.msra.mxu0 0.0
        %1097 = vmatprep.subr.mxu0 0.0
        %1098 = vmatpush1.msra.mxu0 0.0
        %1099 = vmatprep.subr.mxu0 0.0
        %1100 = vmatpush1.msra.mxu0 0.0
        %1101 = vmatprep.subr.mxu0 0.0
        %1102 = vmatpush1.msra.mxu0 0.0
        %1103 = vmatprep.subr.mxu0 0.0
        %1104 = vmatpush1.msra.mxu0 0.0
        %1105 = vmatprep.subr.mxu0 0.0
        %1106 = vmatpush1.msra.mxu0 0.0
        %1107 = vmatprep.subr.mxu0 0.0
        %1108 = vmatpush1.msra.mxu0 0.0
        %1109 = vmatprep.subr.mxu0 0.0
        %1110 = vmatpush1.msra.mxu0 0.0
        %1111 = vmatprep.subr.mxu0 0.0
        %1112 = vmatpush1.msra.mxu0 0.0
        %1113 = vmatprep.subr.mxu0 0.0
        %1114 = vmatpush1.msra.mxu0 0.0
        %1115 = vmatprep.subr.mxu0 0.0
        %1116 = vmatpush1.msra.mxu0 0.0
        %1117 = vmatprep.subr.mxu0 0.0
        %1118 = vmatpush1.msra.mxu0 0.0
        %1119 = vmatprep.subr.mxu0 0.0
        %1120 = vmatpush1.msra.mxu0 0.0
        %1121 = vmatprep.subr.mxu0 0.0
        %1122 = vmatpush1.msra.mxu0 0.0
        %1123 = vmatprep.subr.mxu0 0.0
        %1124 = vmatpush1.msra.mxu0 0.0
        %1125 = vmatprep.subr.mxu0 0.0
        %1126 = vmatpush1.msra.mxu0 0.0
        %1127 = vmatprep.subr.mxu0 0.0
        %1128 = vmatpush1.msra.mxu0 0.0
        %1129 = vmatprep.mubr.f32.mxu0 0.0
        %v1130 = vand.u32 %v1058, 4294901760
        %v1131 = vsub.f32 %v1058, %v1130
        %v1132 = vand.u32 %v1131, 4294901760
        %v1133 = vsub.f32 %v1131, %v1132
        %v1134 = vand.u32 %v1133, 4294901760
        %1135 = vmatmul.mubr.f32.gmra.mrb[0].mxu0 %v1134
        %v1136 = vpop.f32.mrb[0].mxu0
        %v1137 = vadd.f32 0.0, %v1136
        %v1138 = vpop.f32.mrb[0].mxu0
        %1139 = vdwg.mxu0
        %1140 = vmatprep.subr.mxu0 0.0
        %v1141 = vand.u32 %v1062, 4294901760
        %v1142 = vsub.f32 %v1062, %v1141
        %v1143 = vand.u32 %v1142, 4294901760
        %v1144 = vsub.f32 %v1142, %v1143
        %v1145 = vand.u32 %v1144, 4294901760
        %1146 = vmatpush1.msra.mxu0 %v1145
        %1147 = vmatprep.subr.mxu0 0.0
        %1148 = vmatpush1.msra.mxu0 0.0
        %1149 = vmatprep.subr.mxu0 0.0
        %1150 = vmatpush1.msra.mxu0 0.0
        %1151 = vmatprep.subr.mxu0 0.0
        %1152 = vmatpush1.msra.mxu0 0.0
        %1153 = vmatprep.subr.mxu0 0.0
        %1154 = vmatpush1.msra.mxu0 0.0
        %1155 = vmatprep.subr.mxu0 0.0
        %1156 = vmatpush1.msra.mxu0 0.0
        %1157 = vmatprep.subr.mxu0 0.0
        %1158 = vmatpush1.msra.mxu0 0.0
        %1159 = vmatprep.subr.mxu0 0.0
        %1160 = vmatpush1.msra.mxu0 0.0
        %1161 = vmatprep.subr.mxu0 0.0
        %1162 = vmatpush1.msra.mxu0 0.0
        %1163 = vmatprep.subr.mxu0 0.0
        %1164 = vmatpush1.msra.mxu0 0.0
        %1165 = vmatprep.subr.mxu0 0.0
        %1166 = vmatpush1.msra.mxu0 0.0
        %1167 = vmatprep.subr.mxu0 0.0
        %1168 = vmatpush1.msra.mxu0 0.0
        %1169 = vmatprep.subr.mxu0 0.0
        %1170 = vmatpush1.msra.mxu0 0.0
        %1171 = vmatprep.subr.mxu0 0.0
        %1172 = vmatpush1.msra.mxu0 0.0
        %1173 = vmatprep.subr.mxu0 0.0
        %1174 = vmatpush1.msra.mxu0 0.0
        %1175 = vmatprep.subr.mxu0 0.0
        %1176 = vmatpush1.msra.mxu0 0.0
        %1177 = vmatprep.subr.mxu0 0.0
        %1178 = vmatpush1.msra.mxu0 0.0
        %1179 = vmatprep.subr.mxu0 0.0
        %1180 = vmatpush1.msra.mxu0 0.0
        %1181 = vmatprep.subr.mxu0 0.0
        %1182 = vmatpush1.msra.mxu0 0.0
        %1183 = vmatprep.subr.mxu0 0.0
        %1184 = vmatpush1.msra.mxu0 0.0
        %1185 = vmatprep.subr.mxu0 0.0
        %1186 = vmatpush1.msra.mxu0 0.0
        %1187 = vmatprep.subr.mxu0 0.0
        %1188 = vmatpush1.msra.mxu0 0.0
        %1189 = vmatprep.subr.mxu0 0.0
        %1190 = vmatpush1.msra.mxu0 0.0
        %1191 = vmatprep.subr.mxu0 0.0
        %1192 = vmatpush1.msra.mxu0 0.0
        %1193 = vmatprep.subr.mxu0 0.0
        %1194 = vmatpush1.msra.mxu0 0.0
        %1195 = vmatprep.subr.mxu0 0.0
        %1196 = vmatpush1.msra.mxu0 0.0
        %1197 = vmatprep.subr.mxu0 0.0
        %1198 = vmatpush1.msra.mxu0 0.0
        %1199 = vmatprep.subr.mxu0 0.0
        %1200 = vmatpush1.msra.mxu0 0.0
        %1201 = vmatprep.subr.mxu0 0.0
        %1202 = vmatpush1.msra.mxu0 0.0
        %1203 = vmatprep.subr.mxu0 0.0
        %1204 = vmatpush1.msra.mxu0 0.0
        %1205 = vmatprep.subr.mxu0 0.0
        %1206 = vmatpush1.msra.mxu0 0.0
        %1207 = vmatprep.subr.mxu0 0.0
        %1208 = vmatpush1.msra.mxu0 0.0
        %1209 = vmatprep.mubr.f32.mxu0 0.0
        %v1210 = vand.u32 %v1058, 4294901760
        %1211 = vmatmul.mubr.f32.gmra.mrb[0].mxu0 %v1210
        %v1212 = vpop.f32.mrb[0].mxu0
        %v1213 = vadd.f32 %v1137, %v1212
        %v1214 = vpop.f32.mrb[0].mxu0
        %1215 = vdwg.mxu0
        %1216 = vmatprep.subr.mxu0 0.0
        %v1217 = vand.u32 %v1062, 4294901760
        %v1218 = vsub.f32 %v1062, %v1217
        %1219 = vmatpush1.msra.mxu0 %v1218
        %1220 = vmatprep.subr.mxu0 0.0
        %1221 = vmatpush1.msra.mxu0 0.0
        %1222 = vmatprep.subr.mxu0 0.0
        %1223 = vmatpush1.msra.mxu0 0.0
        %1224 = vmatprep.subr.mxu0 0.0
        %1225 = vmatpush1.msra.mxu0 0.0
        %1226 = vmatprep.subr.mxu0 0.0
        %1227 = vmatpush1.msra.mxu0 0.0
        %1228 = vmatprep.subr.mxu0 0.0
        %1229 = vmatpush1.msra.mxu0 0.0
        %1230 = vmatprep.subr.mxu0 0.0
        %1231 = vmatpush1.msra.mxu0 0.0
        %1232 = vmatprep.subr.mxu0 0.0
        %1233 = vmatpush1.msra.mxu0 0.0
        %1234 = vmatprep.subr.mxu0 0.0
        %1235 = vmatpush1.msra.mxu0 0.0
        %1236 = vmatprep.subr.mxu0 0.0
        %1237 = vmatpush1.msra.mxu0 0.0
        %1238 = vmatprep.subr.mxu0 0.0
        %1239 = vmatpush1.msra.mxu0 0.0
        %1240 = vmatprep.subr.mxu0 0.0
        %1241 = vmatpush1.msra.mxu0 0.0
        %1242 = vmatprep.subr.mxu0 0.0
        %1243 = vmatpush1.msra.mxu0 0.0
        %1244 = vmatprep.subr.mxu0 0.0
        %1245 = vmatpush1.msra.mxu0 0.0
        %1246 = vmatprep.subr.mxu0 0.0
        %1247 = vmatpush1.msra.mxu0 0.0
        %1248 = vmatprep.subr.mxu0 0.0
        %1249 = vmatpush1.msra.mxu0 0.0
        %1250 = vmatprep.subr.mxu0 0.0
        %1251 = vmatpush1.msra.mxu0 0.0
        %1252 = vmatprep.subr.mxu0 0.0
        %1253 = vmatpush1.msra.mxu0 0.0
        %1254 = vmatprep.subr.mxu0 0.0
        %1255 = vmatpush1.msra.mxu0 0.0
        %1256 = vmatprep.subr.mxu0 0.0
        %1257 = vmatpush1.msra.mxu0 0.0
        %1258 = vmatprep.subr.mxu0 0.0
        %1259 = vmatpush1.msra.mxu0 0.0
        %1260 = vmatprep.subr.mxu0 0.0
        %1261 = vmatpush1.msra.mxu0 0.0
        %1262 = vmatprep.subr.mxu0 0.0
        %1263 = vmatpush1.msra.mxu0 0.0
        %1264 = vmatprep.subr.mxu0 0.0
        %1265 = vmatpush1.msra.mxu0 0.0
        %1266 = vmatprep.subr.mxu0 0.0
        %1267 = vmatpush1.msra.mxu0 0.0
        %1268 = vmatprep.subr.mxu0 0.0
        %1269 = vmatpush1.msra.mxu0 0.0
        %1270 = vmatprep.subr.mxu0 0.0
        %1271 = vmatpush1.msra.mxu0 0.0
        %1272 = vmatprep.subr.mxu0 0.0
        %1273 = vmatpush1.msra.mxu0 0.0
        %1274 = vmatprep.subr.mxu0 0.0
        %1275 = vmatpush1.msra.mxu0 0.0
        %1276 = vmatprep.subr.mxu0 0.0
        %1277 = vmatpush1.msra.mxu0 0.0
        %1278 = vmatprep.subr.mxu0 0.0
        %1279 = vmatpush1.msra.mxu0 0.0
        %1280 = vmatprep.subr.mxu0 0.0
        %1281 = vmatpush1.msra.mxu0 0.0
        %1282 = vmatprep.mubr.f32.mxu0 0.0
        %v1283 = vand.u32 %v1058, 4294901760
        %v1284 = vsub.f32 %v1058, %v1283
        %1285 = vmatmul.mubr.f32.gmra.mrb[0].mxu0 %v1284
        %v1286 = vpop.f32.mrb[0].mxu0
        %v1287 = vadd.f32 %v1213, %v1286
        %v1288 = vpop.f32.mrb[0].mxu0
        %1289 = vdwg.mxu0
        %1290 = vmatprep.subr.mxu0 0.0
        %v1291 = vand.u32 %v1062, 4294901760
        %1292 = vmatpush1.msra.mxu0 %v1291
        %1293 = vmatprep.subr.mxu0 0.0
        %1294 = vmatpush1.msra.mxu0 0.0
        %1295 = vmatprep.subr.mxu0 0.0
        %1296 = vmatpush1.msra.mxu0 0.0
        %1297 = vmatprep.subr.mxu0 0.0
        %1298 = vmatpush1.msra.mxu0 0.0
        %1299 = vmatprep.subr.mxu0 0.0
        %1300 = vmatpush1.msra.mxu0 0.0
        %1301 = vmatprep.subr.mxu0 0.0
        %1302 = vmatpush1.msra.mxu0 0.0
        %1303 = vmatprep.subr.mxu0 0.0
        %1304 = vmatpush1.msra.mxu0 0.0
        %1305 = vmatprep.subr.mxu0 0.0
        %1306 = vmatpush1.msra.mxu0 0.0
        %1307 = vmatprep.subr.mxu0 0.0
        %1308 = vmatpush1.msra.mxu0 0.0
        %1309 = vmatprep.subr.mxu0 0.0
        %1310 = vmatpush1.msra.mxu0 0.0
        %1311 = vmatprep.subr.mxu0 0.0
        %1312 = vmatpush1.msra.mxu0 0.0
        %1313 = vmatprep.subr.mxu0 0.0
        %1314 = vmatpush1.msra.mxu0 0.0
        %1315 = vmatprep.subr.mxu0 0.0
        %1316 = vmatpush1.msra.mxu0 0.0
        %1317 = vmatprep.subr.mxu0 0.0
        %1318 = vmatpush1.msra.mxu0 0.0
        %1319 = vmatprep.subr.mxu0 0.0
        %1320 = vmatpush1.msra.mxu0 0.0
        %1321 = vmatprep.subr.mxu0 0.0
        %1322 = vmatpush1.msra.mxu0 0.0
        %1323 = vmatprep.subr.mxu0 0.0
        %1324 = vmatpush1.msra.mxu0 0.0
        %1325 = vmatprep.subr.mxu0 0.0
        %1326 = vmatpush1.msra.mxu0 0.0
        %1327 = vmatprep.subr.mxu0 0.0
        %1328 = vmatpush1.msra.mxu0 0.0
        %1329 = vmatprep.subr.mxu0 0.0
        %1330 = vmatpush1.msra.mxu0 0.0
        %1331 = vmatprep.subr.mxu0 0.0
        %1332 = vmatpush1.msra.mxu0 0.0
        %1333 = vmatprep.subr.mxu0 0.0
        %1334 = vmatpush1.msra.mxu0 0.0
        %1335 = vmatprep.subr.mxu0 0.0
        %1336 = vmatpush1.msra.mxu0 0.0
        %1337 = vmatprep.subr.mxu0 0.0
        %1338 = vmatpush1.msra.mxu0 0.0
        %1339 = vmatprep.subr.mxu0 0.0
        %1340 = vmatpush1.msra.mxu0 0.0
        %1341 = vmatprep.subr.mxu0 0.0
        %1342 = vmatpush1.msra.mxu0 0.0
        %1343 = vmatprep.subr.mxu0 0.0
        %1344 = vmatpush1.msra.mxu0 0.0
        %1345 = vmatprep.subr.mxu0 0.0
        %1346 = vmatpush1.msra.mxu0 0.0
        %1347 = vmatprep.subr.mxu0 0.0
        %1348 = vmatpush1.msra.mxu0 0.0
        %1349 = vmatprep.subr.mxu0 0.0
        %1350 = vmatpush1.msra.mxu0 0.0
        %1351 = vmatprep.subr.mxu0 0.0
        %1352 = vmatpush1.msra.mxu0 0.0
        %1353 = vmatprep.subr.mxu0 0.0
        %1354 = vmatpush1.msra.mxu0 0.0
        %1355 = vmatprep.mubr.f32.mxu0 0.0
        %v1356 = vand.u32 %v1058, 4294901760
        %v1357 = vsub.f32 %v1058, %v1356
        %v1358 = vand.u32 %v1357, 4294901760
        %1359 = vmatmul.mubr.f32.gmra.mrb[0].mxu0 %v1358
        %v1360 = vpop.f32.mrb[0].mxu0
        %v1361 = vadd.f32 %v1287, %v1360
        %v1362 = vpop.f32.mrb[0].mxu0
        %1363 = vdwg.mxu0
        %1364 = vmatprep.subr.mxu0 0.0
        %v1365 = vand.u32 %v1062, 4294901760
        %v1366 = vsub.f32 %v1062, %v1365
        %v1367 = vand.u32 %v1366, 4294901760
        %1368 = vmatpush1.msra.mxu0 %v1367
        %1369 = vmatprep.subr.mxu0 0.0
        %1370 = vmatpush1.msra.mxu0 0.0
        %1371 = vmatprep.subr.mxu0 0.0
        %1372 = vmatpush1.msra.mxu0 0.0
        %1373 = vmatprep.subr.mxu0 0.0
        %1374 = vmatpush1.msra.mxu0 0.0
        %1375 = vmatprep.subr.mxu0 0.0
        %1376 = vmatpush1.msra.mxu0 0.0
        %1377 = vmatprep.subr.mxu0 0.0
        %1378 = vmatpush1.msra.mxu0 0.0
        %1379 = vmatprep.subr.mxu0 0.0
        %1380 = vmatpush1.msra.mxu0 0.0
        %1381 = vmatprep.subr.mxu0 0.0
        %1382 = vmatpush1.msra.mxu0 0.0
        %1383 = vmatprep.subr.mxu0 0.0
        %1384 = vmatpush1.msra.mxu0 0.0
        %1385 = vmatprep.subr.mxu0 0.0
        %1386 = vmatpush1.msra.mxu0 0.0
        %1387 = vmatprep.subr.mxu0 0.0
        %1388 = vmatpush1.msra.mxu0 0.0
        %1389 = vmatprep.subr.mxu0 0.0
        %1390 = vmatpush1.msra.mxu0 0.0
        %1391 = vmatprep.subr.mxu0 0.0
        %1392 = vmatpush1.msra.mxu0 0.0
        %1393 = vmatprep.subr.mxu0 0.0
        %1394 = vmatpush1.msra.mxu0 0.0
        %1395 = vmatprep.subr.mxu0 0.0
        %1396 = vmatpush1.msra.mxu0 0.0
        %1397 = vmatprep.subr.mxu0 0.0
        %1398 = vmatpush1.msra.mxu0 0.0
        %1399 = vmatprep.subr.mxu0 0.0
        %1400 = vmatpush1.msra.mxu0 0.0
        %1401 = vmatprep.subr.mxu0 0.0
        %1402 = vmatpush1.msra.mxu0 0.0
        %1403 = vmatprep.subr.mxu0 0.0
        %1404 = vmatpush1.msra.mxu0 0.0
        %1405 = vmatprep.subr.mxu0 0.0
        %1406 = vmatpush1.msra.mxu0 0.0
        %1407 = vmatprep.subr.mxu0 0.0
        %1408 = vmatpush1.msra.mxu0 0.0
        %1409 = vmatprep.subr.mxu0 0.0
        %1410 = vmatpush1.msra.mxu0 0.0
        %1411 = vmatprep.subr.mxu0 0.0
        %1412 = vmatpush1.msra.mxu0 0.0
        %1413 = vmatprep.subr.mxu0 0.0
        %1414 = vmatpush1.msra.mxu0 0.0
        %1415 = vmatprep.subr.mxu0 0.0
        %1416 = vmatpush1.msra.mxu0 0.0
        %1417 = vmatprep.subr.mxu0 0.0
        %1418 = vmatpush1.msra.mxu0 0.0
        %1419 = vmatprep.subr.mxu0 0.0
        %1420 = vmatpush1.msra.mxu0 0.0
        %1421 = vmatprep.subr.mxu0 0.0
        %1422 = vmatpush1.msra.mxu0 0.0
        %1423 = vmatprep.subr.mxu0 0.0
        %1424 = vmatpush1.msra.mxu0 0.0
        %1425 = vmatprep.subr.mxu0 0.0
        %1426 = vmatpush1.msra.mxu0 0.0
        %1427 = vmatprep.subr.mxu0 0.0
        %1428 = vmatpush1.msra.mxu0 0.0
        %1429 = vmatprep.subr.mxu0 0.0
        %1430 = vmatpush1.msra.mxu0 0.0
        %1431 = vmatprep.mubr.f32.mxu0 0.0
        %v1432 = vand.u32 %v1058, 4294901760
        %1433 = vmatmul.mubr.f32.gmra.mrb[0].mxu0 %v1432
        %v1434 = vpop.f32.mrb[0].mxu0
        %v1435 = vadd.f32 %v1361, %v1434
        %v1436 = vpop.f32.mrb[0].mxu0
        %1437 = vdwg.mxu0
        %1438 = vmatprep.subr.mxu0 0.0
        %v1439 = vand.u32 %v1062, 4294901760
        %1440 = vmatpush1.msra.mxu0 %v1439
        %1441 = vmatprep.subr.mxu0 0.0
        %1442 = vmatpush1.msra.mxu0 0.0
        %1443 = vmatprep.subr.mxu0 0.0
        %1444 = vmatpush1.msra.mxu0 0.0
        %1445 = vmatprep.subr.mxu0 0.0
        %1446 = vmatpush1.msra.mxu0 0.0
        %1447 = vmatprep.subr.mxu0 0.0
        %1448 = vmatpush1.msra.mxu0 0.0
        %1449 = vmatprep.subr.mxu0 0.0
        %1450 = vmatpush1.msra.mxu0 0.0
        %1451 = vmatprep.subr.mxu0 0.0
        %1452 = vmatpush1.msra.mxu0 0.0
        %1453 = vmatprep.subr.mxu0 0.0
        %1454 = vmatpush1.msra.mxu0 0.0
        %1455 = vmatprep.subr.mxu0 0.0
        %1456 = vmatpush1.msra.mxu0 0.0
        %1457 = vmatprep.subr.mxu0 0.0
        %1458 = vmatpush1.msra.mxu0 0.0
        %1459 = vmatprep.subr.mxu0 0.0
        %1460 = vmatpush1.msra.mxu0 0.0
        %1461 = vmatprep.subr.mxu0 0.0
        %1462 = vmatpush1.msra.mxu0 0.0
        %1463 = vmatprep.subr.mxu0 0.0
        %1464 = vmatpush1.msra.mxu0 0.0
        %1465 = vmatprep.subr.mxu0 0.0
        %1466 = vmatpush1.msra.mxu0 0.0
        %1467 = vmatprep.subr.mxu0 0.0
        %1468 = vmatpush1.msra.mxu0 0.0
        %1469 = vmatprep.subr.mxu0 0.0
        %1470 = vmatpush1.msra.mxu0 0.0
        %1471 = vmatprep.subr.mxu0 0.0
        %1472 = vmatpush1.msra.mxu0 0.0
        %1473 = vmatprep.subr.mxu0 0.0
        %1474 = vmatpush1.msra.mxu0 0.0
        %1475 = vmatprep.subr.mxu0 0.0
        %1476 = vmatpush1.msra.mxu0 0.0
        %1477 = vmatprep.subr.mxu0 0.0
        %1478 = vmatpush1.msra.mxu0 0.0
        %1479 = vmatprep.subr.mxu0 0.0
        %1480 = vmatpush1.msra.mxu0 0.0
        %1481 = vmatprep.subr.mxu0 0.0
        %1482 = vmatpush1.msra.mxu0 0.0
        %1483 = vmatprep.subr.mxu0 0.0
        %1484 = vmatpush1.msra.mxu0 0.0
        %1485 = vmatprep.subr.mxu0 0.0
        %1486 = vmatpush1.msra.mxu0 0.0
        %1487 = vmatprep.subr.mxu0 0.0
        %1488 = vmatpush1.msra.mxu0 0.0
        %1489 = vmatprep.subr.mxu0 0.0
        %1490 = vmatpush1.msra.mxu0 0.0
        %1491 = vmatprep.subr.mxu0 0.0
        %1492 = vmatpush1.msra.mxu0 0.0
        %1493 = vmatprep.subr.mxu0 0.0
        %1494 = vmatpush1.msra.mxu0 0.0
        %1495 = vmatprep.subr.mxu0 0.0
        %1496 = vmatpush1.msra.mxu0 0.0
        %1497 = vmatprep.subr.mxu0 0.0
        %1498 = vmatpush1.msra.mxu0 0.0
        %1499 = vmatprep.subr.mxu0 0.0
        %1500 = vmatpush1.msra.mxu0 0.0
        %1501 = vmatprep.subr.mxu0 0.0
        %1502 = vmatpush1.msra.mxu0 0.0
        %1503 = vmatprep.mubr.f32.mxu0 0.0
        %v1504 = vand.u32 %v1058, 4294901760
        %1505 = vmatmul.mubr.f32.gmra.mrb[0].mxu0 %v1504
        %v1506 = vpop.f32.mrb[0].mxu0
        %v1507 = vadd.f32 %v1435, %v1506
        %v1508 = vpop.f32.mrb[0].mxu0
        %1509 = vdwg.mxu0
        %v1510 = vsub.f32 %v396, %v1507
        %v1511 = vmul.f32 %v1510, %v1510
        %1512 = vmatprep.subr.mxu0 0.0
        %v1513 = vand.u32 %v397, 4294901760
        %1514 = vmatpush1.msra.mxu0 %v1513
        %1515 = vmatprep.subr.mxu0 0.0
        %v1516 = vand.u32 %v398, 4294901760
        %1517 = vmatpush1.msra.mxu0 %v1516
        %1518 = vmatprep.subr.mxu0 0.0
        %v1519 = vand.u32 %v399, 4294901760
        %1520 = vmatpush1.msra.mxu0 %v1519
        %1521 = vmatprep.subr.mxu0 0.0
        %v1522 = vand.u32 %v400, 4294901760
        %1523 = vmatpush1.msra.mxu0 %v1522
        %1524 = vmatprep.subr.mxu0 0.0
        %v1525 = vand.u32 %v401, 4294901760
        %1526 = vmatpush1.msra.mxu0 %v1525
        %1527 = vmatprep.subr.mxu0 0.0
        %v1528 = vand.u32 %v402, 4294901760
        %1529 = vmatpush1.msra.mxu0 %v1528
        %1530 = vmatprep.subr.mxu0 0.0
        %v1531 = vand.u32 %v403, 4294901760
        %1532 = vmatpush1.msra.mxu0 %v1531
        %1533 = vmatprep.subr.mxu0 0.0
        %v1534 = vand.u32 %v404, 4294901760
        %1535 = vmatpush1.msra.mxu0 %v1534
        %1536 = vmatprep.subr.mxu0 0.0
        %v1537 = vand.u32 %v405, 4294901760
        %1538 = vmatpush1.msra.mxu0 %v1537
        %1539 = vmatprep.subr.mxu0 0.0
        %v1540 = vand.u32 %v406, 4294901760
        %1541 = vmatpush1.msra.mxu0 %v1540
        %1542 = vmatprep.subr.mxu0 0.0
        %v1543 = vand.u32 %v407, 4294901760
        %1544 = vmatpush1.msra.mxu0 %v1543
        %1545 = vmatprep.subr.mxu0 0.0
        %v1546 = vand.u32 %v408, 4294901760
        %1547 = vmatpush1.msra.mxu0 %v1546
        %1548 = vmatprep.subr.mxu0 0.0
        %v1549 = vand.u32 %v409, 4294901760
        %1550 = vmatpush1.msra.mxu0 %v1549
        %1551 = vmatprep.subr.mxu0 0.0
        %v1552 = vand.u32 %v410, 4294901760
        %1553 = vmatpush1.msra.mxu0 %v1552
        %1554 = vmatprep.subr.mxu0 0.0
        %v1555 = vand.u32 %v411, 4294901760
        %1556 = vmatpush1.msra.mxu0 %v1555
        %1557 = vmatprep.subr.mxu0 0.0
        %v1558 = vand.u32 %v412, 4294901760
        %1559 = vmatpush1.msra.mxu0 %v1558
        %1560 = vmatprep.subr.mxu0 0.0
        %1561 = vmatpush1.msra.mxu0 0.0
        %1562 = vmatprep.subr.mxu0 0.0
        %1563 = vmatpush1.msra.mxu0 0.0
        %1564 = vmatprep.subr.mxu0 0.0
        %1565 = vmatpush1.msra.mxu0 0.0
        %1566 = vmatprep.subr.mxu0 0.0
        %1567 = vmatpush1.msra.mxu0 0.0
        %1568 = vmatprep.subr.mxu0 0.0
        %1569 = vmatpush1.msra.mxu0 0.0
        %1570 = vmatprep.subr.mxu0 0.0
        %1571 = vmatpush1.msra.mxu0 0.0
        %1572 = vmatprep.subr.mxu0 0.0
        %1573 = vmatpush1.msra.mxu0 0.0
        %1574 = vmatprep.subr.mxu0 0.0
        %1575 = vmatpush1.msra.mxu0 0.0
        %1576 = vmatprep.subr.mxu0 0.0
        %1577 = vmatpush1.msra.mxu0 0.0
        %1578 = vmatprep.subr.mxu0 0.0
        %1579 = vmatpush1.msra.mxu0 0.0
        %1580 = vmatprep.subr.mxu0 0.0
        %1581 = vmatpush1.msra.mxu0 0.0
        %1582 = vmatprep.subr.mxu0 0.0
        %1583 = vmatpush1.msra.mxu0 0.0
        %1584 = vmatprep.subr.mxu0 0.0
        %1585 = vmatpush1.msra.mxu0 0.0
        %1586 = vmatprep.subr.mxu0 0.0
        %1587 = vmatpush1.msra.mxu0 0.0
        %1588 = vmatprep.subr.mxu0 0.0
        %1589 = vmatpush1.msra.mxu0 0.0
        %1590 = vmatprep.subr.mxu0 0.0
        %1591 = vmatpush1.msra.mxu0 0.0
        %1592 = vmatprep.mubr.f32.mxu0 0.0
        %v1593 = vand.u32 %v1511, 4294901760
        %v1594 = vsub.f32 %v1511, %v1593
        %v1595 = vand.u32 %v1594, 4294901760
        %v1596 = vsub.f32 %v1594, %v1595
        %v1597 = vand.u32 %v1596, 4294901760
        %1598 = vmatmul.mubr.f32.gmra.mrb[0].mxu0 %v1597
        %v1599 = vpop.f32.mrb[0].mxu0
        %v1600 = vadd.f32 0.0, %v1599
        %v1601 = vpop.f32.mrb[0].mxu0
        %1602 = vdwg.mxu0
        %1603 = vmatprep.subr.mxu0 0.0
        %v1604 = vand.u32 %v397, 4294901760
        %v1605 = vsub.f32 %v397, %v1604
        %v1606 = vand.u32 %v1605, 4294901760
        %v1607 = vsub.f32 %v1605, %v1606
        %v1608 = vand.u32 %v1607, 4294901760
        %1609 = vmatpush1.msra.mxu0 %v1608
        %1610 = vmatprep.subr.mxu0 0.0
        %v1611 = vand.u32 %v398, 4294901760
        %v1612 = vsub.f32 %v398, %v1611
        %v1613 = vand.u32 %v1612, 4294901760
        %v1614 = vsub.f32 %v1612, %v1613
        %v1615 = vand.u32 %v1614, 4294901760
        %1616 = vmatpush1.msra.mxu0 %v1615
        %1617 = vmatprep.subr.mxu0 0.0
        %v1618 = vand.u32 %v399, 4294901760
        %v1619 = vsub.f32 %v399, %v1618
        %v1620 = vand.u32 %v1619, 4294901760
        %v1621 = vsub.f32 %v1619, %v1620
        %v1622 = vand.u32 %v1621, 4294901760
        %1623 = vmatpush1.msra.mxu0 %v1622
        %1624 = vmatprep.subr.mxu0 0.0
        %v1625 = vand.u32 %v400, 4294901760
        %v1626 = vsub.f32 %v400, %v1625
        %v1627 = vand.u32 %v1626, 4294901760
        %v1628 = vsub.f32 %v1626, %v1627
        %v1629 = vand.u32 %v1628, 4294901760
        %1630 = vmatpush1.msra.mxu0 %v1629
        %1631 = vmatprep.subr.mxu0 0.0
        %v1632 = vand.u32 %v401, 4294901760
        %v1633 = vsub.f32 %v401, %v1632
        %v1634 = vand.u32 %v1633, 4294901760
        %v1635 = vsub.f32 %v1633, %v1634
        %v1636 = vand.u32 %v1635, 4294901760
        %1637 = vmatpush1.msra.mxu0 %v1636
        %1638 = vmatprep.subr.mxu0 0.0
        %v1639 = vand.u32 %v402, 4294901760
        %v1640 = vsub.f32 %v402, %v1639
        %v1641 = vand.u32 %v1640, 4294901760
        %v1642 = vsub.f32 %v1640, %v1641
        %v1643 = vand.u32 %v1642, 4294901760
        %1644 = vmatpush1.msra.mxu0 %v1643
        %1645 = vmatprep.subr.mxu0 0.0
        %v1646 = vand.u32 %v403, 4294901760
        %v1647 = vsub.f32 %v403, %v1646
        %v1648 = vand.u32 %v1647, 4294901760
        %v1649 = vsub.f32 %v1647, %v1648
        %v1650 = vand.u32 %v1649, 4294901760
        %1651 = vmatpush1.msra.mxu0 %v1650
        %1652 = vmatprep.subr.mxu0 0.0
        %v1653 = vand.u32 %v404, 4294901760
        %v1654 = vsub.f32 %v404, %v1653
        %v1655 = vand.u32 %v1654, 4294901760
        %v1656 = vsub.f32 %v1654, %v1655
        %v1657 = vand.u32 %v1656, 4294901760
        %1658 = vmatpush1.msra.mxu0 %v1657
        %1659 = vmatprep.subr.mxu0 0.0
        %v1660 = vand.u32 %v405, 4294901760
        %v1661 = vsub.f32 %v405, %v1660
        %v1662 = vand.u32 %v1661, 4294901760
        %v1663 = vsub.f32 %v1661, %v1662
        %v1664 = vand.u32 %v1663, 4294901760
        %1665 = vmatpush1.msra.mxu0 %v1664
        %1666 = vmatprep.subr.mxu0 0.0
        %v1667 = vand.u32 %v406, 4294901760
        %v1668 = vsub.f32 %v406, %v1667
        %v1669 = vand.u32 %v1668, 4294901760
        %v1670 = vsub.f32 %v1668, %v1669
        %v1671 = vand.u32 %v1670, 4294901760
        %1672 = vmatpush1.msra.mxu0 %v1671
        %1673 = vmatprep.subr.mxu0 0.0
        %v1674 = vand.u32 %v407, 4294901760
        %v1675 = vsub.f32 %v407, %v1674
        %v1676 = vand.u32 %v1675, 4294901760
        %v1677 = vsub.f32 %v1675, %v1676
        %v1678 = vand.u32 %v1677, 4294901760
        %1679 = vmatpush1.msra.mxu0 %v1678
        %1680 = vmatprep.subr.mxu0 0.0
        %v1681 = vand.u32 %v408, 4294901760
        %v1682 = vsub.f32 %v408, %v1681
        %v1683 = vand.u32 %v1682, 4294901760
        %v1684 = vsub.f32 %v1682, %v1683
        %v1685 = vand.u32 %v1684, 4294901760
        %1686 = vmatpush1.msra.mxu0 %v1685
        %1687 = vmatprep.subr.mxu0 0.0
        %v1688 = vand.u32 %v409, 4294901760
        %v1689 = vsub.f32 %v409, %v1688
        %v1690 = vand.u32 %v1689, 4294901760
        %v1691 = vsub.f32 %v1689, %v1690
        %v1692 = vand.u32 %v1691, 4294901760
        %1693 = vmatpush1.msra.mxu0 %v1692
        %1694 = vmatprep.subr.mxu0 0.0
        %v1695 = vand.u32 %v410, 4294901760
        %v1696 = vsub.f32 %v410, %v1695
        %v1697 = vand.u32 %v1696, 4294901760
        %v1698 = vsub.f32 %v1696, %v1697
        %v1699 = vand.u32 %v1698, 4294901760
        %1700 = vmatpush1.msra.mxu0 %v1699
        %1701 = vmatprep.subr.mxu0 0.0
        %v1702 = vand.u32 %v411, 4294901760
        %v1703 = vsub.f32 %v411, %v1702
        %v1704 = vand.u32 %v1703, 4294901760
        %v1705 = vsub.f32 %v1703, %v1704
        %v1706 = vand.u32 %v1705, 4294901760
        %1707 = vmatpush1.msra.mxu0 %v1706
        %1708 = vmatprep.subr.mxu0 0.0
        %v1709 = vand.u32 %v412, 4294901760
        %v1710 = vsub.f32 %v412, %v1709
        %v1711 = vand.u32 %v1710, 4294901760
        %v1712 = vsub.f32 %v1710, %v1711
        %v1713 = vand.u32 %v1712, 4294901760
        %1714 = vmatpush1.msra.mxu0 %v1713
        %1715 = vmatprep.subr.mxu0 0.0
        %1716 = vmatpush1.msra.mxu0 0.0
        %1717 = vmatprep.subr.mxu0 0.0
        %1718 = vmatpush1.msra.mxu0 0.0
        %1719 = vmatprep.subr.mxu0 0.0
        %1720 = vmatpush1.msra.mxu0 0.0
        %1721 = vmatprep.subr.mxu0 0.0
        %1722 = vmatpush1.msra.mxu0 0.0
        %1723 = vmatprep.subr.mxu0 0.0
        %1724 = vmatpush1.msra.mxu0 0.0
        %1725 = vmatprep.subr.mxu0 0.0
        %1726 = vmatpush1.msra.mxu0 0.0
        %1727 = vmatprep.subr.mxu0 0.0
        %1728 = vmatpush1.msra.mxu0 0.0
        %1729 = vmatprep.subr.mxu0 0.0
        %1730 = vmatpush1.msra.mxu0 0.0
        %1731 = vmatprep.subr.mxu0 0.0
        %1732 = vmatpush1.msra.mxu0 0.0
        %1733 = vmatprep.subr.mxu0 0.0
        %1734 = vmatpush1.msra.mxu0 0.0
        %1735 = vmatprep.subr.mxu0 0.0
        %1736 = vmatpush1.msra.mxu0 0.0
        %1737 = vmatprep.subr.mxu0 0.0
        %1738 = vmatpush1.msra.mxu0 0.0
        %1739 = vmatprep.subr.mxu0 0.0
        %1740 = vmatpush1.msra.mxu0 0.0
        %1741 = vmatprep.subr.mxu0 0.0
        %1742 = vmatpush1.msra.mxu0 0.0
        %1743 = vmatprep.subr.mxu0 0.0
        %1744 = vmatpush1.msra.mxu0 0.0
        %1745 = vmatprep.subr.mxu0 0.0
        %1746 = vmatpush1.msra.mxu0 0.0
        %1747 = vmatprep.mubr.f32.mxu0 0.0
        %v1748 = vand.u32 %v1511, 4294901760
        %1749 = vmatmul.mubr.f32.gmra.mrb[0].mxu0 %v1748
        %v1750 = vpop.f32.mrb[0].mxu0
        %v1751 = vadd.f32 %v1600, %v1750
        %v1752 = vpop.f32.mrb[0].mxu0
        %1753 = vdwg.mxu0
        %1754 = vmatprep.subr.mxu0 0.0
        %v1755 = vand.u32 %v397, 4294901760
        %v1756 = vsub.f32 %v397, %v1755
        %1757 = vmatpush1.msra.mxu0 %v1756
        %1758 = vmatprep.subr.mxu0 0.0
        %v1759 = vand.u32 %v398, 4294901760
        %v1760 = vsub.f32 %v398, %v1759
        %1761 = vmatpush1.msra.mxu0 %v1760
        %1762 = vmatprep.subr.mxu0 0.0
        %v1763 = vand.u32 %v399, 4294901760
        %v1764 = vsub.f32 %v399, %v1763
        %1765 = vmatpush1.msra.mxu0 %v1764
        %1766 = vmatprep.subr.mxu0 0.0
        %v1767 = vand.u32 %v400, 4294901760
        %v1768 = vsub.f32 %v400, %v1767
        %1769 = vmatpush1.msra.mxu0 %v1768
        %1770 = vmatprep.subr.mxu0 0.0
        %v1771 = vand.u32 %v401, 4294901760
        %v1772 = vsub.f32 %v401, %v1771
        %1773 = vmatpush1.msra.mxu0 %v1772
        %1774 = vmatprep.subr.mxu0 0.0
        %v1775 = vand.u32 %v402, 4294901760
        %v1776 = vsub.f32 %v402, %v1775
        %1777 = vmatpush1.msra.mxu0 %v1776
        %1778 = vmatprep.subr.mxu0 0.0
        %v1779 = vand.u32 %v403, 4294901760
        %v1780 = vsub.f32 %v403, %v1779
        %1781 = vmatpush1.msra.mxu0 %v1780
        %1782 = vmatprep.subr.mxu0 0.0
        %v1783 = vand.u32 %v404, 4294901760
        %v1784 = vsub.f32 %v404, %v1783
        %1785 = vmatpush1.msra.mxu0 %v1784
        %1786 = vmatprep.subr.mxu0 0.0
        %v1787 = vand.u32 %v405, 4294901760
        %v1788 = vsub.f32 %v405, %v1787
        %1789 = vmatpush1.msra.mxu0 %v1788
        %1790 = vmatprep.subr.mxu0 0.0
        %v1791 = vand.u32 %v406, 4294901760
        %v1792 = vsub.f32 %v406, %v1791
        %1793 = vmatpush1.msra.mxu0 %v1792
        %1794 = vmatprep.subr.mxu0 0.0
        %v1795 = vand.u32 %v407, 4294901760
        %v1796 = vsub.f32 %v407, %v1795
        %1797 = vmatpush1.msra.mxu0 %v1796
        %1798 = vmatprep.subr.mxu0 0.0
        %v1799 = vand.u32 %v408, 4294901760
        %v1800 = vsub.f32 %v408, %v1799
        %1801 = vmatpush1.msra.mxu0 %v1800
        %1802 = vmatprep.subr.mxu0 0.0
        %v1803 = vand.u32 %v409, 4294901760
        %v1804 = vsub.f32 %v409, %v1803
        %1805 = vmatpush1.msra.mxu0 %v1804
        %1806 = vmatprep.subr.mxu0 0.0
        %v1807 = vand.u32 %v410, 4294901760
        %v1808 = vsub.f32 %v410, %v1807
        %1809 = vmatpush1.msra.mxu0 %v1808
        %1810 = vmatprep.subr.mxu0 0.0
        %v1811 = vand.u32 %v411, 4294901760
        %v1812 = vsub.f32 %v411, %v1811
        %1813 = vmatpush1.msra.mxu0 %v1812
        %1814 = vmatprep.subr.mxu0 0.0
        %v1815 = vand.u32 %v412, 4294901760
        %v1816 = vsub.f32 %v412, %v1815
        %1817 = vmatpush1.msra.mxu0 %v1816
        %1818 = vmatprep.subr.mxu0 0.0
        %1819 = vmatpush1.msra.mxu0 0.0
        %1820 = vmatprep.subr.mxu0 0.0
        %1821 = vmatpush1.msra.mxu0 0.0
        %1822 = vmatprep.subr.mxu0 0.0
        %1823 = vmatpush1.msra.mxu0 0.0
        %1824 = vmatprep.subr.mxu0 0.0
        %1825 = vmatpush1.msra.mxu0 0.0
        %1826 = vmatprep.subr.mxu0 0.0
        %1827 = vmatpush1.msra.mxu0 0.0
        %1828 = vmatprep.subr.mxu0 0.0
        %1829 = vmatpush1.msra.mxu0 0.0
        %1830 = vmatprep.subr.mxu0 0.0
        %1831 = vmatpush1.msra.mxu0 0.0
        %1832 = vmatprep.subr.mxu0 0.0
        %1833 = vmatpush1.msra.mxu0 0.0
        %1834 = vmatprep.subr.mxu0 0.0
        %1835 = vmatpush1.msra.mxu0 0.0
        %1836 = vmatprep.subr.mxu0 0.0
        %1837 = vmatpush1.msra.mxu0 0.0
        %1838 = vmatprep.subr.mxu0 0.0
        %1839 = vmatpush1.msra.mxu0 0.0
        %1840 = vmatprep.subr.mxu0 0.0
        %1841 = vmatpush1.msra.mxu0 0.0
        %1842 = vmatprep.subr.mxu0 0.0
        %1843 = vmatpush1.msra.mxu0 0.0
        %1844 = vmatprep.subr.mxu0 0.0
        %1845 = vmatpush1.msra.mxu0 0.0
        %1846 = vmatprep.subr.mxu0 0.0
        %1847 = vmatpush1.msra.mxu0 0.0
        %1848 = vmatprep.subr.mxu0 0.0
        %1849 = vmatpush1.msra.mxu0 0.0
        %1850 = vmatprep.mubr.f32.mxu0 0.0
        %v1851 = vand.u32 %v1511, 4294901760
        %v1852 = vsub.f32 %v1511, %v1851
        %1853 = vmatmul.mubr.f32.gmra.mrb[0].mxu0 %v1852
        %v1854 = vpop.f32.mrb[0].mxu0
        %v1855 = vadd.f32 %v1751, %v1854
        %v1856 = vpop.f32.mrb[0].mxu0
        %1857 = vdwg.mxu0
        %1858 = vmatprep.subr.mxu0 0.0
        %v1859 = vand.u32 %v397, 4294901760
        %1860 = vmatpush1.msra.mxu0 %v1859
        %1861 = vmatprep.subr.mxu0 0.0
        %v1862 = vand.u32 %v398, 4294901760
        %1863 = vmatpush1.msra.mxu0 %v1862
        %1864 = vmatprep.subr.mxu0 0.0
        %v1865 = vand.u32 %v399, 4294901760
        %1866 = vmatpush1.msra.mxu0 %v1865
        %1867 = vmatprep.subr.mxu0 0.0
        %v1868 = vand.u32 %v400, 4294901760
        %1869 = vmatpush1.msra.mxu0 %v1868
        %1870 = vmatprep.subr.mxu0 0.0
        %v1871 = vand.u32 %v401, 4294901760
        %1872 = vmatpush1.msra.mxu0 %v1871
        %1873 = vmatprep.subr.mxu0 0.0
        %v1874 = vand.u32 %v402, 4294901760
        %1875 = vmatpush1.msra.mxu0 %v1874
        %1876 = vmatprep.subr.mxu0 0.0
        %v1877 = vand.u32 %v403, 4294901760
        %1878 = vmatpush1.msra.mxu0 %v1877
        %1879 = vmatprep.subr.mxu0 0.0
        %v1880 = vand.u32 %v404, 4294901760
        %1881 = vmatpush1.msra.mxu0 %v1880
        %1882 = vmatprep.subr.mxu0 0.0
        %v1883 = vand.u32 %v405, 4294901760
        %1884 = vmatpush1.msra.mxu0 %v1883
        %1885 = vmatprep.subr.mxu0 0.0
        %v1886 = vand.u32 %v406, 4294901760
        %1887 = vmatpush1.msra.mxu0 %v1886
        %1888 = vmatprep.subr.mxu0 0.0
        %v1889 = vand.u32 %v407, 4294901760
        %1890 = vmatpush1.msra.mxu0 %v1889
        %1891 = vmatprep.subr.mxu0 0.0
        %v1892 = vand.u32 %v408, 4294901760
        %1893 = vmatpush1.msra.mxu0 %v1892
        %1894 = vmatprep.subr.mxu0 0.0
        %v1895 = vand.u32 %v409, 4294901760
        %1896 = vmatpush1.msra.mxu0 %v1895
        %1897 = vmatprep.subr.mxu0 0.0
        %v1898 = vand.u32 %v410, 4294901760
        %1899 = vmatpush1.msra.mxu0 %v1898
        %1900 = vmatprep.subr.mxu0 0.0
        %v1901 = vand.u32 %v411, 4294901760
        %1902 = vmatpush1.msra.mxu0 %v1901
        %1903 = vmatprep.subr.mxu0 0.0
        %v1904 = vand.u32 %v412, 4294901760
        %1905 = vmatpush1.msra.mxu0 %v1904
        %1906 = vmatprep.subr.mxu0 0.0
        %1907 = vmatpush1.msra.mxu0 0.0
        %1908 = vmatprep.subr.mxu0 0.0
        %1909 = vmatpush1.msra.mxu0 0.0
        %1910 = vmatprep.subr.mxu0 0.0
        %1911 = vmatpush1.msra.mxu0 0.0
        %1912 = vmatprep.subr.mxu0 0.0
        %1913 = vmatpush1.msra.mxu0 0.0
        %1914 = vmatprep.subr.mxu0 0.0
        %1915 = vmatpush1.msra.mxu0 0.0
        %1916 = vmatprep.subr.mxu0 0.0
        %1917 = vmatpush1.msra.mxu0 0.0
        %1918 = vmatprep.subr.mxu0 0.0
        %1919 = vmatpush1.msra.mxu0 0.0
        %1920 = vmatprep.subr.mxu0 0.0
        %1921 = vmatpush1.msra.mxu0 0.0
        %1922 = vmatprep.subr.mxu0 0.0
        %1923 = vmatpush1.msra.mxu0 0.0
        %1924 = vmatprep.subr.mxu0 0.0
        %1925 = vmatpush1.msra.mxu0 0.0
        %1926 = vmatprep.subr.mxu0 0.0
        %1927 = vmatpush1.msra.mxu0 0.0
        %1928 = vmatprep.subr.mxu0 0.0
        %1929 = vmatpush1.msra.mxu0 0.0
        %1930 = vmatprep.subr.mxu0 0.0
        %1931 = vmatpush1.msra.mxu0 0.0
        %1932 = vmatprep.subr.mxu0 0.0
        %1933 = vmatpush1.msra.mxu0 0.0
        %1934 = vmatprep.subr.mxu0 0.0
        %1935 = vmatpush1.msra.mxu0 0.0
        %1936 = vmatprep.subr.mxu0 0.0
        %1937 = vmatpush1.msra.mxu0 0.0
        %1938 = vmatprep.mubr.f32.mxu0 0.0
        %v1939 = vand.u32 %v1511, 4294901760
        %v1940 = vsub.f32 %v1511, %v1939
        %v1941 = vand.u32 %v1940, 4294901760
        %1942 = vmatmul.mubr.f32.gmra.mrb[0].mxu0 %v1941
        %v1943 = vpop.f32.mrb[0].mxu0
        %v1944 = vadd.f32 %v1855, %v1943
        %v1945 = vpop.f32.mrb[0].mxu0
        %1946 = vdwg.mxu0
        %1947 = vmatprep.subr.mxu0 0.0
        %v1948 = vand.u32 %v397, 4294901760
        %v1949 = vsub.f32 %v397, %v1948
        %v1950 = vand.u32 %v1949, 4294901760
        %1951 = vmatpush1.msra.mxu0 %v1950
        %1952 = vmatprep.subr.mxu0 0.0
        %v1953 = vand.u32 %v398, 4294901760
        %v1954 = vsub.f32 %v398, %v1953
        %v1955 = vand.u32 %v1954, 4294901760
        %1956 = vmatpush1.msra.mxu0 %v1955
        %1957 = vmatprep.subr.mxu0 0.0
        %v1958 = vand.u32 %v399, 4294901760
        %v1959 = vsub.f32 %v399, %v1958
        %v1960 = vand.u32 %v1959, 4294901760
        %1961 = vmatpush1.msra.mxu0 %v1960
        %1962 = vmatprep.subr.mxu0 0.0
        %v1963 = vand.u32 %v400, 4294901760
        %v1964 = vsub.f32 %v400, %v1963
        %v1965 = vand.u32 %v1964, 4294901760
        %1966 = vmatpush1.msra.mxu0 %v1965
        %1967 = vmatprep.subr.mxu0 0.0
        %v1968 = vand.u32 %v401, 4294901760
        %v1969 = vsub.f32 %v401, %v1968
        %v1970 = vand.u32 %v1969, 4294901760
        %1971 = vmatpush1.msra.mxu0 %v1970
        %1972 = vmatprep.subr.mxu0 0.0
        %v1973 = vand.u32 %v402, 4294901760
        %v1974 = vsub.f32 %v402, %v1973
        %v1975 = vand.u32 %v1974, 4294901760
        %1976 = vmatpush1.msra.mxu0 %v1975
        %1977 = vmatprep.subr.mxu0 0.0
        %v1978 = vand.u32 %v403, 4294901760
        %v1979 = vsub.f32 %v403, %v1978
        %v1980 = vand.u32 %v1979, 4294901760
        %1981 = vmatpush1.msra.mxu0 %v1980
        %1982 = vmatprep.subr.mxu0 0.0
        %v1983 = vand.u32 %v404, 4294901760
        %v1984 = vsub.f32 %v404, %v1983
        %v1985 = vand.u32 %v1984, 4294901760
        %1986 = vmatpush1.msra.mxu0 %v1985
        %1987 = vmatprep.subr.mxu0 0.0
        %v1988 = vand.u32 %v405, 4294901760
        %v1989 = vsub.f32 %v405, %v1988
        %v1990 = vand.u32 %v1989, 4294901760
        %1991 = vmatpush1.msra.mxu0 %v1990
        %1992 = vmatprep.subr.mxu0 0.0
        %v1993 = vand.u32 %v406, 4294901760
        %v1994 = vsub.f32 %v406, %v1993
        %v1995 = vand.u32 %v1994, 4294901760
        %1996 = vmatpush1.msra.mxu0 %v1995
        %1997 = vmatprep.subr.mxu0 0.0
        %v1998 = vand.u32 %v407, 4294901760
        %v1999 = vsub.f32 %v407, %v1998
        %v2000 = vand.u32 %v1999, 4294901760
        %2001 = vmatpush1.msra.mxu0 %v2000
        %2002 = vmatprep.subr.mxu0 0.0
        %v2003 = vand.u32 %v408, 4294901760
        %v2004 = vsub.f32 %v408, %v2003
        %v2005 = vand.u32 %v2004, 4294901760
        %2006 = vmatpush1.msra.mxu0 %v2005
        %2007 = vmatprep.subr.mxu0 0.0
        %v2008 = vand.u32 %v409, 4294901760
        %v2009 = vsub.f32 %v409, %v2008
        %v2010 = vand.u32 %v2009, 4294901760
        %2011 = vmatpush1.msra.mxu0 %v2010
        %2012 = vmatprep.subr.mxu0 0.0
        %v2013 = vand.u32 %v410, 4294901760
        %v2014 = vsub.f32 %v410, %v2013
        %v2015 = vand.u32 %v2014, 4294901760
        %2016 = vmatpush1.msra.mxu0 %v2015
        %2017 = vmatprep.subr.mxu0 0.0
        %v2018 = vand.u32 %v411, 4294901760
        %v2019 = vsub.f32 %v411, %v2018
        %v2020 = vand.u32 %v2019, 4294901760
        %2021 = vmatpush1.msra.mxu0 %v2020
        %2022 = vmatprep.subr.mxu0 0.0
        %v2023 = vand.u32 %v412, 4294901760
        %v2024 = vsub.f32 %v412, %v2023
        %v2025 = vand.u32 %v2024, 4294901760
        %2026 = vmatpush1.msra.mxu0 %v2025
        %2027 = vmatprep.subr.mxu0 0.0
        %2028 = vmatpush1.msra.mxu0 0.0
        %2029 = vmatprep.subr.mxu0 0.0
        %2030 = vmatpush1.msra.mxu0 0.0
        %2031 = vmatprep.subr.mxu0 0.0
        %2032 = vmatpush1.msra.mxu0 0.0
        %2033 = vmatprep.subr.mxu0 0.0
        %2034 = vmatpush1.msra.mxu0 0.0
        %2035 = vmatprep.subr.mxu0 0.0
        %2036 = vmatpush1.msra.mxu0 0.0
        %2037 = vmatprep.subr.mxu0 0.0
        %2038 = vmatpush1.msra.mxu0 0.0
        %2039 = vmatprep.subr.mxu0 0.0
        %2040 = vmatpush1.msra.mxu0 0.0
        %2041 = vmatprep.subr.mxu0 0.0
        %2042 = vmatpush1.msra.mxu0 0.0
        %2043 = vmatprep.subr.mxu0 0.0
        %2044 = vmatpush1.msra.mxu0 0.0
        %2045 = vmatprep.subr.mxu0 0.0
        %2046 = vmatpush1.msra.mxu0 0.0
        %2047 = vmatprep.subr.mxu0 0.0
        %2048 = vmatpush1.msra.mxu0 0.0
        %2049 = vmatprep.subr.mxu0 0.0
        %2050 = vmatpush1.msra.mxu0 0.0
        %2051 = vmatprep.subr.mxu0 0.0
        %2052 = vmatpush1.msra.mxu0 0.0
        %2053 = vmatprep.subr.mxu0 0.0
        %2054 = vmatpush1.msra.mxu0 0.0
        %2055 = vmatprep.subr.mxu0 0.0
        %2056 = vmatpush1.msra.mxu0 0.0
        %2057 = vmatprep.subr.mxu0 0.0
        %2058 = vmatpush1.msra.mxu0 0.0
        %2059 = vmatprep.mubr.f32.mxu0 0.0
        %v2060 = vand.u32 %v1511, 4294901760
        %2061 = vmatmul.mubr.f32.gmra.mrb[0].mxu0 %v2060
        %v2062 = vpop.f32.mrb[0].mxu0
        %v2063 = vadd.f32 %v1944, %v2062
        %v2064 = vpop.f32.mrb[0].mxu0
        %2065 = vdwg.mxu0
        %2066 = vmatprep.subr.mxu0 0.0
        %v2067 = vand.u32 %v397, 4294901760
        %2068 = vmatpush1.msra.mxu0 %v2067
        %2069 = vmatprep.subr.mxu0 0.0
        %v2070 = vand.u32 %v398, 4294901760
        %2071 = vmatpush1.msra.mxu0 %v2070
        %2072 = vmatprep.subr.mxu0 0.0
        %v2073 = vand.u32 %v399, 4294901760
        %2074 = vmatpush1.msra.mxu0 %v2073
        %2075 = vmatprep.subr.mxu0 0.0
        %v2076 = vand.u32 %v400, 4294901760
        %2077 = vmatpush1.msra.mxu0 %v2076
        %2078 = vmatprep.subr.mxu0 0.0
        %v2079 = vand.u32 %v401, 4294901760
        %2080 = vmatpush1.msra.mxu0 %v2079
        %2081 = vmatprep.subr.mxu0 0.0
        %v2082 = vand.u32 %v402, 4294901760
        %2083 = vmatpush1.msra.mxu0 %v2082
        %2084 = vmatprep.subr.mxu0 0.0
        %v2085 = vand.u32 %v403, 4294901760
        %2086 = vmatpush1.msra.mxu0 %v2085
        %2087 = vmatprep.subr.mxu0 0.0
        %v2088 = vand.u32 %v404, 4294901760
        %2089 = vmatpush1.msra.mxu0 %v2088
        %2090 = vmatprep.subr.mxu0 0.0
        %v2091 = vand.u32 %v405, 4294901760
        %2092 = vmatpush1.msra.mxu0 %v2091
        %2093 = vmatprep.subr.mxu0 0.0
        %v2094 = vand.u32 %v406, 4294901760
        %2095 = vmatpush1.msra.mxu0 %v2094
        %2096 = vmatprep.subr.mxu0 0.0
        %v2097 = vand.u32 %v407, 4294901760
        %2098 = vmatpush1.msra.mxu0 %v2097
        %2099 = vmatprep.subr.mxu0 0.0
        %v2100 = vand.u32 %v408, 4294901760
        %2101 = vmatpush1.msra.mxu0 %v2100
        %2102 = vmatprep.subr.mxu0 0.0
        %v2103 = vand.u32 %v409, 4294901760
        %2104 = vmatpush1.msra.mxu0 %v2103
        %2105 = vmatprep.subr.mxu0 0.0
        %v2106 = vand.u32 %v410, 4294901760
        %2107 = vmatpush1.msra.mxu0 %v2106
        %2108 = vmatprep.subr.mxu0 0.0
        %v2109 = vand.u32 %v411, 4294901760
        %2110 = vmatpush1.msra.mxu0 %v2109
        %2111 = vmatprep.subr.mxu0 0.0
        %v2112 = vand.u32 %v412, 4294901760
        %2113 = vmatpush1.msra.mxu0 %v2112
        %2114 = vmatprep.subr.mxu0 0.0
        %2115 = vmatpush1.msra.mxu0 0.0
        %2116 = vmatprep.subr.mxu0 0.0
        %2117 = vmatpush1.msra.mxu0 0.0
        %2118 = vmatprep.subr.mxu0 0.0
        %2119 = vmatpush1.msra.mxu0 0.0
        %2120 = vmatprep.subr.mxu0 0.0
        %2121 = vmatpush1.msra.mxu0 0.0
        %2122 = vmatprep.subr.mxu0 0.0
        %2123 = vmatpush1.msra.mxu0 0.0
        %2124 = vmatprep.subr.mxu0 0.0
        %2125 = vmatpush1.msra.mxu0 0.0
        %2126 = vmatprep.subr.mxu0 0.0
        %2127 = vmatpush1.msra.mxu0 0.0
        %2128 = vmatprep.subr.mxu0 0.0
        %2129 = vmatpush1.msra.mxu0 0.0
        %2130 = vmatprep.subr.mxu0 0.0
        %2131 = vmatpush1.msra.mxu0 0.0
        %2132 = vmatprep.subr.mxu0 0.0
        %2133 = vmatpush1.msra.mxu0 0.0
        %2134 = vmatprep.subr.mxu0 0.0
        %2135 = vmatpush1.msra.mxu0 0.0
        %2136 = vmatprep.subr.mxu0 0.0
        %2137 = vmatpush1.msra.mxu0 0.0
        %2138 = vmatprep.subr.mxu0 0.0
        %2139 = vmatpush1.msra.mxu0 0.0
        %2140 = vmatprep.subr.mxu0 0.0
        %2141 = vmatpush1.msra.mxu0 0.0
        %2142 = vmatprep.subr.mxu0 0.0
        %2143 = vmatpush1.msra.mxu0 0.0
        %2144 = vmatprep.subr.mxu0 0.0
        %2145 = vmatpush1.msra.mxu0 0.0
        %2146 = vmatprep.mubr.f32.mxu0 0.0
        %v2147 = vand.u32 %v1511, 4294901760
        %2148 = vmatmul.mubr.f32.gmra.mrb[0].mxu0 %v2147
        %v2149 = vpop.f32.mrb[0].mxu0
        %v2150 = vadd.f32 %v2063, %v2149
        %v2151 = vpop.f32.mrb[0].mxu0
        %2152 = vdwg.mxu0
        %v2153 = vmul.f32 %v2150, 0.03125
        %v2154 = vadd.f32 %v2153, 1e-05
        %v2155 = vrsqrt.pop %v2154
        %v2157 = vsel %vm1056, %v2155, 0
        %2159 = vmatprep.subr.mxu0 0.0
        %v2160 = vand.u32 %v1062, 4294901760
        %2161 = vmatpush1.msra.mxu0 %v2160
        %2162 = vmatprep.subr.mxu0 0.0
        %2163 = vmatpush1.msra.mxu0 0.0
        %2164 = vmatprep.subr.mxu0 0.0
        %2165 = vmatpush1.msra.mxu0 0.0
        %2166 = vmatprep.subr.mxu0 0.0
        %2167 = vmatpush1.msra.mxu0 0.0
        %2168 = vmatprep.subr.mxu0 0.0
        %2169 = vmatpush1.msra.mxu0 0.0
        %2170 = vmatprep.subr.mxu0 0.0
        %2171 = vmatpush1.msra.mxu0 0.0
        %2172 = vmatprep.subr.mxu0 0.0
        %2173 = vmatpush1.msra.mxu0 0.0
        %2174 = vmatprep.subr.mxu0 0.0
        %2175 = vmatpush1.msra.mxu0 0.0
        %2176 = vmatprep.subr.mxu0 0.0
        %2177 = vmatpush1.msra.mxu0 0.0
        %2178 = vmatprep.subr.mxu0 0.0
        %2179 = vmatpush1.msra.mxu0 0.0
        %2180 = vmatprep.subr.mxu0 0.0
        %2181 = vmatpush1.msra.mxu0 0.0
        %2182 = vmatprep.subr.mxu0 0.0
        %2183 = vmatpush1.msra.mxu0 0.0
        %2184 = vmatprep.subr.mxu0 0.0
        %2185 = vmatpush1.msra.mxu0 0.0
        %2186 = vmatprep.subr.mxu0 0.0
        %2187 = vmatpush1.msra.mxu0 0.0
        %2188 = vmatprep.subr.mxu0 0.0
        %2189 = vmatpush1.msra.mxu0 0.0
        %2190 = vmatprep.subr.mxu0 0.0
        %2191 = vmatpush1.msra.mxu0 0.0
        %2192 = vmatprep.subr.mxu0 0.0
        %2193 = vmatpush1.msra.mxu0 0.0
        %2194 = vmatprep.subr.mxu0 0.0
        %2195 = vmatpush1.msra.mxu0 0.0
        %2196 = vmatprep.subr.mxu0 0.0
        %2197 = vmatpush1.msra.mxu0 0.0
        %2198 = vmatprep.subr.mxu0 0.0
        %2199 = vmatpush1.msra.mxu0 0.0
        %2200 = vmatprep.subr.mxu0 0.0
        %2201 = vmatpush1.msra.mxu0 0.0
        %2202 = vmatprep.subr.mxu0 0.0
        %2203 = vmatpush1.msra.mxu0 0.0
        %2204 = vmatprep.subr.mxu0 0.0
        %2205 = vmatpush1.msra.mxu0 0.0
        %2206 = vmatprep.subr.mxu0 0.0
        %2207 = vmatpush1.msra.mxu0 0.0
        %2208 = vmatprep.subr.mxu0 0.0
        %2209 = vmatpush1.msra.mxu0 0.0
        %2210 = vmatprep.subr.mxu0 0.0
        %2211 = vmatpush1.msra.mxu0 0.0
        %2212 = vmatprep.subr.mxu0 0.0
        %2213 = vmatpush1.msra.mxu0 0.0
        %2214 = vmatprep.subr.mxu0 0.0
        %2215 = vmatpush1.msra.mxu0 0.0
        %2216 = vmatprep.subr.mxu0 0.0
        %2217 = vmatpush1.msra.mxu0 0.0
        %2218 = vmatprep.subr.mxu0 0.0
        %2219 = vmatpush1.msra.mxu0 0.0
        %2220 = vmatprep.subr.mxu0 0.0
        %2221 = vmatpush1.msra.mxu0 0.0
        %2222 = vmatprep.subr.mxu0 0.0
        %2223 = vmatpush1.msra.mxu0 0.0
        %2224 = vmatprep.mubr.f32.mxu0 0.0
        %v2225 = vand.u32 %v2157, 4294901760
        %v2226 = vsub.f32 %v2157, %v2225
        %v2227 = vand.u32 %v2226, 4294901760
        %v2228 = vsub.f32 %v2226, %v2227
        %v2229 = vand.u32 %v2228, 4294901760
        %2230 = vmatmul.mubr.f32.gmra.mrb[0].mxu0 %v2229
        %v2231 = vpop.f32.mrb[0].mxu0
        %v2232 = vadd.f32 0.0, %v2231
        %v2233 = vpop.f32.mrb[0].mxu0
        %2234 = vdwg.mxu0
        %2235 = vmatprep.subr.mxu0 0.0
        %v2236 = vand.u32 %v1062, 4294901760
        %v2237 = vsub.f32 %v1062, %v2236
        %v2238 = vand.u32 %v2237, 4294901760
        %v2239 = vsub.f32 %v2237, %v2238
        %v2240 = vand.u32 %v2239, 4294901760
        %2241 = vmatpush1.msra.mxu0 %v2240
        %2242 = vmatprep.subr.mxu0 0.0
        %2243 = vmatpush1.msra.mxu0 0.0
        %2244 = vmatprep.subr.mxu0 0.0
        %2245 = vmatpush1.msra.mxu0 0.0
        %2246 = vmatprep.subr.mxu0 0.0
        %2247 = vmatpush1.msra.mxu0 0.0
        %2248 = vmatprep.subr.mxu0 0.0
        %2249 = vmatpush1.msra.mxu0 0.0
        %2250 = vmatprep.subr.mxu0 0.0
        %2251 = vmatpush1.msra.mxu0 0.0
        %2252 = vmatprep.subr.mxu0 0.0
        %2253 = vmatpush1.msra.mxu0 0.0
        %2254 = vmatprep.subr.mxu0 0.0
        %2255 = vmatpush1.msra.mxu0 0.0
        %2256 = vmatprep.subr.mxu0 0.0
        %2257 = vmatpush1.msra.mxu0 0.0
        %2258 = vmatprep.subr.mxu0 0.0
        %2259 = vmatpush1.msra.mxu0 0.0
        %2260 = vmatprep.subr.mxu0 0.0
        %2261 = vmatpush1.msra.mxu0 0.0
        %2262 = vmatprep.subr.mxu0 0.0
        %2263 = vmatpush1.msra.mxu0 0.0
        %2264 = vmatprep.subr.mxu0 0.0
        %2265 = vmatpush1.msra.mxu0 0.0
        %2266 = vmatprep.subr.mxu0 0.0
        %2267 = vmatpush1.msra.mxu0 0.0
        %2268 = vmatprep.subr.mxu0 0.0
        %2269 = vmatpush1.msra.mxu0 0.0
        %2270 = vmatprep.subr.mxu0 0.0
        %2271 = vmatpush1.msra.mxu0 0.0
        %2272 = vmatprep.subr.mxu0 0.0
        %2273 = vmatpush1.msra.mxu0 0.0
        %2274 = vmatprep.subr.mxu0 0.0
        %2275 = vmatpush1.msra.mxu0 0.0
        %2276 = vmatprep.subr.mxu0 0.0
        %2277 = vmatpush1.msra.mxu0 0.0
        %2278 = vmatprep.subr.mxu0 0.0
        %2279 = vmatpush1.msra.mxu0 0.0
        %2280 = vmatprep.subr.mxu0 0.0
        %2281 = vmatpush1.msra.mxu0 0.0
        %2282 = vmatprep.subr.mxu0 0.0
        %2283 = vmatpush1.msra.mxu0 0.0
        %2284 = vmatprep.subr.mxu0 0.0
        %2285 = vmatpush1.msra.mxu0 0.0
        %2286 = vmatprep.subr.mxu0 0.0
        %2287 = vmatpush1.msra.mxu0 0.0
        %2288 = vmatprep.subr.mxu0 0.0
        %2289 = vmatpush1.msra.mxu0 0.0
        %2290 = vmatprep.subr.mxu0 0.0
        %2291 = vmatpush1.msra.mxu0 0.0
        %2292 = vmatprep.subr.mxu0 0.0
        %2293 = vmatpush1.msra.mxu0 0.0
        %2294 = vmatprep.subr.mxu0 0.0
        %2295 = vmatpush1.msra.mxu0 0.0
        %2296 = vmatprep.subr.mxu0 0.0
        %2297 = vmatpush1.msra.mxu0 0.0
        %2298 = vmatprep.subr.mxu0 0.0
        %2299 = vmatpush1.msra.mxu0 0.0
        %2300 = vmatprep.subr.mxu0 0.0
        %2301 = vmatpush1.msra.mxu0 0.0
        %2302 = vmatprep.subr.mxu0 0.0
        %2303 = vmatpush1.msra.mxu0 0.0
        %2304 = vmatprep.mubr.f32.mxu0 0.0
        %v2305 = vand.u32 %v2157, 4294901760
        %2306 = vmatmul.mubr.f32.gmra.mrb[0].mxu0 %v2305
        %v2307 = vpop.f32.mrb[0].mxu0
        %v2308 = vadd.f32 %v2232, %v2307
        %v2309 = vpop.f32.mrb[0].mxu0
        %2310 = vdwg.mxu0
        %2311 = vmatprep.subr.mxu0 0.0
        %v2312 = vand.u32 %v1062, 4294901760
        %v2313 = vsub.f32 %v1062, %v2312
        %2314 = vmatpush1.msra.mxu0 %v2313
        %2315 = vmatprep.subr.mxu0 0.0
        %2316 = vmatpush1.msra.mxu0 0.0
        %2317 = vmatprep.subr.mxu0 0.0
        %2318 = vmatpush1.msra.mxu0 0.0
        %2319 = vmatprep.subr.mxu0 0.0
        %2320 = vmatpush1.msra.mxu0 0.0
        %2321 = vmatprep.subr.mxu0 0.0
        %2322 = vmatpush1.msra.mxu0 0.0
        %2323 = vmatprep.subr.mxu0 0.0
        %2324 = vmatpush1.msra.mxu0 0.0
        %2325 = vmatprep.subr.mxu0 0.0
        %2326 = vmatpush1.msra.mxu0 0.0
        %2327 = vmatprep.subr.mxu0 0.0
        %2328 = vmatpush1.msra.mxu0 0.0
        %2329 = vmatprep.subr.mxu0 0.0
        %2330 = vmatpush1.msra.mxu0 0.0
        %2331 = vmatprep.subr.mxu0 0.0
        %2332 = vmatpush1.msra.mxu0 0.0
        %2333 = vmatprep.subr.mxu0 0.0
        %2334 = vmatpush1.msra.mxu0 0.0
        %2335 = vmatprep.subr.mxu0 0.0
        %2336 = vmatpush1.msra.mxu0 0.0
        %2337 = vmatprep.subr.mxu0 0.0
        %2338 = vmatpush1.msra.mxu0 0.0
        %2339 = vmatprep.subr.mxu0 0.0
        %2340 = vmatpush1.msra.mxu0 0.0
        %2341 = vmatprep.subr.mxu0 0.0
        %2342 = vmatpush1.msra.mxu0 0.0
        %2343 = vmatprep.subr.mxu0 0.0
        %2344 = vmatpush1.msra.mxu0 0.0
        %2345 = vmatprep.subr.mxu0 0.0
        %2346 = vmatpush1.msra.mxu0 0.0
        %2347 = vmatprep.subr.mxu0 0.0
        %2348 = vmatpush1.msra.mxu0 0.0
        %2349 = vmatprep.subr.mxu0 0.0
        %2350 = vmatpush1.msra.mxu0 0.0
        %2351 = vmatprep.subr.mxu0 0.0
        %2352 = vmatpush1.msra.mxu0 0.0
        %2353 = vmatprep.subr.mxu0 0.0
        %2354 = vmatpush1.msra.mxu0 0.0
        %2355 = vmatprep.subr.mxu0 0.0
        %2356 = vmatpush1.msra.mxu0 0.0
        %2357 = vmatprep.subr.mxu0 0.0
        %2358 = vmatpush1.msra.mxu0 0.0
        %2359 = vmatprep.subr.mxu0 0.0
        %2360 = vmatpush1.msra.mxu0 0.0
        %2361 = vmatprep.subr.mxu0 0.0
        %2362 = vmatpush1.msra.mxu0 0.0
        %2363 = vmatprep.subr.mxu0 0.0
        %2364 = vmatpush1.msra.mxu0 0.0
        %2365 = vmatprep.subr.mxu0 0.0
        %2366 = vmatpush1.msra.mxu0 0.0
        %2367 = vmatprep.subr.mxu0 0.0
        %2368 = vmatpush1.msra.mxu0 0.0
        %2369 = vmatprep.subr.mxu0 0.0
        %2370 = vmatpush1.msra.mxu0 0.0
        %2371 = vmatprep.subr.mxu0 0.0
        %2372 = vmatpush1.msra.mxu0 0.0
        %2373 = vmatprep.subr.mxu0 0.0
        %2374 = vmatpush1.msra.mxu0 0.0
        %2375 = vmatprep.subr.mxu0 0.0
        %2376 = vmatpush1.msra.mxu0 0.0
        %2377 = vmatprep.mubr.f32.mxu0 0.0
        %v2378 = vand.u32 %v2157, 4294901760
        %v2379 = vsub.f32 %v2157, %v2378
        %2380 = vmatmul.mubr.f32.gmra.mrb[0].mxu0 %v2379
        %v2381 = vpop.f32.mrb[0].mxu0
        %v2382 = vadd.f32 %v2308, %v2381
        %v2383 = vpop.f32.mrb[0].mxu0
        %2384 = vdwg.mxu0
        %2385 = vmatprep.subr.mxu0 0.0
        %v2386 = vand.u32 %v1062, 4294901760
        %2387 = vmatpush1.msra.mxu0 %v2386
        %2388 = vmatprep.subr.mxu0 0.0
        %2389 = vmatpush1.msra.mxu0 0.0
        %2390 = vmatprep.subr.mxu0 0.0
        %2391 = vmatpush1.msra.mxu0 0.0
        %2392 = vmatprep.subr.mxu0 0.0
        %2393 = vmatpush1.msra.mxu0 0.0
        %2394 = vmatprep.subr.mxu0 0.0
        %2395 = vmatpush1.msra.mxu0 0.0
        %2396 = vmatprep.subr.mxu0 0.0
        %2397 = vmatpush1.msra.mxu0 0.0
        %2398 = vmatprep.subr.mxu0 0.0
        %2399 = vmatpush1.msra.mxu0 0.0
        %2400 = vmatprep.subr.mxu0 0.0
        %2401 = vmatpush1.msra.mxu0 0.0
        %2402 = vmatprep.subr.mxu0 0.0
        %2403 = vmatpush1.msra.mxu0 0.0
        %2404 = vmatprep.subr.mxu0 0.0
        %2405 = vmatpush1.msra.mxu0 0.0
        %2406 = vmatprep.subr.mxu0 0.0
        %2407 = vmatpush1.msra.mxu0 0.0
        %2408 = vmatprep.subr.mxu0 0.0
        %2409 = vmatpush1.msra.mxu0 0.0
        %2410 = vmatprep.subr.mxu0 0.0
        %2411 = vmatpush1.msra.mxu0 0.0
        %2412 = vmatprep.subr.mxu0 0.0
        %2413 = vmatpush1.msra.mxu0 0.0
        %2414 = vmatprep.subr.mxu0 0.0
        %2415 = vmatpush1.msra.mxu0 0.0
        %2416 = vmatprep.subr.mxu0 0.0
        %2417 = vmatpush1.msra.mxu0 0.0
        %2418 = vmatprep.subr.mxu0 0.0
        %2419 = vmatpush1.msra.mxu0 0.0
        %2420 = vmatprep.subr.mxu0 0.0
        %2421 = vmatpush1.msra.mxu0 0.0
        %2422 = vmatprep.subr.mxu0 0.0
        %2423 = vmatpush1.msra.mxu0 0.0
        %2424 = vmatprep.subr.mxu0 0.0
        %2425 = vmatpush1.msra.mxu0 0.0
        %2426 = vmatprep.subr.mxu0 0.0
        %2427 = vmatpush1.msra.mxu0 0.0
        %2428 = vmatprep.subr.mxu0 0.0
        %2429 = vmatpush1.msra.mxu0 0.0
        %2430 = vmatprep.subr.mxu0 0.0
        %2431 = vmatpush1.msra.mxu0 0.0
        %2432 = vmatprep.subr.mxu0 0.0
        %2433 = vmatpush1.msra.mxu0 0.0
        %2434 = vmatprep.subr.mxu0 0.0
        %2435 = vmatpush1.msra.mxu0 0.0
        %2436 = vmatprep.subr.mxu0 0.0
        %2437 = vmatpush1.msra.mxu0 0.0
        %2438 = vmatprep.subr.mxu0 0.0
        %2439 = vmatpush1.msra.mxu0 0.0
        %2440 = vmatprep.subr.mxu0 0.0
        %2441 = vmatpush1.msra.mxu0 0.0
        %2442 = vmatprep.subr.mxu0 0.0
        %2443 = vmatpush1.msra.mxu0 0.0
        %2444 = vmatprep.subr.mxu0 0.0
        %2445 = vmatpush1.msra.mxu0 0.0
        %2446 = vmatprep.subr.mxu0 0.0
        %2447 = vmatpush1.msra.mxu0 0.0
        %2448 = vmatprep.subr.mxu0 0.0
        %2449 = vmatpush1.msra.mxu0 0.0
        %2450 = vmatprep.mubr.f32.mxu0 0.0
        %v2451 = vand.u32 %v2157, 4294901760
        %v2452 = vsub.f32 %v2157, %v2451
        %v2453 = vand.u32 %v2452, 4294901760
        %2454 = vmatmul.mubr.f32.gmra.mrb[0].mxu0 %v2453
        %v2455 = vpop.f32.mrb[0].mxu0
        %v2456 = vadd.f32 %v2382, %v2455
        %v2457 = vpop.f32.mrb[0].mxu0
        %2458 = vdwg.mxu0
        %2459 = vmatprep.subr.mxu0 0.0
        %v2460 = vand.u32 %v1062, 4294901760
        %v2461 = vsub.f32 %v1062, %v2460
        %v2462 = vand.u32 %v2461, 4294901760
        %2463 = vmatpush1.msra.mxu0 %v2462
        %2464 = vmatprep.subr.mxu0 0.0
        %2465 = vmatpush1.msra.mxu0 0.0
        %2466 = vmatprep.subr.mxu0 0.0
        %2467 = vmatpush1.msra.mxu0 0.0
        %2468 = vmatprep.subr.mxu0 0.0
        %2469 = vmatpush1.msra.mxu0 0.0
        %2470 = vmatprep.subr.mxu0 0.0
        %2471 = vmatpush1.msra.mxu0 0.0
        %2472 = vmatprep.subr.mxu0 0.0
        %2473 = vmatpush1.msra.mxu0 0.0
        %2474 = vmatprep.subr.mxu0 0.0
        %2475 = vmatpush1.msra.mxu0 0.0
        %2476 = vmatprep.subr.mxu0 0.0
        %2477 = vmatpush1.msra.mxu0 0.0
        %2478 = vmatprep.subr.mxu0 0.0
        %2479 = vmatpush1.msra.mxu0 0.0
        %2480 = vmatprep.subr.mxu0 0.0
        %2481 = vmatpush1.msra.mxu0 0.0
        %2482 = vmatprep.subr.mxu0 0.0
        %2483 = vmatpush1.msra.mxu0 0.0
        %2484 = vmatprep.subr.mxu0 0.0
        %2485 = vmatpush1.msra.mxu0 0.0
        %2486 = vmatprep.subr.mxu0 0.0
        %2487 = vmatpush1.msra.mxu0 0.0
        %2488 = vmatprep.subr.mxu0 0.0
        %2489 = vmatpush1.msra.mxu0 0.0
        %2490 = vmatprep.subr.mxu0 0.0
        %2491 = vmatpush1.msra.mxu0 0.0
        %2492 = vmatprep.subr.mxu0 0.0
        %2493 = vmatpush1.msra.mxu0 0.0
        %2494 = vmatprep.subr.mxu0 0.0
        %2495 = vmatpush1.msra.mxu0 0.0
        %2496 = vmatprep.subr.mxu0 0.0
        %2497 = vmatpush1.msra.mxu0 0.0
        %2498 = vmatprep.subr.mxu0 0.0
        %2499 = vmatpush1.msra.mxu0 0.0
        %2500 = vmatprep.subr.mxu0 0.0
        %2501 = vmatpush1.msra.mxu0 0.0
        %2502 = vmatprep.subr.mxu0 0.0
        %2503 = vmatpush1.msra.mxu0 0.0
        %2504 = vmatprep.subr.mxu0 0.0
        %2505 = vmatpush1.msra.mxu0 0.0
        %2506 = vmatprep.subr.mxu0 0.0
        %2507 = vmatpush1.msra.mxu0 0.0
        %2508 = vmatprep.subr.mxu0 0.0
        %2509 = vmatpush1.msra.mxu0 0.0
        %2510 = vmatprep.subr.mxu0 0.0
        %2511 = vmatpush1.msra.mxu0 0.0
        %2512 = vmatprep.subr.mxu0 0.0
        %2513 = vmatpush1.msra.mxu0 0.0
        %2514 = vmatprep.subr.mxu0 0.0
        %2515 = vmatpush1.msra.mxu0 0.0
        %2516 = vmatprep.subr.mxu0 0.0
        %2517 = vmatpush1.msra.mxu0 0.0
        %2518 = vmatprep.subr.mxu0 0.0
        %2519 = vmatpush1.msra.mxu0 0.0
        %2520 = vmatprep.subr.mxu0 0.0
        %2521 = vmatpush1.msra.mxu0 0.0
        %2522 = vmatprep.subr.mxu0 0.0
        %2523 = vmatpush1.msra.mxu0 0.0
        %2524 = vmatprep.subr.mxu0 0.0
        %2525 = vmatpush1.msra.mxu0 0.0
        %2526 = vmatprep.mubr.f32.mxu0 0.0
        %v2527 = vand.u32 %v2157, 4294901760
        %2528 = vmatmul.mubr.f32.gmra.mrb[0].mxu0 %v2527
        %v2529 = vpop.f32.mrb[0].mxu0
        %v2530 = vadd.f32 %v2456, %v2529
        %v2531 = vpop.f32.mrb[0].mxu0
        %2532 = vdwg.mxu0
        %2533 = vmatprep.subr.mxu0 0.0
        %v2534 = vand.u32 %v1062, 4294901760
        %2535 = vmatpush1.msra.mxu0 %v2534
        %2536 = vmatprep.subr.mxu0 0.0
        %2537 = vmatpush1.msra.mxu0 0.0
        %2538 = vmatprep.subr.mxu0 0.0
        %2539 = vmatpush1.msra.mxu0 0.0
        %2540 = vmatprep.subr.mxu0 0.0
        %2541 = vmatpush1.msra.mxu0 0.0
        %2542 = vmatprep.subr.mxu0 0.0
        %2543 = vmatpush1.msra.mxu0 0.0
        %2544 = vmatprep.subr.mxu0 0.0
        %2545 = vmatpush1.msra.mxu0 0.0
        %2546 = vmatprep.subr.mxu0 0.0
        %2547 = vmatpush1.msra.mxu0 0.0
        %2548 = vmatprep.subr.mxu0 0.0
        %2549 = vmatpush1.msra.mxu0 0.0
        %2550 = vmatprep.subr.mxu0 0.0
        %2551 = vmatpush1.msra.mxu0 0.0
        %2552 = vmatprep.subr.mxu0 0.0
        %2553 = vmatpush1.msra.mxu0 0.0
        %2554 = vmatprep.subr.mxu0 0.0
        %2555 = vmatpush1.msra.mxu0 0.0
        %2556 = vmatprep.subr.mxu0 0.0
        %2557 = vmatpush1.msra.mxu0 0.0
        %2558 = vmatprep.subr.mxu0 0.0
        %2559 = vmatpush1.msra.mxu0 0.0
        %2560 = vmatprep.subr.mxu0 0.0
        %2561 = vmatpush1.msra.mxu0 0.0
        %2562 = vmatprep.subr.mxu0 0.0
        %2563 = vmatpush1.msra.mxu0 0.0
        %2564 = vmatprep.subr.mxu0 0.0
        %2565 = vmatpush1.msra.mxu0 0.0
        %2566 = vmatprep.subr.mxu0 0.0
        %2567 = vmatpush1.msra.mxu0 0.0
        %2568 = vmatprep.subr.mxu0 0.0
        %2569 = vmatpush1.msra.mxu0 0.0
        %2570 = vmatprep.subr.mxu0 0.0
        %2571 = vmatpush1.msra.mxu0 0.0
        %2572 = vmatprep.subr.mxu0 0.0
        %2573 = vmatpush1.msra.mxu0 0.0
        %2574 = vmatprep.subr.mxu0 0.0
        %2575 = vmatpush1.msra.mxu0 0.0
        %2576 = vmatprep.subr.mxu0 0.0
        %2577 = vmatpush1.msra.mxu0 0.0
        %2578 = vmatprep.subr.mxu0 0.0
        %2579 = vmatpush1.msra.mxu0 0.0
        %2580 = vmatprep.subr.mxu0 0.0
        %2581 = vmatpush1.msra.mxu0 0.0
        %2582 = vmatprep.subr.mxu0 0.0
        %2583 = vmatpush1.msra.mxu0 0.0
        %2584 = vmatprep.subr.mxu0 0.0
        %2585 = vmatpush1.msra.mxu0 0.0
        %2586 = vmatprep.subr.mxu0 0.0
        %2587 = vmatpush1.msra.mxu0 0.0
        %2588 = vmatprep.subr.mxu0 0.0
        %2589 = vmatpush1.msra.mxu0 0.0
        %2590 = vmatprep.subr.mxu0 0.0
        %2591 = vmatpush1.msra.mxu0 0.0
        %2592 = vmatprep.subr.mxu0 0.0
        %2593 = vmatpush1.msra.mxu0 0.0
        %2594 = vmatprep.subr.mxu0 0.0
        %2595 = vmatpush1.msra.mxu0 0.0
        %2596 = vmatprep.subr.mxu0 0.0
        %2597 = vmatpush1.msra.mxu0 0.0
        %2598 = vmatprep.mubr.f32.mxu0 0.0
        %v2599 = vand.u32 %v2157, 4294901760
        %2600 = vmatmul.mubr.f32.gmra.mrb[0].mxu0 %v2599
        %v2601 = vpop.f32.mrb[0].mxu0
        %v2602 = vadd.f32 %v2530, %v2601
        %v2603 = vpop.f32.mrb[0].mxu0
        %2604 = vdwg.mxu0
        %v2605 = vmul.f32 %v1510, %v2602
        %v2606 = vld [vmem:[%s4] sm:$0x1]
        %v2608 = vlaneseq
        %v2609 = vshrl.u32 %v2608, 7
        %v2610 = vsub.s32 0, %v2609
        %v2611 = vrot.slane %v2606, %v2610
        %v2613 = vmul.f32 %v2605, %v2611
        %v2614 = vld [vmem:[%s6] sm:$0x1]
        %v2616 = vlaneseq
        %v2617 = vshrl.u32 %v2616, 7
        %v2618 = vsub.s32 0, %v2617
        %v2619 = vrot.slane %v2614, %v2618
        %v2621 = vadd.f32 %v2613, %v2619
        %2622 = vst [vmem:[%s368] sm:$0xff] %v2621
        %v2623 = vld [vmem:[%s389] sm:$0xff]
        %v2624 = vld [vmem:[%s2] sm:$0xff]
        %v2625 = vld [vmem:[%s2 + $0x8] sm:$0xff]
        %v2626 = vld [vmem:[%s2 + $0x10] sm:$0xff]
        %v2627 = vld [vmem:[%s2 + $0x18] sm:$0xff]
        %v2628 = vld [vmem:[%s2 + $0x20] sm:$0xff]
        %v2629 = vld [vmem:[%s2 + $0x28] sm:$0xff]
        %v2630 = vld [vmem:[%s2 + $0x30] sm:$0xff]
        %v2631 = vld [vmem:[%s2 + $0x38] sm:$0xff]
        %v2632 = vld [vmem:[%s2 + $0x40] sm:$0xff]
        %v2633 = vld [vmem:[%s2 + $0x48] sm:$0xff]
        %v2634 = vld [vmem:[%s2 + $0x50] sm:$0xff]
        %v2635 = vld [vmem:[%s2 + $0x58] sm:$0xff]
        %v2636 = vld [vmem:[%s2 + $0x60] sm:$0xff]
        %v2637 = vld [vmem:[%s2 + $0x68] sm:$0xff]
        %v2638 = vld [vmem:[%s2 + $0x70] sm:$0xff]
        %v2639 = vld [vmem:[%s2 + $0x78] sm:$0xff]
        %v2640 = vld [vmem:[%s3] sm:$0xf]
        %2641 = vmatprep.subr.mxu0 0.0
        %v2642 = vand.u32 %v2624, 4294901760
        %2643 = vmatpush1.msra.mxu0 %v2642
        %2644 = vmatprep.subr.mxu0 0.0
        %v2645 = vand.u32 %v2625, 4294901760
        %2646 = vmatpush1.msra.mxu0 %v2645
        %2647 = vmatprep.subr.mxu0 0.0
        %v2648 = vand.u32 %v2626, 4294901760
        %2649 = vmatpush1.msra.mxu0 %v2648
        %2650 = vmatprep.subr.mxu0 0.0
        %v2651 = vand.u32 %v2627, 4294901760
        %2652 = vmatpush1.msra.mxu0 %v2651
        %2653 = vmatprep.subr.mxu0 0.0
        %v2654 = vand.u32 %v2628, 4294901760
        %2655 = vmatpush1.msra.mxu0 %v2654
        %2656 = vmatprep.subr.mxu0 0.0
        %v2657 = vand.u32 %v2629, 4294901760
        %2658 = vmatpush1.msra.mxu0 %v2657
        %2659 = vmatprep.subr.mxu0 0.0
        %v2660 = vand.u32 %v2630, 4294901760
        %2661 = vmatpush1.msra.mxu0 %v2660
        %2662 = vmatprep.subr.mxu0 0.0
        %v2663 = vand.u32 %v2631, 4294901760
        %2664 = vmatpush1.msra.mxu0 %v2663
        %2665 = vmatprep.subr.mxu0 0.0
        %v2666 = vand.u32 %v2632, 4294901760
        %2667 = vmatpush1.msra.mxu0 %v2666
        %2668 = vmatprep.subr.mxu0 0.0
        %v2669 = vand.u32 %v2633, 4294901760
        %2670 = vmatpush1.msra.mxu0 %v2669
        %2671 = vmatprep.subr.mxu0 0.0
        %v2672 = vand.u32 %v2634, 4294901760
        %2673 = vmatpush1.msra.mxu0 %v2672
        %2674 = vmatprep.subr.mxu0 0.0
        %v2675 = vand.u32 %v2635, 4294901760
        %2676 = vmatpush1.msra.mxu0 %v2675
        %2677 = vmatprep.subr.mxu0 0.0
        %v2678 = vand.u32 %v2636, 4294901760
        %2679 = vmatpush1.msra.mxu0 %v2678
        %2680 = vmatprep.subr.mxu0 0.0
        %v2681 = vand.u32 %v2637, 4294901760
        %2682 = vmatpush1.msra.mxu0 %v2681
        %2683 = vmatprep.subr.mxu0 0.0
        %v2684 = vand.u32 %v2638, 4294901760
        %2685 = vmatpush1.msra.mxu0 %v2684
        %2686 = vmatprep.subr.mxu0 0.0
        %v2687 = vand.u32 %v2639, 4294901760
        %2688 = vmatpush1.msra.mxu0 %v2687
        %2689 = vmatprep.subr.mxu0 0.0
        %2690 = vmatpush1.msra.mxu0 0.0
        %2691 = vmatprep.subr.mxu0 0.0
        %2692 = vmatpush1.msra.mxu0 0.0
        %2693 = vmatprep.subr.mxu0 0.0
        %2694 = vmatpush1.msra.mxu0 0.0
        %2695 = vmatprep.subr.mxu0 0.0
        %2696 = vmatpush1.msra.mxu0 0.0
        %2697 = vmatprep.subr.mxu0 0.0
        %2698 = vmatpush1.msra.mxu0 0.0
        %2699 = vmatprep.subr.mxu0 0.0
        %2700 = vmatpush1.msra.mxu0 0.0
        %2701 = vmatprep.subr.mxu0 0.0
        %2702 = vmatpush1.msra.mxu0 0.0
        %2703 = vmatprep.subr.mxu0 0.0
        %2704 = vmatpush1.msra.mxu0 0.0
        %2705 = vmatprep.subr.mxu0 0.0
        %2706 = vmatpush1.msra.mxu0 0.0
        %2707 = vmatprep.subr.mxu0 0.0
        %2708 = vmatpush1.msra.mxu0 0.0
        %2709 = vmatprep.subr.mxu0 0.0
        %2710 = vmatpush1.msra.mxu0 0.0
        %2711 = vmatprep.subr.mxu0 0.0
        %2712 = vmatpush1.msra.mxu0 0.0
        %2713 = vmatprep.subr.mxu0 0.0
        %2714 = vmatpush1.msra.mxu0 0.0
        %2715 = vmatprep.subr.mxu0 0.0
        %2716 = vmatpush1.msra.mxu0 0.0
        %2717 = vmatprep.subr.mxu0 0.0
        %2718 = vmatpush1.msra.mxu0 0.0
        %2719 = vmatprep.subr.mxu0 0.0
        %2720 = vmatpush1.msra.mxu0 0.0
        %2721 = vmatprep.mubr.f32.mxu0 0.0
        %v2722 = vand.u32 %v2623, 4294901760
        %v2723 = vsub.f32 %v2623, %v2722
        %v2724 = vand.u32 %v2723, 4294901760
        %v2725 = vsub.f32 %v2723, %v2724
        %v2726 = vand.u32 %v2725, 4294901760
        %2727 = vmatmul.mubr.f32.gmra.mrb[0].mxu0 %v2726
        %v2728 = vpop.f32.mrb[0].mxu0
        %v2729 = vadd.f32 0.0, %v2728
        %v2730 = vpop.f32.mrb[0].mxu0
        %2731 = vdwg.mxu0
        %2732 = vmatprep.subr.mxu0 0.0
        %v2733 = vand.u32 %v2624, 4294901760
        %v2734 = vsub.f32 %v2624, %v2733
        %v2735 = vand.u32 %v2734, 4294901760
        %v2736 = vsub.f32 %v2734, %v2735
        %v2737 = vand.u32 %v2736, 4294901760
        %2738 = vmatpush1.msra.mxu0 %v2737
        %2739 = vmatprep.subr.mxu0 0.0
        %v2740 = vand.u32 %v2625, 4294901760
        %v2741 = vsub.f32 %v2625, %v2740
        %v2742 = vand.u32 %v2741, 4294901760
        %v2743 = vsub.f32 %v2741, %v2742
        %v2744 = vand.u32 %v2743, 4294901760
        %2745 = vmatpush1.msra.mxu0 %v2744
        %2746 = vmatprep.subr.mxu0 0.0
        %v2747 = vand.u32 %v2626, 4294901760
        %v2748 = vsub.f32 %v2626, %v2747
        %v2749 = vand.u32 %v2748, 4294901760
        %v2750 = vsub.f32 %v2748, %v2749
        %v2751 = vand.u32 %v2750, 4294901760
        %2752 = vmatpush1.msra.mxu0 %v2751
        %2753 = vmatprep.subr.mxu0 0.0
        %v2754 = vand.u32 %v2627, 4294901760
        %v2755 = vsub.f32 %v2627, %v2754
        %v2756 = vand.u32 %v2755, 4294901760
        %v2757 = vsub.f32 %v2755, %v2756
        %v2758 = vand.u32 %v2757, 4294901760
        %2759 = vmatpush1.msra.mxu0 %v2758
        %2760 = vmatprep.subr.mxu0 0.0
        %v2761 = vand.u32 %v2628, 4294901760
        %v2762 = vsub.f32 %v2628, %v2761
        %v2763 = vand.u32 %v2762, 4294901760
        %v2764 = vsub.f32 %v2762, %v2763
        %v2765 = vand.u32 %v2764, 4294901760
        %2766 = vmatpush1.msra.mxu0 %v2765
        %2767 = vmatprep.subr.mxu0 0.0
        %v2768 = vand.u32 %v2629, 4294901760
        %v2769 = vsub.f32 %v2629, %v2768
        %v2770 = vand.u32 %v2769, 4294901760
        %v2771 = vsub.f32 %v2769, %v2770
        %v2772 = vand.u32 %v2771, 4294901760
        %2773 = vmatpush1.msra.mxu0 %v2772
        %2774 = vmatprep.subr.mxu0 0.0
        %v2775 = vand.u32 %v2630, 4294901760
        %v2776 = vsub.f32 %v2630, %v2775
        %v2777 = vand.u32 %v2776, 4294901760
        %v2778 = vsub.f32 %v2776, %v2777
        %v2779 = vand.u32 %v2778, 4294901760
        %2780 = vmatpush1.msra.mxu0 %v2779
        %2781 = vmatprep.subr.mxu0 0.0
        %v2782 = vand.u32 %v2631, 4294901760
        %v2783 = vsub.f32 %v2631, %v2782
        %v2784 = vand.u32 %v2783, 4294901760
        %v2785 = vsub.f32 %v2783, %v2784
        %v2786 = vand.u32 %v2785, 4294901760
        %2787 = vmatpush1.msra.mxu0 %v2786
        %2788 = vmatprep.subr.mxu0 0.0
        %v2789 = vand.u32 %v2632, 4294901760
        %v2790 = vsub.f32 %v2632, %v2789
        %v2791 = vand.u32 %v2790, 4294901760
        %v2792 = vsub.f32 %v2790, %v2791
        %v2793 = vand.u32 %v2792, 4294901760
        %2794 = vmatpush1.msra.mxu0 %v2793
        %2795 = vmatprep.subr.mxu0 0.0
        %v2796 = vand.u32 %v2633, 4294901760
        %v2797 = vsub.f32 %v2633, %v2796
        %v2798 = vand.u32 %v2797, 4294901760
        %v2799 = vsub.f32 %v2797, %v2798
        %v2800 = vand.u32 %v2799, 4294901760
        %2801 = vmatpush1.msra.mxu0 %v2800
        %2802 = vmatprep.subr.mxu0 0.0
        %v2803 = vand.u32 %v2634, 4294901760
        %v2804 = vsub.f32 %v2634, %v2803
        %v2805 = vand.u32 %v2804, 4294901760
        %v2806 = vsub.f32 %v2804, %v2805
        %v2807 = vand.u32 %v2806, 4294901760
        %2808 = vmatpush1.msra.mxu0 %v2807
        %2809 = vmatprep.subr.mxu0 0.0
        %v2810 = vand.u32 %v2635, 4294901760
        %v2811 = vsub.f32 %v2635, %v2810
        %v2812 = vand.u32 %v2811, 4294901760
        %v2813 = vsub.f32 %v2811, %v2812
        %v2814 = vand.u32 %v2813, 4294901760
        %2815 = vmatpush1.msra.mxu0 %v2814
        %2816 = vmatprep.subr.mxu0 0.0
        %v2817 = vand.u32 %v2636, 4294901760
        %v2818 = vsub.f32 %v2636, %v2817
        %v2819 = vand.u32 %v2818, 4294901760
        %v2820 = vsub.f32 %v2818, %v2819
        %v2821 = vand.u32 %v2820, 4294901760
        %2822 = vmatpush1.msra.mxu0 %v2821
        %2823 = vmatprep.subr.mxu0 0.0
        %v2824 = vand.u32 %v2637, 4294901760
        %v2825 = vsub.f32 %v2637, %v2824
        %v2826 = vand.u32 %v2825, 4294901760
        %v2827 = vsub.f32 %v2825, %v2826
        %v2828 = vand.u32 %v2827, 4294901760
        %2829 = vmatpush1.msra.mxu0 %v2828
        %2830 = vmatprep.subr.mxu0 0.0
        %v2831 = vand.u32 %v2638, 4294901760
        %v2832 = vsub.f32 %v2638, %v2831
        %v2833 = vand.u32 %v2832, 4294901760
        %v2834 = vsub.f32 %v2832, %v2833
        %v2835 = vand.u32 %v2834, 4294901760
        %2836 = vmatpush1.msra.mxu0 %v2835
        %2837 = vmatprep.subr.mxu0 0.0
        %v2838 = vand.u32 %v2639, 4294901760
        %v2839 = vsub.f32 %v2639, %v2838
        %v2840 = vand.u32 %v2839, 4294901760
        %v2841 = vsub.f32 %v2839, %v2840
        %v2842 = vand.u32 %v2841, 4294901760
        %2843 = vmatpush1.msra.mxu0 %v2842
        %2844 = vmatprep.subr.mxu0 0.0
        %2845 = vmatpush1.msra.mxu0 0.0
        %2846 = vmatprep.subr.mxu0 0.0
        %2847 = vmatpush1.msra.mxu0 0.0
        %2848 = vmatprep.subr.mxu0 0.0
        %2849 = vmatpush1.msra.mxu0 0.0
        %2850 = vmatprep.subr.mxu0 0.0
        %2851 = vmatpush1.msra.mxu0 0.0
        %2852 = vmatprep.subr.mxu0 0.0
        %2853 = vmatpush1.msra.mxu0 0.0
        %2854 = vmatprep.subr.mxu0 0.0
        %2855 = vmatpush1.msra.mxu0 0.0
        %2856 = vmatprep.subr.mxu0 0.0
        %2857 = vmatpush1.msra.mxu0 0.0
        %2858 = vmatprep.subr.mxu0 0.0
        %2859 = vmatpush1.msra.mxu0 0.0
        %2860 = vmatprep.subr.mxu0 0.0
        %2861 = vmatpush1.msra.mxu0 0.0
        %2862 = vmatprep.subr.mxu0 0.0
        %2863 = vmatpush1.msra.mxu0 0.0
        %2864 = vmatprep.subr.mxu0 0.0
        %2865 = vmatpush1.msra.mxu0 0.0
        %2866 = vmatprep.subr.mxu0 0.0
        %2867 = vmatpush1.msra.mxu0 0.0
        %2868 = vmatprep.subr.mxu0 0.0
        %2869 = vmatpush1.msra.mxu0 0.0
        %2870 = vmatprep.subr.mxu0 0.0
        %2871 = vmatpush1.msra.mxu0 0.0
        %2872 = vmatprep.subr.mxu0 0.0
        %2873 = vmatpush1.msra.mxu0 0.0
        %2874 = vmatprep.subr.mxu0 0.0
        %2875 = vmatpush1.msra.mxu0 0.0
        %2876 = vmatprep.mubr.f32.mxu0 0.0
        %v2877 = vand.u32 %v2623, 4294901760
        %2878 = vmatmul.mubr.f32.gmra.mrb[0].mxu0 %v2877
        %v2879 = vpop.f32.mrb[0].mxu0
        %v2880 = vadd.f32 %v2729, %v2879
        %v2881 = vpop.f32.mrb[0].mxu0
        %2882 = vdwg.mxu0
        %2883 = vmatprep.subr.mxu0 0.0
        %v2884 = vand.u32 %v2624, 4294901760
        %v2885 = vsub.f32 %v2624, %v2884
        %2886 = vmatpush1.msra.mxu0 %v2885
        %2887 = vmatprep.subr.mxu0 0.0
        %v2888 = vand.u32 %v2625, 4294901760
        %v2889 = vsub.f32 %v2625, %v2888
        %2890 = vmatpush1.msra.mxu0 %v2889
        %2891 = vmatprep.subr.mxu0 0.0
        %v2892 = vand.u32 %v2626, 4294901760
        %v2893 = vsub.f32 %v2626, %v2892
        %2894 = vmatpush1.msra.mxu0 %v2893
        %2895 = vmatprep.subr.mxu0 0.0
        %v2896 = vand.u32 %v2627, 4294901760
        %v2897 = vsub.f32 %v2627, %v2896
        %2898 = vmatpush1.msra.mxu0 %v2897
        %2899 = vmatprep.subr.mxu0 0.0
        %v2900 = vand.u32 %v2628, 4294901760
        %v2901 = vsub.f32 %v2628, %v2900
        %2902 = vmatpush1.msra.mxu0 %v2901
        %2903 = vmatprep.subr.mxu0 0.0
        %v2904 = vand.u32 %v2629, 4294901760
        %v2905 = vsub.f32 %v2629, %v2904
        %2906 = vmatpush1.msra.mxu0 %v2905
        %2907 = vmatprep.subr.mxu0 0.0
        %v2908 = vand.u32 %v2630, 4294901760
        %v2909 = vsub.f32 %v2630, %v2908
        %2910 = vmatpush1.msra.mxu0 %v2909
        %2911 = vmatprep.subr.mxu0 0.0
        %v2912 = vand.u32 %v2631, 4294901760
        %v2913 = vsub.f32 %v2631, %v2912
        %2914 = vmatpush1.msra.mxu0 %v2913
        %2915 = vmatprep.subr.mxu0 0.0
        %v2916 = vand.u32 %v2632, 4294901760
        %v2917 = vsub.f32 %v2632, %v2916
        %2918 = vmatpush1.msra.mxu0 %v2917
        %2919 = vmatprep.subr.mxu0 0.0
        %v2920 = vand.u32 %v2633, 4294901760
        %v2921 = vsub.f32 %v2633, %v2920
        %2922 = vmatpush1.msra.mxu0 %v2921
        %2923 = vmatprep.subr.mxu0 0.0
        %v2924 = vand.u32 %v2634, 4294901760
        %v2925 = vsub.f32 %v2634, %v2924
        %2926 = vmatpush1.msra.mxu0 %v2925
        %2927 = vmatprep.subr.mxu0 0.0
        %v2928 = vand.u32 %v2635, 4294901760
        %v2929 = vsub.f32 %v2635, %v2928
        %2930 = vmatpush1.msra.mxu0 %v2929
        %2931 = vmatprep.subr.mxu0 0.0
        %v2932 = vand.u32 %v2636, 4294901760
        %v2933 = vsub.f32 %v2636, %v2932
        %2934 = vmatpush1.msra.mxu0 %v2933
        %2935 = vmatprep.subr.mxu0 0.0
        %v2936 = vand.u32 %v2637, 4294901760
        %v2937 = vsub.f32 %v2637, %v2936
        %2938 = vmatpush1.msra.mxu0 %v2937
        %2939 = vmatprep.subr.mxu0 0.0
        %v2940 = vand.u32 %v2638, 4294901760
        %v2941 = vsub.f32 %v2638, %v2940
        %2942 = vmatpush1.msra.mxu0 %v2941
        %2943 = vmatprep.subr.mxu0 0.0
        %v2944 = vand.u32 %v2639, 4294901760
        %v2945 = vsub.f32 %v2639, %v2944
        %2946 = vmatpush1.msra.mxu0 %v2945
        %2947 = vmatprep.subr.mxu0 0.0
        %2948 = vmatpush1.msra.mxu0 0.0
        %2949 = vmatprep.subr.mxu0 0.0
        %2950 = vmatpush1.msra.mxu0 0.0
        %2951 = vmatprep.subr.mxu0 0.0
        %2952 = vmatpush1.msra.mxu0 0.0
        %2953 = vmatprep.subr.mxu0 0.0
        %2954 = vmatpush1.msra.mxu0 0.0
        %2955 = vmatprep.subr.mxu0 0.0
        %2956 = vmatpush1.msra.mxu0 0.0
        %2957 = vmatprep.subr.mxu0 0.0
        %2958 = vmatpush1.msra.mxu0 0.0
        %2959 = vmatprep.subr.mxu0 0.0
        %2960 = vmatpush1.msra.mxu0 0.0
        %2961 = vmatprep.subr.mxu0 0.0
        %2962 = vmatpush1.msra.mxu0 0.0
        %2963 = vmatprep.subr.mxu0 0.0
        %2964 = vmatpush1.msra.mxu0 0.0
        %2965 = vmatprep.subr.mxu0 0.0
        %2966 = vmatpush1.msra.mxu0 0.0
        %2967 = vmatprep.subr.mxu0 0.0
        %2968 = vmatpush1.msra.mxu0 0.0
        %2969 = vmatprep.subr.mxu0 0.0
        %2970 = vmatpush1.msra.mxu0 0.0
        %2971 = vmatprep.subr.mxu0 0.0
        %2972 = vmatpush1.msra.mxu0 0.0
        %2973 = vmatprep.subr.mxu0 0.0
        %2974 = vmatpush1.msra.mxu0 0.0
        %2975 = vmatprep.subr.mxu0 0.0
        %2976 = vmatpush1.msra.mxu0 0.0
        %2977 = vmatprep.subr.mxu0 0.0
        %2978 = vmatpush1.msra.mxu0 0.0
        %2979 = vmatprep.mubr.f32.mxu0 0.0
        %v2980 = vand.u32 %v2623, 4294901760
        %v2981 = vsub.f32 %v2623, %v2980
        %2982 = vmatmul.mubr.f32.gmra.mrb[0].mxu0 %v2981
        %v2983 = vpop.f32.mrb[0].mxu0
        %v2984 = vadd.f32 %v2880, %v2983
        %v2985 = vpop.f32.mrb[0].mxu0
        %2986 = vdwg.mxu0
        %2987 = vmatprep.subr.mxu0 0.0
        %v2988 = vand.u32 %v2624, 4294901760
        %2989 = vmatpush1.msra.mxu0 %v2988
        %2990 = vmatprep.subr.mxu0 0.0
        %v2991 = vand.u32 %v2625, 4294901760
        %2992 = vmatpush1.msra.mxu0 %v2991
        %2993 = vmatprep.subr.mxu0 0.0
        %v2994 = vand.u32 %v2626, 4294901760
        %2995 = vmatpush1.msra.mxu0 %v2994
        %2996 = vmatprep.subr.mxu0 0.0
        %v2997 = vand.u32 %v2627, 4294901760
        %2998 = vmatpush1.msra.mxu0 %v2997
        %2999 = vmatprep.subr.mxu0 0.0
        %v3000 = vand.u32 %v2628, 4294901760
        %3001 = vmatpush1.msra.mxu0 %v3000
        %3002 = vmatprep.subr.mxu0 0.0
        %v3003 = vand.u32 %v2629, 4294901760
        %3004 = vmatpush1.msra.mxu0 %v3003
        %3005 = vmatprep.subr.mxu0 0.0
        %v3006 = vand.u32 %v2630, 4294901760
        %3007 = vmatpush1.msra.mxu0 %v3006
        %3008 = vmatprep.subr.mxu0 0.0
        %v3009 = vand.u32 %v2631, 4294901760
        %3010 = vmatpush1.msra.mxu0 %v3009
        %3011 = vmatprep.subr.mxu0 0.0
        %v3012 = vand.u32 %v2632, 4294901760
        %3013 = vmatpush1.msra.mxu0 %v3012
        %3014 = vmatprep.subr.mxu0 0.0
        %v3015 = vand.u32 %v2633, 4294901760
        %3016 = vmatpush1.msra.mxu0 %v3015
        %3017 = vmatprep.subr.mxu0 0.0
        %v3018 = vand.u32 %v2634, 4294901760
        %3019 = vmatpush1.msra.mxu0 %v3018
        %3020 = vmatprep.subr.mxu0 0.0
        %v3021 = vand.u32 %v2635, 4294901760
        %3022 = vmatpush1.msra.mxu0 %v3021
        %3023 = vmatprep.subr.mxu0 0.0
        %v3024 = vand.u32 %v2636, 4294901760
        %3025 = vmatpush1.msra.mxu0 %v3024
        %3026 = vmatprep.subr.mxu0 0.0
        %v3027 = vand.u32 %v2637, 4294901760
        %3028 = vmatpush1.msra.mxu0 %v3027
        %3029 = vmatprep.subr.mxu0 0.0
        %v3030 = vand.u32 %v2638, 4294901760
        %3031 = vmatpush1.msra.mxu0 %v3030
        %3032 = vmatprep.subr.mxu0 0.0
        %v3033 = vand.u32 %v2639, 4294901760
        %3034 = vmatpush1.msra.mxu0 %v3033
        %3035 = vmatprep.subr.mxu0 0.0
        %3036 = vmatpush1.msra.mxu0 0.0
        %3037 = vmatprep.subr.mxu0 0.0
        %3038 = vmatpush1.msra.mxu0 0.0
        %3039 = vmatprep.subr.mxu0 0.0
        %3040 = vmatpush1.msra.mxu0 0.0
        %3041 = vmatprep.subr.mxu0 0.0
        %3042 = vmatpush1.msra.mxu0 0.0
        %3043 = vmatprep.subr.mxu0 0.0
        %3044 = vmatpush1.msra.mxu0 0.0
        %3045 = vmatprep.subr.mxu0 0.0
        %3046 = vmatpush1.msra.mxu0 0.0
        %3047 = vmatprep.subr.mxu0 0.0
        %3048 = vmatpush1.msra.mxu0 0.0
        %3049 = vmatprep.subr.mxu0 0.0
        %3050 = vmatpush1.msra.mxu0 0.0
        %3051 = vmatprep.subr.mxu0 0.0
        %3052 = vmatpush1.msra.mxu0 0.0
        %3053 = vmatprep.subr.mxu0 0.0
        %3054 = vmatpush1.msra.mxu0 0.0
        %3055 = vmatprep.subr.mxu0 0.0
        %3056 = vmatpush1.msra.mxu0 0.0
        %3057 = vmatprep.subr.mxu0 0.0
        %3058 = vmatpush1.msra.mxu0 0.0
        %3059 = vmatprep.subr.mxu0 0.0
        %3060 = vmatpush1.msra.mxu0 0.0
        %3061 = vmatprep.subr.mxu0 0.0
        %3062 = vmatpush1.msra.mxu0 0.0
        %3063 = vmatprep.subr.mxu0 0.0
        %3064 = vmatpush1.msra.mxu0 0.0
        %3065 = vmatprep.subr.mxu0 0.0
        %3066 = vmatpush1.msra.mxu0 0.0
        %3067 = vmatprep.mubr.f32.mxu0 0.0
        %v3068 = vand.u32 %v2623, 4294901760
        %v3069 = vsub.f32 %v2623, %v3068
        %v3070 = vand.u32 %v3069, 4294901760
        %3071 = vmatmul.mubr.f32.gmra.mrb[0].mxu0 %v3070
        %v3072 = vpop.f32.mrb[0].mxu0
        %v3073 = vadd.f32 %v2984, %v3072
        %v3074 = vpop.f32.mrb[0].mxu0
        %3075 = vdwg.mxu0
        %3076 = vmatprep.subr.mxu0 0.0
        %v3077 = vand.u32 %v2624, 4294901760
        %v3078 = vsub.f32 %v2624, %v3077
        %v3079 = vand.u32 %v3078, 4294901760
        %3080 = vmatpush1.msra.mxu0 %v3079
        %3081 = vmatprep.subr.mxu0 0.0
        %v3082 = vand.u32 %v2625, 4294901760
        %v3083 = vsub.f32 %v2625, %v3082
        %v3084 = vand.u32 %v3083, 4294901760
        %3085 = vmatpush1.msra.mxu0 %v3084
        %3086 = vmatprep.subr.mxu0 0.0
        %v3087 = vand.u32 %v2626, 4294901760
        %v3088 = vsub.f32 %v2626, %v3087
        %v3089 = vand.u32 %v3088, 4294901760
        %3090 = vmatpush1.msra.mxu0 %v3089
        %3091 = vmatprep.subr.mxu0 0.0
        %v3092 = vand.u32 %v2627, 4294901760
        %v3093 = vsub.f32 %v2627, %v3092
        %v3094 = vand.u32 %v3093, 4294901760
        %3095 = vmatpush1.msra.mxu0 %v3094
        %3096 = vmatprep.subr.mxu0 0.0
        %v3097 = vand.u32 %v2628, 4294901760
        %v3098 = vsub.f32 %v2628, %v3097
        %v3099 = vand.u32 %v3098, 4294901760
        %3100 = vmatpush1.msra.mxu0 %v3099
        %3101 = vmatprep.subr.mxu0 0.0
        %v3102 = vand.u32 %v2629, 4294901760
        %v3103 = vsub.f32 %v2629, %v3102
        %v3104 = vand.u32 %v3103, 4294901760
        %3105 = vmatpush1.msra.mxu0 %v3104
        %3106 = vmatprep.subr.mxu0 0.0
        %v3107 = vand.u32 %v2630, 4294901760
        %v3108 = vsub.f32 %v2630, %v3107
        %v3109 = vand.u32 %v3108, 4294901760
        %3110 = vmatpush1.msra.mxu0 %v3109
        %3111 = vmatprep.subr.mxu0 0.0
        %v3112 = vand.u32 %v2631, 4294901760
        %v3113 = vsub.f32 %v2631, %v3112
        %v3114 = vand.u32 %v3113, 4294901760
        %3115 = vmatpush1.msra.mxu0 %v3114
        %3116 = vmatprep.subr.mxu0 0.0
        %v3117 = vand.u32 %v2632, 4294901760
        %v3118 = vsub.f32 %v2632, %v3117
        %v3119 = vand.u32 %v3118, 4294901760
        %3120 = vmatpush1.msra.mxu0 %v3119
        %3121 = vmatprep.subr.mxu0 0.0
        %v3122 = vand.u32 %v2633, 4294901760
        %v3123 = vsub.f32 %v2633, %v3122
        %v3124 = vand.u32 %v3123, 4294901760
        %3125 = vmatpush1.msra.mxu0 %v3124
        %3126 = vmatprep.subr.mxu0 0.0
        %v3127 = vand.u32 %v2634, 4294901760
        %v3128 = vsub.f32 %v2634, %v3127
        %v3129 = vand.u32 %v3128, 4294901760
        %3130 = vmatpush1.msra.mxu0 %v3129
        %3131 = vmatprep.subr.mxu0 0.0
        %v3132 = vand.u32 %v2635, 4294901760
        %v3133 = vsub.f32 %v2635, %v3132
        %v3134 = vand.u32 %v3133, 4294901760
        %3135 = vmatpush1.msra.mxu0 %v3134
        %3136 = vmatprep.subr.mxu0 0.0
        %v3137 = vand.u32 %v2636, 4294901760
        %v3138 = vsub.f32 %v2636, %v3137
        %v3139 = vand.u32 %v3138, 4294901760
        %3140 = vmatpush1.msra.mxu0 %v3139
        %3141 = vmatprep.subr.mxu0 0.0
        %v3142 = vand.u32 %v2637, 4294901760
        %v3143 = vsub.f32 %v2637, %v3142
        %v3144 = vand.u32 %v3143, 4294901760
        %3145 = vmatpush1.msra.mxu0 %v3144
        %3146 = vmatprep.subr.mxu0 0.0
        %v3147 = vand.u32 %v2638, 4294901760
        %v3148 = vsub.f32 %v2638, %v3147
        %v3149 = vand.u32 %v3148, 4294901760
        %3150 = vmatpush1.msra.mxu0 %v3149
        %3151 = vmatprep.subr.mxu0 0.0
        %v3152 = vand.u32 %v2639, 4294901760
        %v3153 = vsub.f32 %v2639, %v3152
        %v3154 = vand.u32 %v3153, 4294901760
        %3155 = vmatpush1.msra.mxu0 %v3154
        %3156 = vmatprep.subr.mxu0 0.0
        %3157 = vmatpush1.msra.mxu0 0.0
        %3158 = vmatprep.subr.mxu0 0.0
        %3159 = vmatpush1.msra.mxu0 0.0
        %3160 = vmatprep.subr.mxu0 0.0
        %3161 = vmatpush1.msra.mxu0 0.0
        %3162 = vmatprep.subr.mxu0 0.0
        %3163 = vmatpush1.msra.mxu0 0.0
        %3164 = vmatprep.subr.mxu0 0.0
        %3165 = vmatpush1.msra.mxu0 0.0
        %3166 = vmatprep.subr.mxu0 0.0
        %3167 = vmatpush1.msra.mxu0 0.0
        %3168 = vmatprep.subr.mxu0 0.0
        %3169 = vmatpush1.msra.mxu0 0.0
        %3170 = vmatprep.subr.mxu0 0.0
        %3171 = vmatpush1.msra.mxu0 0.0
        %3172 = vmatprep.subr.mxu0 0.0
        %3173 = vmatpush1.msra.mxu0 0.0
        %3174 = vmatprep.subr.mxu0 0.0
        %3175 = vmatpush1.msra.mxu0 0.0
        %3176 = vmatprep.subr.mxu0 0.0
        %3177 = vmatpush1.msra.mxu0 0.0
        %3178 = vmatprep.subr.mxu0 0.0
        %3179 = vmatpush1.msra.mxu0 0.0
        %3180 = vmatprep.subr.mxu0 0.0
        %3181 = vmatpush1.msra.mxu0 0.0
        %3182 = vmatprep.subr.mxu0 0.0
        %3183 = vmatpush1.msra.mxu0 0.0
        %3184 = vmatprep.subr.mxu0 0.0
        %3185 = vmatpush1.msra.mxu0 0.0
        %3186 = vmatprep.subr.mxu0 0.0
        %3187 = vmatpush1.msra.mxu0 0.0
        %3188 = vmatprep.mubr.f32.mxu0 0.0
        %v3189 = vand.u32 %v2623, 4294901760
        %3190 = vmatmul.mubr.f32.gmra.mrb[0].mxu0 %v3189
        %v3191 = vpop.f32.mrb[0].mxu0
        %v3192 = vadd.f32 %v3073, %v3191
        %v3193 = vpop.f32.mrb[0].mxu0
        %3194 = vdwg.mxu0
        %3195 = vmatprep.subr.mxu0 0.0
        %v3196 = vand.u32 %v2624, 4294901760
        %3197 = vmatpush1.msra.mxu0 %v3196
        %3198 = vmatprep.subr.mxu0 0.0
        %v3199 = vand.u32 %v2625, 4294901760
        %3200 = vmatpush1.msra.mxu0 %v3199
        %3201 = vmatprep.subr.mxu0 0.0
        %v3202 = vand.u32 %v2626, 4294901760
        %3203 = vmatpush1.msra.mxu0 %v3202
        %3204 = vmatprep.subr.mxu0 0.0
        %v3205 = vand.u32 %v2627, 4294901760
        %3206 = vmatpush1.msra.mxu0 %v3205
        %3207 = vmatprep.subr.mxu0 0.0
        %v3208 = vand.u32 %v2628, 4294901760
        %3209 = vmatpush1.msra.mxu0 %v3208
        %3210 = vmatprep.subr.mxu0 0.0
        %v3211 = vand.u32 %v2629, 4294901760
        %3212 = vmatpush1.msra.mxu0 %v3211
        %3213 = vmatprep.subr.mxu0 0.0
        %v3214 = vand.u32 %v2630, 4294901760
        %3215 = vmatpush1.msra.mxu0 %v3214
        %3216 = vmatprep.subr.mxu0 0.0
        %v3217 = vand.u32 %v2631, 4294901760
        %3218 = vmatpush1.msra.mxu0 %v3217
        %3219 = vmatprep.subr.mxu0 0.0
        %v3220 = vand.u32 %v2632, 4294901760
        %3221 = vmatpush1.msra.mxu0 %v3220
        %3222 = vmatprep.subr.mxu0 0.0
        %v3223 = vand.u32 %v2633, 4294901760
        %3224 = vmatpush1.msra.mxu0 %v3223
        %3225 = vmatprep.subr.mxu0 0.0
        %v3226 = vand.u32 %v2634, 4294901760
        %3227 = vmatpush1.msra.mxu0 %v3226
        %3228 = vmatprep.subr.mxu0 0.0
        %v3229 = vand.u32 %v2635, 4294901760
        %3230 = vmatpush1.msra.mxu0 %v3229
        %3231 = vmatprep.subr.mxu0 0.0
        %v3232 = vand.u32 %v2636, 4294901760
        %3233 = vmatpush1.msra.mxu0 %v3232
        %3234 = vmatprep.subr.mxu0 0.0
        %v3235 = vand.u32 %v2637, 4294901760
        %3236 = vmatpush1.msra.mxu0 %v3235
        %3237 = vmatprep.subr.mxu0 0.0
        %v3238 = vand.u32 %v2638, 4294901760
        %3239 = vmatpush1.msra.mxu0 %v3238
        %3240 = vmatprep.subr.mxu0 0.0
        %v3241 = vand.u32 %v2639, 4294901760
        %3242 = vmatpush1.msra.mxu0 %v3241
        %3243 = vmatprep.subr.mxu0 0.0
        %3244 = vmatpush1.msra.mxu0 0.0
        %3245 = vmatprep.subr.mxu0 0.0
        %3246 = vmatpush1.msra.mxu0 0.0
        %3247 = vmatprep.subr.mxu0 0.0
        %3248 = vmatpush1.msra.mxu0 0.0
        %3249 = vmatprep.subr.mxu0 0.0
        %3250 = vmatpush1.msra.mxu0 0.0
        %3251 = vmatprep.subr.mxu0 0.0
        %3252 = vmatpush1.msra.mxu0 0.0
        %3253 = vmatprep.subr.mxu0 0.0
        %3254 = vmatpush1.msra.mxu0 0.0
        %3255 = vmatprep.subr.mxu0 0.0
        %3256 = vmatpush1.msra.mxu0 0.0
        %3257 = vmatprep.subr.mxu0 0.0
        %3258 = vmatpush1.msra.mxu0 0.0
        %3259 = vmatprep.subr.mxu0 0.0
        %3260 = vmatpush1.msra.mxu0 0.0
        %3261 = vmatprep.subr.mxu0 0.0
        %3262 = vmatpush1.msra.mxu0 0.0
        %3263 = vmatprep.subr.mxu0 0.0
        %3264 = vmatpush1.msra.mxu0 0.0
        %3265 = vmatprep.subr.mxu0 0.0
        %3266 = vmatpush1.msra.mxu0 0.0
        %3267 = vmatprep.subr.mxu0 0.0
        %3268 = vmatpush1.msra.mxu0 0.0
        %3269 = vmatprep.subr.mxu0 0.0
        %3270 = vmatpush1.msra.mxu0 0.0
        %3271 = vmatprep.subr.mxu0 0.0
        %3272 = vmatpush1.msra.mxu0 0.0
        %3273 = vmatprep.subr.mxu0 0.0
        %3274 = vmatpush1.msra.mxu0 0.0
        %3275 = vmatprep.mubr.f32.mxu0 0.0
        %v3276 = vand.u32 %v2623, 4294901760
        %3277 = vmatmul.mubr.f32.gmra.mrb[0].mxu0 %v3276
        %v3278 = vpop.f32.mrb[0].mxu0
        %v3279 = vadd.f32 %v3192, %v3278
        %v3280 = vpop.f32.mrb[0].mxu0
        %3281 = vdwg.mxu0
        %v3282 = vmul.f32 %v3279, 0.03125
        %v3284 = vsel %vm1056, %v3282, 0
        %v3287 = vsel %vm1060, %v2640, 0
        %3289 = vmatprep.subr.mxu0 0.0
        %v3290 = vand.u32 %v3287, 4294901760
        %3291 = vmatpush1.msra.mxu0 %v3290
        %3292 = vmatprep.subr.mxu0 0.0
        %3293 = vmatpush1.msra.mxu0 0.0
        %3294 = vmatprep.subr.mxu0 0.0
        %3295 = vmatpush1.msra.mxu0 0.0
        %3296 = vmatprep.subr.mxu0 0.0
        %3297 = vmatpush1.msra.mxu0 0.0
        %3298 = vmatprep.subr.mxu0 0.0
        %3299 = vmatpush1.msra.mxu0 0.0
        %3300 = vmatprep.subr.mxu0 0.0
        %3301 = vmatpush1.msra.mxu0 0.0
        %3302 = vmatprep.subr.mxu0 0.0
        %3303 = vmatpush1.msra.mxu0 0.0
        %3304 = vmatprep.subr.mxu0 0.0
        %3305 = vmatpush1.msra.mxu0 0.0
        %3306 = vmatprep.subr.mxu0 0.0
        %3307 = vmatpush1.msra.mxu0 0.0
        %3308 = vmatprep.subr.mxu0 0.0
        %3309 = vmatpush1.msra.mxu0 0.0
        %3310 = vmatprep.subr.mxu0 0.0
        %3311 = vmatpush1.msra.mxu0 0.0
        %3312 = vmatprep.subr.mxu0 0.0
        %3313 = vmatpush1.msra.mxu0 0.0
        %3314 = vmatprep.subr.mxu0 0.0
        %3315 = vmatpush1.msra.mxu0 0.0
        %3316 = vmatprep.subr.mxu0 0.0
        %3317 = vmatpush1.msra.mxu0 0.0
        %3318 = vmatprep.subr.mxu0 0.0
        %3319 = vmatpush1.msra.mxu0 0.0
        %3320 = vmatprep.subr.mxu0 0.0
        %3321 = vmatpush1.msra.mxu0 0.0
        %3322 = vmatprep.subr.mxu0 0.0
        %3323 = vmatpush1.msra.mxu0 0.0
        %3324 = vmatprep.subr.mxu0 0.0
        %3325 = vmatpush1.msra.mxu0 0.0
        %3326 = vmatprep.subr.mxu0 0.0
        %3327 = vmatpush1.msra.mxu0 0.0
        %3328 = vmatprep.subr.mxu0 0.0
        %3329 = vmatpush1.msra.mxu0 0.0
        %3330 = vmatprep.subr.mxu0 0.0
        %3331 = vmatpush1.msra.mxu0 0.0
        %3332 = vmatprep.subr.mxu0 0.0
        %3333 = vmatpush1.msra.mxu0 0.0
        %3334 = vmatprep.subr.mxu0 0.0
        %3335 = vmatpush1.msra.mxu0 0.0
        %3336 = vmatprep.subr.mxu0 0.0
        %3337 = vmatpush1.msra.mxu0 0.0
        %3338 = vmatprep.subr.mxu0 0.0
        %3339 = vmatpush1.msra.mxu0 0.0
        %3340 = vmatprep.subr.mxu0 0.0
        %3341 = vmatpush1.msra.mxu0 0.0
        %3342 = vmatprep.subr.mxu0 0.0
        %3343 = vmatpush1.msra.mxu0 0.0
        %3344 = vmatprep.subr.mxu0 0.0
        %3345 = vmatpush1.msra.mxu0 0.0
        %3346 = vmatprep.subr.mxu0 0.0
        %3347 = vmatpush1.msra.mxu0 0.0
        %3348 = vmatprep.subr.mxu0 0.0
        %3349 = vmatpush1.msra.mxu0 0.0
        %3350 = vmatprep.subr.mxu0 0.0
        %3351 = vmatpush1.msra.mxu0 0.0
        %3352 = vmatprep.subr.mxu0 0.0
        %3353 = vmatpush1.msra.mxu0 0.0
        %3354 = vmatprep.mubr.f32.mxu0 0.0
        %v3355 = vand.u32 %v3284, 4294901760
        %v3356 = vsub.f32 %v3284, %v3355
        %v3357 = vand.u32 %v3356, 4294901760
        %v3358 = vsub.f32 %v3356, %v3357
        %v3359 = vand.u32 %v3358, 4294901760
        %3360 = vmatmul.mubr.f32.gmra.mrb[0].mxu0 %v3359
        %v3361 = vpop.f32.mrb[0].mxu0
        %v3362 = vadd.f32 0.0, %v3361
        %v3363 = vpop.f32.mrb[0].mxu0
        %3364 = vdwg.mxu0
        %3365 = vmatprep.subr.mxu0 0.0
        %v3366 = vand.u32 %v3287, 4294901760
        %v3367 = vsub.f32 %v3287, %v3366
        %v3368 = vand.u32 %v3367, 4294901760
        %v3369 = vsub.f32 %v3367, %v3368
        %v3370 = vand.u32 %v3369, 4294901760
        %3371 = vmatpush1.msra.mxu0 %v3370
        %3372 = vmatprep.subr.mxu0 0.0
        %3373 = vmatpush1.msra.mxu0 0.0
        %3374 = vmatprep.subr.mxu0 0.0
        %3375 = vmatpush1.msra.mxu0 0.0
        %3376 = vmatprep.subr.mxu0 0.0
        %3377 = vmatpush1.msra.mxu0 0.0
        %3378 = vmatprep.subr.mxu0 0.0
        %3379 = vmatpush1.msra.mxu0 0.0
        %3380 = vmatprep.subr.mxu0 0.0
        %3381 = vmatpush1.msra.mxu0 0.0
        %3382 = vmatprep.subr.mxu0 0.0
        %3383 = vmatpush1.msra.mxu0 0.0
        %3384 = vmatprep.subr.mxu0 0.0
        %3385 = vmatpush1.msra.mxu0 0.0
        %3386 = vmatprep.subr.mxu0 0.0
        %3387 = vmatpush1.msra.mxu0 0.0
        %3388 = vmatprep.subr.mxu0 0.0
        %3389 = vmatpush1.msra.mxu0 0.0
        %3390 = vmatprep.subr.mxu0 0.0
        %3391 = vmatpush1.msra.mxu0 0.0
        %3392 = vmatprep.subr.mxu0 0.0
        %3393 = vmatpush1.msra.mxu0 0.0
        %3394 = vmatprep.subr.mxu0 0.0
        %3395 = vmatpush1.msra.mxu0 0.0
        %3396 = vmatprep.subr.mxu0 0.0
        %3397 = vmatpush1.msra.mxu0 0.0
        %3398 = vmatprep.subr.mxu0 0.0
        %3399 = vmatpush1.msra.mxu0 0.0
        %3400 = vmatprep.subr.mxu0 0.0
        %3401 = vmatpush1.msra.mxu0 0.0
        %3402 = vmatprep.subr.mxu0 0.0
        %3403 = vmatpush1.msra.mxu0 0.0
        %3404 = vmatprep.subr.mxu0 0.0
        %3405 = vmatpush1.msra.mxu0 0.0
        %3406 = vmatprep.subr.mxu0 0.0
        %3407 = vmatpush1.msra.mxu0 0.0
        %3408 = vmatprep.subr.mxu0 0.0
        %3409 = vmatpush1.msra.mxu0 0.0
        %3410 = vmatprep.subr.mxu0 0.0
        %3411 = vmatpush1.msra.mxu0 0.0
        %3412 = vmatprep.subr.mxu0 0.0
        %3413 = vmatpush1.msra.mxu0 0.0
        %3414 = vmatprep.subr.mxu0 0.0
        %3415 = vmatpush1.msra.mxu0 0.0
        %3416 = vmatprep.subr.mxu0 0.0
        %3417 = vmatpush1.msra.mxu0 0.0
        %3418 = vmatprep.subr.mxu0 0.0
        %3419 = vmatpush1.msra.mxu0 0.0
        %3420 = vmatprep.subr.mxu0 0.0
        %3421 = vmatpush1.msra.mxu0 0.0
        %3422 = vmatprep.subr.mxu0 0.0
        %3423 = vmatpush1.msra.mxu0 0.0
        %3424 = vmatprep.subr.mxu0 0.0
        %3425 = vmatpush1.msra.mxu0 0.0
        %3426 = vmatprep.subr.mxu0 0.0
        %3427 = vmatpush1.msra.mxu0 0.0
        %3428 = vmatprep.subr.mxu0 0.0
        %3429 = vmatpush1.msra.mxu0 0.0
        %3430 = vmatprep.subr.mxu0 0.0
        %3431 = vmatpush1.msra.mxu0 0.0
        %3432 = vmatprep.subr.mxu0 0.0
        %3433 = vmatpush1.msra.mxu0 0.0
        %3434 = vmatprep.mubr.f32.mxu0 0.0
        %v3435 = vand.u32 %v3284, 4294901760
        %3436 = vmatmul.mubr.f32.gmra.mrb[0].mxu0 %v3435
        %v3437 = vpop.f32.mrb[0].mxu0
        %v3438 = vadd.f32 %v3362, %v3437
        %v3439 = vpop.f32.mrb[0].mxu0
        %3440 = vdwg.mxu0
        %3441 = vmatprep.subr.mxu0 0.0
        %v3442 = vand.u32 %v3287, 4294901760
        %v3443 = vsub.f32 %v3287, %v3442
        %3444 = vmatpush1.msra.mxu0 %v3443
        %3445 = vmatprep.subr.mxu0 0.0
        %3446 = vmatpush1.msra.mxu0 0.0
        %3447 = vmatprep.subr.mxu0 0.0
        %3448 = vmatpush1.msra.mxu0 0.0
        %3449 = vmatprep.subr.mxu0 0.0
        %3450 = vmatpush1.msra.mxu0 0.0
        %3451 = vmatprep.subr.mxu0 0.0
        %3452 = vmatpush1.msra.mxu0 0.0
        %3453 = vmatprep.subr.mxu0 0.0
        %3454 = vmatpush1.msra.mxu0 0.0
        %3455 = vmatprep.subr.mxu0 0.0
        %3456 = vmatpush1.msra.mxu0 0.0
        %3457 = vmatprep.subr.mxu0 0.0
        %3458 = vmatpush1.msra.mxu0 0.0
        %3459 = vmatprep.subr.mxu0 0.0
        %3460 = vmatpush1.msra.mxu0 0.0
        %3461 = vmatprep.subr.mxu0 0.0
        %3462 = vmatpush1.msra.mxu0 0.0
        %3463 = vmatprep.subr.mxu0 0.0
        %3464 = vmatpush1.msra.mxu0 0.0
        %3465 = vmatprep.subr.mxu0 0.0
        %3466 = vmatpush1.msra.mxu0 0.0
        %3467 = vmatprep.subr.mxu0 0.0
        %3468 = vmatpush1.msra.mxu0 0.0
        %3469 = vmatprep.subr.mxu0 0.0
        %3470 = vmatpush1.msra.mxu0 0.0
        %3471 = vmatprep.subr.mxu0 0.0
        %3472 = vmatpush1.msra.mxu0 0.0
        %3473 = vmatprep.subr.mxu0 0.0
        %3474 = vmatpush1.msra.mxu0 0.0
        %3475 = vmatprep.subr.mxu0 0.0
        %3476 = vmatpush1.msra.mxu0 0.0
        %3477 = vmatprep.subr.mxu0 0.0
        %3478 = vmatpush1.msra.mxu0 0.0
        %3479 = vmatprep.subr.mxu0 0.0
        %3480 = vmatpush1.msra.mxu0 0.0
        %3481 = vmatprep.subr.mxu0 0.0
        %3482 = vmatpush1.msra.mxu0 0.0
        %3483 = vmatprep.subr.mxu0 0.0
        %3484 = vmatpush1.msra.mxu0 0.0
        %3485 = vmatprep.subr.mxu0 0.0
        %3486 = vmatpush1.msra.mxu0 0.0
        %3487 = vmatprep.subr.mxu0 0.0
        %3488 = vmatpush1.msra.mxu0 0.0
        %3489 = vmatprep.subr.mxu0 0.0
        %3490 = vmatpush1.msra.mxu0 0.0
        %3491 = vmatprep.subr.mxu0 0.0
        %3492 = vmatpush1.msra.mxu0 0.0
        %3493 = vmatprep.subr.mxu0 0.0
        %3494 = vmatpush1.msra.mxu0 0.0
        %3495 = vmatprep.subr.mxu0 0.0
        %3496 = vmatpush1.msra.mxu0 0.0
        %3497 = vmatprep.subr.mxu0 0.0
        %3498 = vmatpush1.msra.mxu0 0.0
        %3499 = vmatprep.subr.mxu0 0.0
        %3500 = vmatpush1.msra.mxu0 0.0
        %3501 = vmatprep.subr.mxu0 0.0
        %3502 = vmatpush1.msra.mxu0 0.0
        %3503 = vmatprep.subr.mxu0 0.0
        %3504 = vmatpush1.msra.mxu0 0.0
        %3505 = vmatprep.subr.mxu0 0.0
        %3506 = vmatpush1.msra.mxu0 0.0
        %3507 = vmatprep.mubr.f32.mxu0 0.0
        %v3508 = vand.u32 %v3284, 4294901760
        %v3509 = vsub.f32 %v3284, %v3508
        %3510 = vmatmul.mubr.f32.gmra.mrb[0].mxu0 %v3509
        %v3511 = vpop.f32.mrb[0].mxu0
        %v3512 = vadd.f32 %v3438, %v3511
        %v3513 = vpop.f32.mrb[0].mxu0
        %3514 = vdwg.mxu0
        %3515 = vmatprep.subr.mxu0 0.0
        %v3516 = vand.u32 %v3287, 4294901760
        %3517 = vmatpush1.msra.mxu0 %v3516
        %3518 = vmatprep.subr.mxu0 0.0
        %3519 = vmatpush1.msra.mxu0 0.0
        %3520 = vmatprep.subr.mxu0 0.0
        %3521 = vmatpush1.msra.mxu0 0.0
        %3522 = vmatprep.subr.mxu0 0.0
        %3523 = vmatpush1.msra.mxu0 0.0
        %3524 = vmatprep.subr.mxu0 0.0
        %3525 = vmatpush1.msra.mxu0 0.0
        %3526 = vmatprep.subr.mxu0 0.0
        %3527 = vmatpush1.msra.mxu0 0.0
        %3528 = vmatprep.subr.mxu0 0.0
        %3529 = vmatpush1.msra.mxu0 0.0
        %3530 = vmatprep.subr.mxu0 0.0
        %3531 = vmatpush1.msra.mxu0 0.0
        %3532 = vmatprep.subr.mxu0 0.0
        %3533 = vmatpush1.msra.mxu0 0.0
        %3534 = vmatprep.subr.mxu0 0.0
        %3535 = vmatpush1.msra.mxu0 0.0
        %3536 = vmatprep.subr.mxu0 0.0
        %3537 = vmatpush1.msra.mxu0 0.0
        %3538 = vmatprep.subr.mxu0 0.0
        %3539 = vmatpush1.msra.mxu0 0.0
        %3540 = vmatprep.subr.mxu0 0.0
        %3541 = vmatpush1.msra.mxu0 0.0
        %3542 = vmatprep.subr.mxu0 0.0
        %3543 = vmatpush1.msra.mxu0 0.0
        %3544 = vmatprep.subr.mxu0 0.0
        %3545 = vmatpush1.msra.mxu0 0.0
        %3546 = vmatprep.subr.mxu0 0.0
        %3547 = vmatpush1.msra.mxu0 0.0
        %3548 = vmatprep.subr.mxu0 0.0
        %3549 = vmatpush1.msra.mxu0 0.0
        %3550 = vmatprep.subr.mxu0 0.0
        %3551 = vmatpush1.msra.mxu0 0.0
        %3552 = vmatprep.subr.mxu0 0.0
        %3553 = vmatpush1.msra.mxu0 0.0
        %3554 = vmatprep.subr.mxu0 0.0
        %3555 = vmatpush1.msra.mxu0 0.0
        %3556 = vmatprep.subr.mxu0 0.0
        %3557 = vmatpush1.msra.mxu0 0.0
        %3558 = vmatprep.subr.mxu0 0.0
        %3559 = vmatpush1.msra.mxu0 0.0
        %3560 = vmatprep.subr.mxu0 0.0
        %3561 = vmatpush1.msra.mxu0 0.0
        %3562 = vmatprep.subr.mxu0 0.0
        %3563 = vmatpush1.msra.mxu0 0.0
        %3564 = vmatprep.subr.mxu0 0.0
        %3565 = vmatpush1.msra.mxu0 0.0
        %3566 = vmatprep.subr.mxu0 0.0
        %3567 = vmatpush1.msra.mxu0 0.0
        %3568 = vmatprep.subr.mxu0 0.0
        %3569 = vmatpush1.msra.mxu0 0.0
        %3570 = vmatprep.subr.mxu0 0.0
        %3571 = vmatpush1.msra.mxu0 0.0
        %3572 = vmatprep.subr.mxu0 0.0
        %3573 = vmatpush1.msra.mxu0 0.0
        %3574 = vmatprep.subr.mxu0 0.0
        %3575 = vmatpush1.msra.mxu0 0.0
        %3576 = vmatprep.subr.mxu0 0.0
        %3577 = vmatpush1.msra.mxu0 0.0
        %3578 = vmatprep.subr.mxu0 0.0
        %3579 = vmatpush1.msra.mxu0 0.0
        %3580 = vmatprep.mubr.f32.mxu0 0.0
        %v3581 = vand.u32 %v3284, 4294901760
        %v3582 = vsub.f32 %v3284, %v3581
        %v3583 = vand.u32 %v3582, 4294901760
        %3584 = vmatmul.mubr.f32.gmra.mrb[0].mxu0 %v3583
        %v3585 = vpop.f32.mrb[0].mxu0
        %v3586 = vadd.f32 %v3512, %v3585
        %v3587 = vpop.f32.mrb[0].mxu0
        %3588 = vdwg.mxu0
        %3589 = vmatprep.subr.mxu0 0.0
        %v3590 = vand.u32 %v3287, 4294901760
        %v3591 = vsub.f32 %v3287, %v3590
        %v3592 = vand.u32 %v3591, 4294901760
        %3593 = vmatpush1.msra.mxu0 %v3592
        %3594 = vmatprep.subr.mxu0 0.0
        %3595 = vmatpush1.msra.mxu0 0.0
        %3596 = vmatprep.subr.mxu0 0.0
        %3597 = vmatpush1.msra.mxu0 0.0
        %3598 = vmatprep.subr.mxu0 0.0
        %3599 = vmatpush1.msra.mxu0 0.0
        %3600 = vmatprep.subr.mxu0 0.0
        %3601 = vmatpush1.msra.mxu0 0.0
        %3602 = vmatprep.subr.mxu0 0.0
        %3603 = vmatpush1.msra.mxu0 0.0
        %3604 = vmatprep.subr.mxu0 0.0
        %3605 = vmatpush1.msra.mxu0 0.0
        %3606 = vmatprep.subr.mxu0 0.0
        %3607 = vmatpush1.msra.mxu0 0.0
        %3608 = vmatprep.subr.mxu0 0.0
        %3609 = vmatpush1.msra.mxu0 0.0
        %3610 = vmatprep.subr.mxu0 0.0
        %3611 = vmatpush1.msra.mxu0 0.0
        %3612 = vmatprep.subr.mxu0 0.0
        %3613 = vmatpush1.msra.mxu0 0.0
        %3614 = vmatprep.subr.mxu0 0.0
        %3615 = vmatpush1.msra.mxu0 0.0
        %3616 = vmatprep.subr.mxu0 0.0
        %3617 = vmatpush1.msra.mxu0 0.0
        %3618 = vmatprep.subr.mxu0 0.0
        %3619 = vmatpush1.msra.mxu0 0.0
        %3620 = vmatprep.subr.mxu0 0.0
        %3621 = vmatpush1.msra.mxu0 0.0
        %3622 = vmatprep.subr.mxu0 0.0
        %3623 = vmatpush1.msra.mxu0 0.0
        %3624 = vmatprep.subr.mxu0 0.0
        %3625 = vmatpush1.msra.mxu0 0.0
        %3626 = vmatprep.subr.mxu0 0.0
        %3627 = vmatpush1.msra.mxu0 0.0
        %3628 = vmatprep.subr.mxu0 0.0
        %3629 = vmatpush1.msra.mxu0 0.0
        %3630 = vmatprep.subr.mxu0 0.0
        %3631 = vmatpush1.msra.mxu0 0.0
        %3632 = vmatprep.subr.mxu0 0.0
        %3633 = vmatpush1.msra.mxu0 0.0
        %3634 = vmatprep.subr.mxu0 0.0
        %3635 = vmatpush1.msra.mxu0 0.0
        %3636 = vmatprep.subr.mxu0 0.0
        %3637 = vmatpush1.msra.mxu0 0.0
        %3638 = vmatprep.subr.mxu0 0.0
        %3639 = vmatpush1.msra.mxu0 0.0
        %3640 = vmatprep.subr.mxu0 0.0
        %3641 = vmatpush1.msra.mxu0 0.0
        %3642 = vmatprep.subr.mxu0 0.0
        %3643 = vmatpush1.msra.mxu0 0.0
        %3644 = vmatprep.subr.mxu0 0.0
        %3645 = vmatpush1.msra.mxu0 0.0
        %3646 = vmatprep.subr.mxu0 0.0
        %3647 = vmatpush1.msra.mxu0 0.0
        %3648 = vmatprep.subr.mxu0 0.0
        %3649 = vmatpush1.msra.mxu0 0.0
        %3650 = vmatprep.subr.mxu0 0.0
        %3651 = vmatpush1.msra.mxu0 0.0
        %3652 = vmatprep.subr.mxu0 0.0
        %3653 = vmatpush1.msra.mxu0 0.0
        %3654 = vmatprep.subr.mxu0 0.0
        %3655 = vmatpush1.msra.mxu0 0.0
        %3656 = vmatprep.mubr.f32.mxu0 0.0
        %v3657 = vand.u32 %v3284, 4294901760
        %3658 = vmatmul.mubr.f32.gmra.mrb[0].mxu0 %v3657
        %v3659 = vpop.f32.mrb[0].mxu0
        %v3660 = vadd.f32 %v3586, %v3659
        %v3661 = vpop.f32.mrb[0].mxu0
        %3662 = vdwg.mxu0
        %3663 = vmatprep.subr.mxu0 0.0
        %v3664 = vand.u32 %v3287, 4294901760
        %3665 = vmatpush1.msra.mxu0 %v3664
        %3666 = vmatprep.subr.mxu0 0.0
        %3667 = vmatpush1.msra.mxu0 0.0
        %3668 = vmatprep.subr.mxu0 0.0
        %3669 = vmatpush1.msra.mxu0 0.0
        %3670 = vmatprep.subr.mxu0 0.0
        %3671 = vmatpush1.msra.mxu0 0.0
        %3672 = vmatprep.subr.mxu0 0.0
        %3673 = vmatpush1.msra.mxu0 0.0
        %3674 = vmatprep.subr.mxu0 0.0
        %3675 = vmatpush1.msra.mxu0 0.0
        %3676 = vmatprep.subr.mxu0 0.0
        %3677 = vmatpush1.msra.mxu0 0.0
        %3678 = vmatprep.subr.mxu0 0.0
        %3679 = vmatpush1.msra.mxu0 0.0
        %3680 = vmatprep.subr.mxu0 0.0
        %3681 = vmatpush1.msra.mxu0 0.0
        %3682 = vmatprep.subr.mxu0 0.0
        %3683 = vmatpush1.msra.mxu0 0.0
        %3684 = vmatprep.subr.mxu0 0.0
        %3685 = vmatpush1.msra.mxu0 0.0
        %3686 = vmatprep.subr.mxu0 0.0
        %3687 = vmatpush1.msra.mxu0 0.0
        %3688 = vmatprep.subr.mxu0 0.0
        %3689 = vmatpush1.msra.mxu0 0.0
        %3690 = vmatprep.subr.mxu0 0.0
        %3691 = vmatpush1.msra.mxu0 0.0
        %3692 = vmatprep.subr.mxu0 0.0
        %3693 = vmatpush1.msra.mxu0 0.0
        %3694 = vmatprep.subr.mxu0 0.0
        %3695 = vmatpush1.msra.mxu0 0.0
        %3696 = vmatprep.subr.mxu0 0.0
        %3697 = vmatpush1.msra.mxu0 0.0
        %3698 = vmatprep.subr.mxu0 0.0
        %3699 = vmatpush1.msra.mxu0 0.0
        %3700 = vmatprep.subr.mxu0 0.0
        %3701 = vmatpush1.msra.mxu0 0.0
        %3702 = vmatprep.subr.mxu0 0.0
        %3703 = vmatpush1.msra.mxu0 0.0
        %3704 = vmatprep.subr.mxu0 0.0
        %3705 = vmatpush1.msra.mxu0 0.0
        %3706 = vmatprep.subr.mxu0 0.0
        %3707 = vmatpush1.msra.mxu0 0.0
        %3708 = vmatprep.subr.mxu0 0.0
        %3709 = vmatpush1.msra.mxu0 0.0
        %3710 = vmatprep.subr.mxu0 0.0
        %3711 = vmatpush1.msra.mxu0 0.0
        %3712 = vmatprep.subr.mxu0 0.0
        %3713 = vmatpush1.msra.mxu0 0.0
        %3714 = vmatprep.subr.mxu0 0.0
        %3715 = vmatpush1.msra.mxu0 0.0
        %3716 = vmatprep.subr.mxu0 0.0
        %3717 = vmatpush1.msra.mxu0 0.0
        %3718 = vmatprep.subr.mxu0 0.0
        %3719 = vmatpush1.msra.mxu0 0.0
        %3720 = vmatprep.subr.mxu0 0.0
        %3721 = vmatpush1.msra.mxu0 0.0
        %3722 = vmatprep.subr.mxu0 0.0
        %3723 = vmatpush1.msra.mxu0 0.0
        %3724 = vmatprep.subr.mxu0 0.0
        %3725 = vmatpush1.msra.mxu0 0.0
        %3726 = vmatprep.subr.mxu0 0.0
        %3727 = vmatpush1.msra.mxu0 0.0
        %3728 = vmatprep.mubr.f32.mxu0 0.0
        %v3729 = vand.u32 %v3284, 4294901760
        %3730 = vmatmul.mubr.f32.gmra.mrb[0].mxu0 %v3729
        %v3731 = vpop.f32.mrb[0].mxu0
        %v3732 = vadd.f32 %v3660, %v3731
        %v3733 = vpop.f32.mrb[0].mxu0
        %3734 = vdwg.mxu0
        %v3735 = vsub.f32 %v2623, %v3732
        %v3736 = vmul.f32 %v3735, %v3735
        %3737 = vmatprep.subr.mxu0 0.0
        %v3738 = vand.u32 %v2624, 4294901760
        %3739 = vmatpush1.msra.mxu0 %v3738
        %3740 = vmatprep.subr.mxu0 0.0
        %v3741 = vand.u32 %v2625, 4294901760
        %3742 = vmatpush1.msra.mxu0 %v3741
        %3743 = vmatprep.subr.mxu0 0.0
        %v3744 = vand.u32 %v2626, 4294901760
        %3745 = vmatpush1.msra.mxu0 %v3744
        %3746 = vmatprep.subr.mxu0 0.0
        %v3747 = vand.u32 %v2627, 4294901760
        %3748 = vmatpush1.msra.mxu0 %v3747
        %3749 = vmatprep.subr.mxu0 0.0
        %v3750 = vand.u32 %v2628, 4294901760
        %3751 = vmatpush1.msra.mxu0 %v3750
        %3752 = vmatprep.subr.mxu0 0.0
        %v3753 = vand.u32 %v2629, 4294901760
        %3754 = vmatpush1.msra.mxu0 %v3753
        %3755 = vmatprep.subr.mxu0 0.0
        %v3756 = vand.u32 %v2630, 4294901760
        %3757 = vmatpush1.msra.mxu0 %v3756
        %3758 = vmatprep.subr.mxu0 0.0
        %v3759 = vand.u32 %v2631, 4294901760
        %3760 = vmatpush1.msra.mxu0 %v3759
        %3761 = vmatprep.subr.mxu0 0.0
        %v3762 = vand.u32 %v2632, 4294901760
        %3763 = vmatpush1.msra.mxu0 %v3762
        %3764 = vmatprep.subr.mxu0 0.0
        %v3765 = vand.u32 %v2633, 4294901760
        %3766 = vmatpush1.msra.mxu0 %v3765
        %3767 = vmatprep.subr.mxu0 0.0
        %v3768 = vand.u32 %v2634, 4294901760
        %3769 = vmatpush1.msra.mxu0 %v3768
        %3770 = vmatprep.subr.mxu0 0.0
        %v3771 = vand.u32 %v2635, 4294901760
        %3772 = vmatpush1.msra.mxu0 %v3771
        %3773 = vmatprep.subr.mxu0 0.0
        %v3774 = vand.u32 %v2636, 4294901760
        %3775 = vmatpush1.msra.mxu0 %v3774
        %3776 = vmatprep.subr.mxu0 0.0
        %v3777 = vand.u32 %v2637, 4294901760
        %3778 = vmatpush1.msra.mxu0 %v3777
        %3779 = vmatprep.subr.mxu0 0.0
        %v3780 = vand.u32 %v2638, 4294901760
        %3781 = vmatpush1.msra.mxu0 %v3780
        %3782 = vmatprep.subr.mxu0 0.0
        %v3783 = vand.u32 %v2639, 4294901760
        %3784 = vmatpush1.msra.mxu0 %v3783
        %3785 = vmatprep.subr.mxu0 0.0
        %3786 = vmatpush1.msra.mxu0 0.0
        %3787 = vmatprep.subr.mxu0 0.0
        %3788 = vmatpush1.msra.mxu0 0.0
        %3789 = vmatprep.subr.mxu0 0.0
        %3790 = vmatpush1.msra.mxu0 0.0
        %3791 = vmatprep.subr.mxu0 0.0
        %3792 = vmatpush1.msra.mxu0 0.0
        %3793 = vmatprep.subr.mxu0 0.0
        %3794 = vmatpush1.msra.mxu0 0.0
        %3795 = vmatprep.subr.mxu0 0.0
        %3796 = vmatpush1.msra.mxu0 0.0
        %3797 = vmatprep.subr.mxu0 0.0
        %3798 = vmatpush1.msra.mxu0 0.0
        %3799 = vmatprep.subr.mxu0 0.0
        %3800 = vmatpush1.msra.mxu0 0.0
        %3801 = vmatprep.subr.mxu0 0.0
        %3802 = vmatpush1.msra.mxu0 0.0
        %3803 = vmatprep.subr.mxu0 0.0
        %3804 = vmatpush1.msra.mxu0 0.0
        %3805 = vmatprep.subr.mxu0 0.0
        %3806 = vmatpush1.msra.mxu0 0.0
        %3807 = vmatprep.subr.mxu0 0.0
        %3808 = vmatpush1.msra.mxu0 0.0
        %3809 = vmatprep.subr.mxu0 0.0
        %3810 = vmatpush1.msra.mxu0 0.0
        %3811 = vmatprep.subr.mxu0 0.0
        %3812 = vmatpush1.msra.mxu0 0.0
        %3813 = vmatprep.subr.mxu0 0.0
        %3814 = vmatpush1.msra.mxu0 0.0
        %3815 = vmatprep.subr.mxu0 0.0
        %3816 = vmatpush1.msra.mxu0 0.0
        %3817 = vmatprep.mubr.f32.mxu0 0.0
        %v3818 = vand.u32 %v3736, 4294901760
        %v3819 = vsub.f32 %v3736, %v3818
        %v3820 = vand.u32 %v3819, 4294901760
        %v3821 = vsub.f32 %v3819, %v3820
        %v3822 = vand.u32 %v3821, 4294901760
        %3823 = vmatmul.mubr.f32.gmra.mrb[0].mxu0 %v3822
        %v3824 = vpop.f32.mrb[0].mxu0
        %v3825 = vadd.f32 0.0, %v3824
        %v3826 = vpop.f32.mrb[0].mxu0
        %3827 = vdwg.mxu0
        %3828 = vmatprep.subr.mxu0 0.0
        %v3829 = vand.u32 %v2624, 4294901760
        %v3830 = vsub.f32 %v2624, %v3829
        %v3831 = vand.u32 %v3830, 4294901760
        %v3832 = vsub.f32 %v3830, %v3831
        %v3833 = vand.u32 %v3832, 4294901760
        %3834 = vmatpush1.msra.mxu0 %v3833
        %3835 = vmatprep.subr.mxu0 0.0
        %v3836 = vand.u32 %v2625, 4294901760
        %v3837 = vsub.f32 %v2625, %v3836
        %v3838 = vand.u32 %v3837, 4294901760
        %v3839 = vsub.f32 %v3837, %v3838
        %v3840 = vand.u32 %v3839, 4294901760
        %3841 = vmatpush1.msra.mxu0 %v3840
        %3842 = vmatprep.subr.mxu0 0.0
        %v3843 = vand.u32 %v2626, 4294901760
        %v3844 = vsub.f32 %v2626, %v3843
        %v3845 = vand.u32 %v3844, 4294901760
        %v3846 = vsub.f32 %v3844, %v3845
        %v3847 = vand.u32 %v3846, 4294901760
        %3848 = vmatpush1.msra.mxu0 %v3847
        %3849 = vmatprep.subr.mxu0 0.0
        %v3850 = vand.u32 %v2627, 4294901760
        %v3851 = vsub.f32 %v2627, %v3850
        %v3852 = vand.u32 %v3851, 4294901760
        %v3853 = vsub.f32 %v3851, %v3852
        %v3854 = vand.u32 %v3853, 4294901760
        %3855 = vmatpush1.msra.mxu0 %v3854
        %3856 = vmatprep.subr.mxu0 0.0
        %v3857 = vand.u32 %v2628, 4294901760
        %v3858 = vsub.f32 %v2628, %v3857
        %v3859 = vand.u32 %v3858, 4294901760
        %v3860 = vsub.f32 %v3858, %v3859
        %v3861 = vand.u32 %v3860, 4294901760
        %3862 = vmatpush1.msra.mxu0 %v3861
        %3863 = vmatprep.subr.mxu0 0.0
        %v3864 = vand.u32 %v2629, 4294901760
        %v3865 = vsub.f32 %v2629, %v3864
        %v3866 = vand.u32 %v3865, 4294901760
        %v3867 = vsub.f32 %v3865, %v3866
        %v3868 = vand.u32 %v3867, 4294901760
        %3869 = vmatpush1.msra.mxu0 %v3868
        %3870 = vmatprep.subr.mxu0 0.0
        %v3871 = vand.u32 %v2630, 4294901760
        %v3872 = vsub.f32 %v2630, %v3871
        %v3873 = vand.u32 %v3872, 4294901760
        %v3874 = vsub.f32 %v3872, %v3873
        %v3875 = vand.u32 %v3874, 4294901760
        %3876 = vmatpush1.msra.mxu0 %v3875
        %3877 = vmatprep.subr.mxu0 0.0
        %v3878 = vand.u32 %v2631, 4294901760
        %v3879 = vsub.f32 %v2631, %v3878
        %v3880 = vand.u32 %v3879, 4294901760
        %v3881 = vsub.f32 %v3879, %v3880
        %v3882 = vand.u32 %v3881, 4294901760
        %3883 = vmatpush1.msra.mxu0 %v3882
        %3884 = vmatprep.subr.mxu0 0.0
        %v3885 = vand.u32 %v2632, 4294901760
        %v3886 = vsub.f32 %v2632, %v3885
        %v3887 = vand.u32 %v3886, 4294901760
        %v3888 = vsub.f32 %v3886, %v3887
        %v3889 = vand.u32 %v3888, 4294901760
        %3890 = vmatpush1.msra.mxu0 %v3889
        %3891 = vmatprep.subr.mxu0 0.0
        %v3892 = vand.u32 %v2633, 4294901760
        %v3893 = vsub.f32 %v2633, %v3892
        %v3894 = vand.u32 %v3893, 4294901760
        %v3895 = vsub.f32 %v3893, %v3894
        %v3896 = vand.u32 %v3895, 4294901760
        %3897 = vmatpush1.msra.mxu0 %v3896
        %3898 = vmatprep.subr.mxu0 0.0
        %v3899 = vand.u32 %v2634, 4294901760
        %v3900 = vsub.f32 %v2634, %v3899
        %v3901 = vand.u32 %v3900, 4294901760
        %v3902 = vsub.f32 %v3900, %v3901
        %v3903 = vand.u32 %v3902, 4294901760
        %3904 = vmatpush1.msra.mxu0 %v3903
        %3905 = vmatprep.subr.mxu0 0.0
        %v3906 = vand.u32 %v2635, 4294901760
        %v3907 = vsub.f32 %v2635, %v3906
        %v3908 = vand.u32 %v3907, 4294901760
        %v3909 = vsub.f32 %v3907, %v3908
        %v3910 = vand.u32 %v3909, 4294901760
        %3911 = vmatpush1.msra.mxu0 %v3910
        %3912 = vmatprep.subr.mxu0 0.0
        %v3913 = vand.u32 %v2636, 4294901760
        %v3914 = vsub.f32 %v2636, %v3913
        %v3915 = vand.u32 %v3914, 4294901760
        %v3916 = vsub.f32 %v3914, %v3915
        %v3917 = vand.u32 %v3916, 4294901760
        %3918 = vmatpush1.msra.mxu0 %v3917
        %3919 = vmatprep.subr.mxu0 0.0
        %v3920 = vand.u32 %v2637, 4294901760
        %v3921 = vsub.f32 %v2637, %v3920
        %v3922 = vand.u32 %v3921, 4294901760
        %v3923 = vsub.f32 %v3921, %v3922
        %v3924 = vand.u32 %v3923, 4294901760
        %3925 = vmatpush1.msra.mxu0 %v3924
        %3926 = vmatprep.subr.mxu0 0.0
        %v3927 = vand.u32 %v2638, 4294901760
        %v3928 = vsub.f32 %v2638, %v3927
        %v3929 = vand.u32 %v3928, 4294901760
        %v3930 = vsub.f32 %v3928, %v3929
        %v3931 = vand.u32 %v3930, 4294901760
        %3932 = vmatpush1.msra.mxu0 %v3931
        %3933 = vmatprep.subr.mxu0 0.0
        %v3934 = vand.u32 %v2639, 4294901760
        %v3935 = vsub.f32 %v2639, %v3934
        %v3936 = vand.u32 %v3935, 4294901760
        %v3937 = vsub.f32 %v3935, %v3936
        %v3938 = vand.u32 %v3937, 4294901760
        %3939 = vmatpush1.msra.mxu0 %v3938
        %3940 = vmatprep.subr.mxu0 0.0
        %3941 = vmatpush1.msra.mxu0 0.0
        %3942 = vmatprep.subr.mxu0 0.0
        %3943 = vmatpush1.msra.mxu0 0.0
        %3944 = vmatprep.subr.mxu0 0.0
        %3945 = vmatpush1.msra.mxu0 0.0
        %3946 = vmatprep.subr.mxu0 0.0
        %3947 = vmatpush1.msra.mxu0 0.0
        %3948 = vmatprep.subr.mxu0 0.0
        %3949 = vmatpush1.msra.mxu0 0.0
        %3950 = vmatprep.subr.mxu0 0.0
        %3951 = vmatpush1.msra.mxu0 0.0
        %3952 = vmatprep.subr.mxu0 0.0
        %3953 = vmatpush1.msra.mxu0 0.0
        %3954 = vmatprep.subr.mxu0 0.0
        %3955 = vmatpush1.msra.mxu0 0.0
        %3956 = vmatprep.subr.mxu0 0.0
        %3957 = vmatpush1.msra.mxu0 0.0
        %3958 = vmatprep.subr.mxu0 0.0
        %3959 = vmatpush1.msra.mxu0 0.0
        %3960 = vmatprep.subr.mxu0 0.0
        %3961 = vmatpush1.msra.mxu0 0.0
        %3962 = vmatprep.subr.mxu0 0.0
        %3963 = vmatpush1.msra.mxu0 0.0
        %3964 = vmatprep.subr.mxu0 0.0
        %3965 = vmatpush1.msra.mxu0 0.0
        %3966 = vmatprep.subr.mxu0 0.0
        %3967 = vmatpush1.msra.mxu0 0.0
        %3968 = vmatprep.subr.mxu0 0.0
        %3969 = vmatpush1.msra.mxu0 0.0
        %3970 = vmatprep.subr.mxu0 0.0
        %3971 = vmatpush1.msra.mxu0 0.0
        %3972 = vmatprep.mubr.f32.mxu0 0.0
        %v3973 = vand.u32 %v3736, 4294901760
        %3974 = vmatmul.mubr.f32.gmra.mrb[0].mxu0 %v3973
        %v3975 = vpop.f32.mrb[0].mxu0
        %v3976 = vadd.f32 %v3825, %v3975
        %v3977 = vpop.f32.mrb[0].mxu0
        %3978 = vdwg.mxu0
        %3979 = vmatprep.subr.mxu0 0.0
        %v3980 = vand.u32 %v2624, 4294901760
        %v3981 = vsub.f32 %v2624, %v3980
        %3982 = vmatpush1.msra.mxu0 %v3981
        %3983 = vmatprep.subr.mxu0 0.0
        %v3984 = vand.u32 %v2625, 4294901760
        %v3985 = vsub.f32 %v2625, %v3984
        %3986 = vmatpush1.msra.mxu0 %v3985
        %3987 = vmatprep.subr.mxu0 0.0
        %v3988 = vand.u32 %v2626, 4294901760
        %v3989 = vsub.f32 %v2626, %v3988
        %3990 = vmatpush1.msra.mxu0 %v3989
        %3991 = vmatprep.subr.mxu0 0.0
        %v3992 = vand.u32 %v2627, 4294901760
        %v3993 = vsub.f32 %v2627, %v3992
        %3994 = vmatpush1.msra.mxu0 %v3993
        %3995 = vmatprep.subr.mxu0 0.0
        %v3996 = vand.u32 %v2628, 4294901760
        %v3997 = vsub.f32 %v2628, %v3996
        %3998 = vmatpush1.msra.mxu0 %v3997
        %3999 = vmatprep.subr.mxu0 0.0
        %v4000 = vand.u32 %v2629, 4294901760
        %v4001 = vsub.f32 %v2629, %v4000
        %4002 = vmatpush1.msra.mxu0 %v4001
        %4003 = vmatprep.subr.mxu0 0.0
        %v4004 = vand.u32 %v2630, 4294901760
        %v4005 = vsub.f32 %v2630, %v4004
        %4006 = vmatpush1.msra.mxu0 %v4005
        %4007 = vmatprep.subr.mxu0 0.0
        %v4008 = vand.u32 %v2631, 4294901760
        %v4009 = vsub.f32 %v2631, %v4008
        %4010 = vmatpush1.msra.mxu0 %v4009
        %4011 = vmatprep.subr.mxu0 0.0
        %v4012 = vand.u32 %v2632, 4294901760
        %v4013 = vsub.f32 %v2632, %v4012
        %4014 = vmatpush1.msra.mxu0 %v4013
        %4015 = vmatprep.subr.mxu0 0.0
        %v4016 = vand.u32 %v2633, 4294901760
        %v4017 = vsub.f32 %v2633, %v4016
        %4018 = vmatpush1.msra.mxu0 %v4017
        %4019 = vmatprep.subr.mxu0 0.0
        %v4020 = vand.u32 %v2634, 4294901760
        %v4021 = vsub.f32 %v2634, %v4020
        %4022 = vmatpush1.msra.mxu0 %v4021
        %4023 = vmatprep.subr.mxu0 0.0
        %v4024 = vand.u32 %v2635, 4294901760
        %v4025 = vsub.f32 %v2635, %v4024
        %4026 = vmatpush1.msra.mxu0 %v4025
        %4027 = vmatprep.subr.mxu0 0.0
        %v4028 = vand.u32 %v2636, 4294901760
        %v4029 = vsub.f32 %v2636, %v4028
        %4030 = vmatpush1.msra.mxu0 %v4029
        %4031 = vmatprep.subr.mxu0 0.0
        %v4032 = vand.u32 %v2637, 4294901760
        %v4033 = vsub.f32 %v2637, %v4032
        %4034 = vmatpush1.msra.mxu0 %v4033
        %4035 = vmatprep.subr.mxu0 0.0
        %v4036 = vand.u32 %v2638, 4294901760
        %v4037 = vsub.f32 %v2638, %v4036
        %4038 = vmatpush1.msra.mxu0 %v4037
        %4039 = vmatprep.subr.mxu0 0.0
        %v4040 = vand.u32 %v2639, 4294901760
        %v4041 = vsub.f32 %v2639, %v4040
        %4042 = vmatpush1.msra.mxu0 %v4041
        %4043 = vmatprep.subr.mxu0 0.0
        %4044 = vmatpush1.msra.mxu0 0.0
        %4045 = vmatprep.subr.mxu0 0.0
        %4046 = vmatpush1.msra.mxu0 0.0
        %4047 = vmatprep.subr.mxu0 0.0
        %4048 = vmatpush1.msra.mxu0 0.0
        %4049 = vmatprep.subr.mxu0 0.0
        %4050 = vmatpush1.msra.mxu0 0.0
        %4051 = vmatprep.subr.mxu0 0.0
        %4052 = vmatpush1.msra.mxu0 0.0
        %4053 = vmatprep.subr.mxu0 0.0
        %4054 = vmatpush1.msra.mxu0 0.0
        %4055 = vmatprep.subr.mxu0 0.0
        %4056 = vmatpush1.msra.mxu0 0.0
        %4057 = vmatprep.subr.mxu0 0.0
        %4058 = vmatpush1.msra.mxu0 0.0
        %4059 = vmatprep.subr.mxu0 0.0
        %4060 = vmatpush1.msra.mxu0 0.0
        %4061 = vmatprep.subr.mxu0 0.0
        %4062 = vmatpush1.msra.mxu0 0.0
        %4063 = vmatprep.subr.mxu0 0.0
        %4064 = vmatpush1.msra.mxu0 0.0
        %4065 = vmatprep.subr.mxu0 0.0
        %4066 = vmatpush1.msra.mxu0 0.0
        %4067 = vmatprep.subr.mxu0 0.0
        %4068 = vmatpush1.msra.mxu0 0.0
        %4069 = vmatprep.subr.mxu0 0.0
        %4070 = vmatpush1.msra.mxu0 0.0
        %4071 = vmatprep.subr.mxu0 0.0
        %4072 = vmatpush1.msra.mxu0 0.0
        %4073 = vmatprep.subr.mxu0 0.0
        %4074 = vmatpush1.msra.mxu0 0.0
        %4075 = vmatprep.mubr.f32.mxu0 0.0
        %v4076 = vand.u32 %v3736, 4294901760
        %v4077 = vsub.f32 %v3736, %v4076
        %4078 = vmatmul.mubr.f32.gmra.mrb[0].mxu0 %v4077
        %v4079 = vpop.f32.mrb[0].mxu0
        %v4080 = vadd.f32 %v3976, %v4079
        %v4081 = vpop.f32.mrb[0].mxu0
        %4082 = vdwg.mxu0
        %4083 = vmatprep.subr.mxu0 0.0
        %v4084 = vand.u32 %v2624, 4294901760
        %4085 = vmatpush1.msra.mxu0 %v4084
        %4086 = vmatprep.subr.mxu0 0.0
        %v4087 = vand.u32 %v2625, 4294901760
        %4088 = vmatpush1.msra.mxu0 %v4087
        %4089 = vmatprep.subr.mxu0 0.0
        %v4090 = vand.u32 %v2626, 4294901760
        %4091 = vmatpush1.msra.mxu0 %v4090
        %4092 = vmatprep.subr.mxu0 0.0
        %v4093 = vand.u32 %v2627, 4294901760
        %4094 = vmatpush1.msra.mxu0 %v4093
        %4095 = vmatprep.subr.mxu0 0.0
        %v4096 = vand.u32 %v2628, 4294901760
        %4097 = vmatpush1.msra.mxu0 %v4096
        %4098 = vmatprep.subr.mxu0 0.0
        %v4099 = vand.u32 %v2629, 4294901760
        %4100 = vmatpush1.msra.mxu0 %v4099
        %4101 = vmatprep.subr.mxu0 0.0
        %v4102 = vand.u32 %v2630, 4294901760
        %4103 = vmatpush1.msra.mxu0 %v4102
        %4104 = vmatprep.subr.mxu0 0.0
        %v4105 = vand.u32 %v2631, 4294901760
        %4106 = vmatpush1.msra.mxu0 %v4105
        %4107 = vmatprep.subr.mxu0 0.0
        %v4108 = vand.u32 %v2632, 4294901760
        %4109 = vmatpush1.msra.mxu0 %v4108
        %4110 = vmatprep.subr.mxu0 0.0
        %v4111 = vand.u32 %v2633, 4294901760
        %4112 = vmatpush1.msra.mxu0 %v4111
        %4113 = vmatprep.subr.mxu0 0.0
        %v4114 = vand.u32 %v2634, 4294901760
        %4115 = vmatpush1.msra.mxu0 %v4114
        %4116 = vmatprep.subr.mxu0 0.0
        %v4117 = vand.u32 %v2635, 4294901760
        %4118 = vmatpush1.msra.mxu0 %v4117
        %4119 = vmatprep.subr.mxu0 0.0
        %v4120 = vand.u32 %v2636, 4294901760
        %4121 = vmatpush1.msra.mxu0 %v4120
        %4122 = vmatprep.subr.mxu0 0.0
        %v4123 = vand.u32 %v2637, 4294901760
        %4124 = vmatpush1.msra.mxu0 %v4123
        %4125 = vmatprep.subr.mxu0 0.0
        %v4126 = vand.u32 %v2638, 4294901760
        %4127 = vmatpush1.msra.mxu0 %v4126
        %4128 = vmatprep.subr.mxu0 0.0
        %v4129 = vand.u32 %v2639, 4294901760
        %4130 = vmatpush1.msra.mxu0 %v4129
        %4131 = vmatprep.subr.mxu0 0.0
        %4132 = vmatpush1.msra.mxu0 0.0
        %4133 = vmatprep.subr.mxu0 0.0
        %4134 = vmatpush1.msra.mxu0 0.0
        %4135 = vmatprep.subr.mxu0 0.0
        %4136 = vmatpush1.msra.mxu0 0.0
        %4137 = vmatprep.subr.mxu0 0.0
        %4138 = vmatpush1.msra.mxu0 0.0
        %4139 = vmatprep.subr.mxu0 0.0
        %4140 = vmatpush1.msra.mxu0 0.0
        %4141 = vmatprep.subr.mxu0 0.0
        %4142 = vmatpush1.msra.mxu0 0.0
        %4143 = vmatprep.subr.mxu0 0.0
        %4144 = vmatpush1.msra.mxu0 0.0
        %4145 = vmatprep.subr.mxu0 0.0
        %4146 = vmatpush1.msra.mxu0 0.0
        %4147 = vmatprep.subr.mxu0 0.0
        %4148 = vmatpush1.msra.mxu0 0.0
        %4149 = vmatprep.subr.mxu0 0.0
        %4150 = vmatpush1.msra.mxu0 0.0
        %4151 = vmatprep.subr.mxu0 0.0
        %4152 = vmatpush1.msra.mxu0 0.0
        %4153 = vmatprep.subr.mxu0 0.0
        %4154 = vmatpush1.msra.mxu0 0.0
        %4155 = vmatprep.subr.mxu0 0.0
        %4156 = vmatpush1.msra.mxu0 0.0
        %4157 = vmatprep.subr.mxu0 0.0
        %4158 = vmatpush1.msra.mxu0 0.0
        %4159 = vmatprep.subr.mxu0 0.0
        %4160 = vmatpush1.msra.mxu0 0.0
        %4161 = vmatprep.subr.mxu0 0.0
        %4162 = vmatpush1.msra.mxu0 0.0
        %4163 = vmatprep.mubr.f32.mxu0 0.0
        %v4164 = vand.u32 %v3736, 4294901760
        %v4165 = vsub.f32 %v3736, %v4164
        %v4166 = vand.u32 %v4165, 4294901760
        %4167 = vmatmul.mubr.f32.gmra.mrb[0].mxu0 %v4166
        %v4168 = vpop.f32.mrb[0].mxu0
        %v4169 = vadd.f32 %v4080, %v4168
        %v4170 = vpop.f32.mrb[0].mxu0
        %4171 = vdwg.mxu0
        %4172 = vmatprep.subr.mxu0 0.0
        %v4173 = vand.u32 %v2624, 4294901760
        %v4174 = vsub.f32 %v2624, %v4173
        %v4175 = vand.u32 %v4174, 4294901760
        %4176 = vmatpush1.msra.mxu0 %v4175
        %4177 = vmatprep.subr.mxu0 0.0
        %v4178 = vand.u32 %v2625, 4294901760
        %v4179 = vsub.f32 %v2625, %v4178
        %v4180 = vand.u32 %v4179, 4294901760
        %4181 = vmatpush1.msra.mxu0 %v4180
        %4182 = vmatprep.subr.mxu0 0.0
        %v4183 = vand.u32 %v2626, 4294901760
        %v4184 = vsub.f32 %v2626, %v4183
        %v4185 = vand.u32 %v4184, 4294901760
        %4186 = vmatpush1.msra.mxu0 %v4185
        %4187 = vmatprep.subr.mxu0 0.0
        %v4188 = vand.u32 %v2627, 4294901760
        %v4189 = vsub.f32 %v2627, %v4188
        %v4190 = vand.u32 %v4189, 4294901760
        %4191 = vmatpush1.msra.mxu0 %v4190
        %4192 = vmatprep.subr.mxu0 0.0
        %v4193 = vand.u32 %v2628, 4294901760
        %v4194 = vsub.f32 %v2628, %v4193
        %v4195 = vand.u32 %v4194, 4294901760
        %4196 = vmatpush1.msra.mxu0 %v4195
        %4197 = vmatprep.subr.mxu0 0.0
        %v4198 = vand.u32 %v2629, 4294901760
        %v4199 = vsub.f32 %v2629, %v4198
        %v4200 = vand.u32 %v4199, 4294901760
        %4201 = vmatpush1.msra.mxu0 %v4200
        %4202 = vmatprep.subr.mxu0 0.0
        %v4203 = vand.u32 %v2630, 4294901760
        %v4204 = vsub.f32 %v2630, %v4203
        %v4205 = vand.u32 %v4204, 4294901760
        %4206 = vmatpush1.msra.mxu0 %v4205
        %4207 = vmatprep.subr.mxu0 0.0
        %v4208 = vand.u32 %v2631, 4294901760
        %v4209 = vsub.f32 %v2631, %v4208
        %v4210 = vand.u32 %v4209, 4294901760
        %4211 = vmatpush1.msra.mxu0 %v4210
        %4212 = vmatprep.subr.mxu0 0.0
        %v4213 = vand.u32 %v2632, 4294901760
        %v4214 = vsub.f32 %v2632, %v4213
        %v4215 = vand.u32 %v4214, 4294901760
        %4216 = vmatpush1.msra.mxu0 %v4215
        %4217 = vmatprep.subr.mxu0 0.0
        %v4218 = vand.u32 %v2633, 4294901760
        %v4219 = vsub.f32 %v2633, %v4218
        %v4220 = vand.u32 %v4219, 4294901760
        %4221 = vmatpush1.msra.mxu0 %v4220
        %4222 = vmatprep.subr.mxu0 0.0
        %v4223 = vand.u32 %v2634, 4294901760
        %v4224 = vsub.f32 %v2634, %v4223
        %v4225 = vand.u32 %v4224, 4294901760
        %4226 = vmatpush1.msra.mxu0 %v4225
        %4227 = vmatprep.subr.mxu0 0.0
        %v4228 = vand.u32 %v2635, 4294901760
        %v4229 = vsub.f32 %v2635, %v4228
        %v4230 = vand.u32 %v4229, 4294901760
        %4231 = vmatpush1.msra.mxu0 %v4230
        %4232 = vmatprep.subr.mxu0 0.0
        %v4233 = vand.u32 %v2636, 4294901760
        %v4234 = vsub.f32 %v2636, %v4233
        %v4235 = vand.u32 %v4234, 4294901760
        %4236 = vmatpush1.msra.mxu0 %v4235
        %4237 = vmatprep.subr.mxu0 0.0
        %v4238 = vand.u32 %v2637, 4294901760
        %v4239 = vsub.f32 %v2637, %v4238
        %v4240 = vand.u32 %v4239, 4294901760
        %4241 = vmatpush1.msra.mxu0 %v4240
        %4242 = vmatprep.subr.mxu0 0.0
        %v4243 = vand.u32 %v2638, 4294901760
        %v4244 = vsub.f32 %v2638, %v4243
        %v4245 = vand.u32 %v4244, 4294901760
        %4246 = vmatpush1.msra.mxu0 %v4245
        %4247 = vmatprep.subr.mxu0 0.0
        %v4248 = vand.u32 %v2639, 4294901760
        %v4249 = vsub.f32 %v2639, %v4248
        %v4250 = vand.u32 %v4249, 4294901760
        %4251 = vmatpush1.msra.mxu0 %v4250
        %4252 = vmatprep.subr.mxu0 0.0
        %4253 = vmatpush1.msra.mxu0 0.0
        %4254 = vmatprep.subr.mxu0 0.0
        %4255 = vmatpush1.msra.mxu0 0.0
        %4256 = vmatprep.subr.mxu0 0.0
        %4257 = vmatpush1.msra.mxu0 0.0
        %4258 = vmatprep.subr.mxu0 0.0
        %4259 = vmatpush1.msra.mxu0 0.0
        %4260 = vmatprep.subr.mxu0 0.0
        %4261 = vmatpush1.msra.mxu0 0.0
        %4262 = vmatprep.subr.mxu0 0.0
        %4263 = vmatpush1.msra.mxu0 0.0
        %4264 = vmatprep.subr.mxu0 0.0
        %4265 = vmatpush1.msra.mxu0 0.0
        %4266 = vmatprep.subr.mxu0 0.0
        %4267 = vmatpush1.msra.mxu0 0.0
        %4268 = vmatprep.subr.mxu0 0.0
        %4269 = vmatpush1.msra.mxu0 0.0
        %4270 = vmatprep.subr.mxu0 0.0
        %4271 = vmatpush1.msra.mxu0 0.0
        %4272 = vmatprep.subr.mxu0 0.0
        %4273 = vmatpush1.msra.mxu0 0.0
        %4274 = vmatprep.subr.mxu0 0.0
        %4275 = vmatpush1.msra.mxu0 0.0
        %4276 = vmatprep.subr.mxu0 0.0
        %4277 = vmatpush1.msra.mxu0 0.0
        %4278 = vmatprep.subr.mxu0 0.0
        %4279 = vmatpush1.msra.mxu0 0.0
        %4280 = vmatprep.subr.mxu0 0.0
        %4281 = vmatpush1.msra.mxu0 0.0
        %4282 = vmatprep.subr.mxu0 0.0
        %4283 = vmatpush1.msra.mxu0 0.0
        %4284 = vmatprep.mubr.f32.mxu0 0.0
        %v4285 = vand.u32 %v3736, 4294901760
        %4286 = vmatmul.mubr.f32.gmra.mrb[0].mxu0 %v4285
        %v4287 = vpop.f32.mrb[0].mxu0
        %v4288 = vadd.f32 %v4169, %v4287
        %v4289 = vpop.f32.mrb[0].mxu0
        %4290 = vdwg.mxu0
        %4291 = vmatprep.subr.mxu0 0.0
        %v4292 = vand.u32 %v2624, 4294901760
        %4293 = vmatpush1.msra.mxu0 %v4292
        %4294 = vmatprep.subr.mxu0 0.0
        %v4295 = vand.u32 %v2625, 4294901760
        %4296 = vmatpush1.msra.mxu0 %v4295
        %4297 = vmatprep.subr.mxu0 0.0
        %v4298 = vand.u32 %v2626, 4294901760
        %4299 = vmatpush1.msra.mxu0 %v4298
        %4300 = vmatprep.subr.mxu0 0.0
        %v4301 = vand.u32 %v2627, 4294901760
        %4302 = vmatpush1.msra.mxu0 %v4301
        %4303 = vmatprep.subr.mxu0 0.0
        %v4304 = vand.u32 %v2628, 4294901760
        %4305 = vmatpush1.msra.mxu0 %v4304
        %4306 = vmatprep.subr.mxu0 0.0
        %v4307 = vand.u32 %v2629, 4294901760
        %4308 = vmatpush1.msra.mxu0 %v4307
        %4309 = vmatprep.subr.mxu0 0.0
        %v4310 = vand.u32 %v2630, 4294901760
        %4311 = vmatpush1.msra.mxu0 %v4310
        %4312 = vmatprep.subr.mxu0 0.0
        %v4313 = vand.u32 %v2631, 4294901760
        %4314 = vmatpush1.msra.mxu0 %v4313
        %4315 = vmatprep.subr.mxu0 0.0
        %v4316 = vand.u32 %v2632, 4294901760
        %4317 = vmatpush1.msra.mxu0 %v4316
        %4318 = vmatprep.subr.mxu0 0.0
        %v4319 = vand.u32 %v2633, 4294901760
        %4320 = vmatpush1.msra.mxu0 %v4319
        %4321 = vmatprep.subr.mxu0 0.0
        %v4322 = vand.u32 %v2634, 4294901760
        %4323 = vmatpush1.msra.mxu0 %v4322
        %4324 = vmatprep.subr.mxu0 0.0
        %v4325 = vand.u32 %v2635, 4294901760
        %4326 = vmatpush1.msra.mxu0 %v4325
        %4327 = vmatprep.subr.mxu0 0.0
        %v4328 = vand.u32 %v2636, 4294901760
        %4329 = vmatpush1.msra.mxu0 %v4328
        %4330 = vmatprep.subr.mxu0 0.0
        %v4331 = vand.u32 %v2637, 4294901760
        %4332 = vmatpush1.msra.mxu0 %v4331
        %4333 = vmatprep.subr.mxu0 0.0
        %v4334 = vand.u32 %v2638, 4294901760
        %4335 = vmatpush1.msra.mxu0 %v4334
        %4336 = vmatprep.subr.mxu0 0.0
        %v4337 = vand.u32 %v2639, 4294901760
        %4338 = vmatpush1.msra.mxu0 %v4337
        %4339 = vmatprep.subr.mxu0 0.0
        %4340 = vmatpush1.msra.mxu0 0.0
        %4341 = vmatprep.subr.mxu0 0.0
        %4342 = vmatpush1.msra.mxu0 0.0
        %4343 = vmatprep.subr.mxu0 0.0
        %4344 = vmatpush1.msra.mxu0 0.0
        %4345 = vmatprep.subr.mxu0 0.0
        %4346 = vmatpush1.msra.mxu0 0.0
        %4347 = vmatprep.subr.mxu0 0.0
        %4348 = vmatpush1.msra.mxu0 0.0
        %4349 = vmatprep.subr.mxu0 0.0
        %4350 = vmatpush1.msra.mxu0 0.0
        %4351 = vmatprep.subr.mxu0 0.0
        %4352 = vmatpush1.msra.mxu0 0.0
        %4353 = vmatprep.subr.mxu0 0.0
        %4354 = vmatpush1.msra.mxu0 0.0
        %4355 = vmatprep.subr.mxu0 0.0
        %4356 = vmatpush1.msra.mxu0 0.0
        %4357 = vmatprep.subr.mxu0 0.0
        %4358 = vmatpush1.msra.mxu0 0.0
        %4359 = vmatprep.subr.mxu0 0.0
        %4360 = vmatpush1.msra.mxu0 0.0
        %4361 = vmatprep.subr.mxu0 0.0
        %4362 = vmatpush1.msra.mxu0 0.0
        %4363 = vmatprep.subr.mxu0 0.0
        %4364 = vmatpush1.msra.mxu0 0.0
        %4365 = vmatprep.subr.mxu0 0.0
        %4366 = vmatpush1.msra.mxu0 0.0
        %4367 = vmatprep.subr.mxu0 0.0
        %4368 = vmatpush1.msra.mxu0 0.0
        %4369 = vmatprep.subr.mxu0 0.0
        %4370 = vmatpush1.msra.mxu0 0.0
        %4371 = vmatprep.mubr.f32.mxu0 0.0
        %v4372 = vand.u32 %v3736, 4294901760
        %4373 = vmatmul.mubr.f32.gmra.mrb[0].mxu0 %v4372
        %v4374 = vpop.f32.mrb[0].mxu0
        %v4375 = vadd.f32 %v4288, %v4374
        %v4376 = vpop.f32.mrb[0].mxu0
        %4377 = vdwg.mxu0
        %v4378 = vmul.f32 %v4375, 0.03125
        %v4379 = vadd.f32 %v4378, 1e-05
        %v4380 = vrsqrt.pop %v4379
        %v4382 = vsel %vm1056, %v4380, 0
        %4384 = vmatprep.subr.mxu0 0.0
        %v4385 = vand.u32 %v3287, 4294901760
        %4386 = vmatpush1.msra.mxu0 %v4385
        %4387 = vmatprep.subr.mxu0 0.0
        %4388 = vmatpush1.msra.mxu0 0.0
        %4389 = vmatprep.subr.mxu0 0.0
        %4390 = vmatpush1.msra.mxu0 0.0
        %4391 = vmatprep.subr.mxu0 0.0
        %4392 = vmatpush1.msra.mxu0 0.0
        %4393 = vmatprep.subr.mxu0 0.0
        %4394 = vmatpush1.msra.mxu0 0.0
        %4395 = vmatprep.subr.mxu0 0.0
        %4396 = vmatpush1.msra.mxu0 0.0
        %4397 = vmatprep.subr.mxu0 0.0
        %4398 = vmatpush1.msra.mxu0 0.0
        %4399 = vmatprep.subr.mxu0 0.0
        %4400 = vmatpush1.msra.mxu0 0.0
        %4401 = vmatprep.subr.mxu0 0.0
        %4402 = vmatpush1.msra.mxu0 0.0
        %4403 = vmatprep.subr.mxu0 0.0
        %4404 = vmatpush1.msra.mxu0 0.0
        %4405 = vmatprep.subr.mxu0 0.0
        %4406 = vmatpush1.msra.mxu0 0.0
        %4407 = vmatprep.subr.mxu0 0.0
        %4408 = vmatpush1.msra.mxu0 0.0
        %4409 = vmatprep.subr.mxu0 0.0
        %4410 = vmatpush1.msra.mxu0 0.0
        %4411 = vmatprep.subr.mxu0 0.0
        %4412 = vmatpush1.msra.mxu0 0.0
        %4413 = vmatprep.subr.mxu0 0.0
        %4414 = vmatpush1.msra.mxu0 0.0
        %4415 = vmatprep.subr.mxu0 0.0
        %4416 = vmatpush1.msra.mxu0 0.0
        %4417 = vmatprep.subr.mxu0 0.0
        %4418 = vmatpush1.msra.mxu0 0.0
        %4419 = vmatprep.subr.mxu0 0.0
        %4420 = vmatpush1.msra.mxu0 0.0
        %4421 = vmatprep.subr.mxu0 0.0
        %4422 = vmatpush1.msra.mxu0 0.0
        %4423 = vmatprep.subr.mxu0 0.0
        %4424 = vmatpush1.msra.mxu0 0.0
        %4425 = vmatprep.subr.mxu0 0.0
        %4426 = vmatpush1.msra.mxu0 0.0
        %4427 = vmatprep.subr.mxu0 0.0
        %4428 = vmatpush1.msra.mxu0 0.0
        %4429 = vmatprep.subr.mxu0 0.0
        %4430 = vmatpush1.msra.mxu0 0.0
        %4431 = vmatprep.subr.mxu0 0.0
        %4432 = vmatpush1.msra.mxu0 0.0
        %4433 = vmatprep.subr.mxu0 0.0
        %4434 = vmatpush1.msra.mxu0 0.0
        %4435 = vmatprep.subr.mxu0 0.0
        %4436 = vmatpush1.msra.mxu0 0.0
        %4437 = vmatprep.subr.mxu0 0.0
        %4438 = vmatpush1.msra.mxu0 0.0
        %4439 = vmatprep.subr.mxu0 0.0
        %4440 = vmatpush1.msra.mxu0 0.0
        %4441 = vmatprep.subr.mxu0 0.0
        %4442 = vmatpush1.msra.mxu0 0.0
        %4443 = vmatprep.subr.mxu0 0.0
        %4444 = vmatpush1.msra.mxu0 0.0
        %4445 = vmatprep.subr.mxu0 0.0
        %4446 = vmatpush1.msra.mxu0 0.0
        %4447 = vmatprep.subr.mxu0 0.0
        %4448 = vmatpush1.msra.mxu0 0.0
        %4449 = vmatprep.mubr.f32.mxu0 0.0
        %v4450 = vand.u32 %v4382, 4294901760
        %v4451 = vsub.f32 %v4382, %v4450
        %v4452 = vand.u32 %v4451, 4294901760
        %v4453 = vsub.f32 %v4451, %v4452
        %v4454 = vand.u32 %v4453, 4294901760
        %4455 = vmatmul.mubr.f32.gmra.mrb[0].mxu0 %v4454
        %v4456 = vpop.f32.mrb[0].mxu0
        %v4457 = vadd.f32 0.0, %v4456
        %v4458 = vpop.f32.mrb[0].mxu0
        %4459 = vdwg.mxu0
        %4460 = vmatprep.subr.mxu0 0.0
        %v4461 = vand.u32 %v3287, 4294901760
        %v4462 = vsub.f32 %v3287, %v4461
        %v4463 = vand.u32 %v4462, 4294901760
        %v4464 = vsub.f32 %v4462, %v4463
        %v4465 = vand.u32 %v4464, 4294901760
        %4466 = vmatpush1.msra.mxu0 %v4465
        %4467 = vmatprep.subr.mxu0 0.0
        %4468 = vmatpush1.msra.mxu0 0.0
        %4469 = vmatprep.subr.mxu0 0.0
        %4470 = vmatpush1.msra.mxu0 0.0
        %4471 = vmatprep.subr.mxu0 0.0
        %4472 = vmatpush1.msra.mxu0 0.0
        %4473 = vmatprep.subr.mxu0 0.0
        %4474 = vmatpush1.msra.mxu0 0.0
        %4475 = vmatprep.subr.mxu0 0.0
        %4476 = vmatpush1.msra.mxu0 0.0
        %4477 = vmatprep.subr.mxu0 0.0
        %4478 = vmatpush1.msra.mxu0 0.0
        %4479 = vmatprep.subr.mxu0 0.0
        %4480 = vmatpush1.msra.mxu0 0.0
        %4481 = vmatprep.subr.mxu0 0.0
        %4482 = vmatpush1.msra.mxu0 0.0
        %4483 = vmatprep.subr.mxu0 0.0
        %4484 = vmatpush1.msra.mxu0 0.0
        %4485 = vmatprep.subr.mxu0 0.0
        %4486 = vmatpush1.msra.mxu0 0.0
        %4487 = vmatprep.subr.mxu0 0.0
        %4488 = vmatpush1.msra.mxu0 0.0
        %4489 = vmatprep.subr.mxu0 0.0
        %4490 = vmatpush1.msra.mxu0 0.0
        %4491 = vmatprep.subr.mxu0 0.0
        %4492 = vmatpush1.msra.mxu0 0.0
        %4493 = vmatprep.subr.mxu0 0.0
        %4494 = vmatpush1.msra.mxu0 0.0
        %4495 = vmatprep.subr.mxu0 0.0
        %4496 = vmatpush1.msra.mxu0 0.0
        %4497 = vmatprep.subr.mxu0 0.0
        %4498 = vmatpush1.msra.mxu0 0.0
        %4499 = vmatprep.subr.mxu0 0.0
        %4500 = vmatpush1.msra.mxu0 0.0
        %4501 = vmatprep.subr.mxu0 0.0
        %4502 = vmatpush1.msra.mxu0 0.0
        %4503 = vmatprep.subr.mxu0 0.0
        %4504 = vmatpush1.msra.mxu0 0.0
        %4505 = vmatprep.subr.mxu0 0.0
        %4506 = vmatpush1.msra.mxu0 0.0
        %4507 = vmatprep.subr.mxu0 0.0
        %4508 = vmatpush1.msra.mxu0 0.0
        %4509 = vmatprep.subr.mxu0 0.0
        %4510 = vmatpush1.msra.mxu0 0.0
        %4511 = vmatprep.subr.mxu0 0.0
        %4512 = vmatpush1.msra.mxu0 0.0
        %4513 = vmatprep.subr.mxu0 0.0
        %4514 = vmatpush1.msra.mxu0 0.0
        %4515 = vmatprep.subr.mxu0 0.0
        %4516 = vmatpush1.msra.mxu0 0.0
        %4517 = vmatprep.subr.mxu0 0.0
        %4518 = vmatpush1.msra.mxu0 0.0
        %4519 = vmatprep.subr.mxu0 0.0
        %4520 = vmatpush1.msra.mxu0 0.0
        %4521 = vmatprep.subr.mxu0 0.0
        %4522 = vmatpush1.msra.mxu0 0.0
        %4523 = vmatprep.subr.mxu0 0.0
        %4524 = vmatpush1.msra.mxu0 0.0
        %4525 = vmatprep.subr.mxu0 0.0
        %4526 = vmatpush1.msra.mxu0 0.0
        %4527 = vmatprep.subr.mxu0 0.0
        %4528 = vmatpush1.msra.mxu0 0.0
        %4529 = vmatprep.mubr.f32.mxu0 0.0
        %v4530 = vand.u32 %v4382, 4294901760
        %4531 = vmatmul.mubr.f32.gmra.mrb[0].mxu0 %v4530
        %v4532 = vpop.f32.mrb[0].mxu0
        %v4533 = vadd.f32 %v4457, %v4532
        %v4534 = vpop.f32.mrb[0].mxu0
        %4535 = vdwg.mxu0
        %4536 = vmatprep.subr.mxu0 0.0
        %v4537 = vand.u32 %v3287, 4294901760
        %v4538 = vsub.f32 %v3287, %v4537
        %4539 = vmatpush1.msra.mxu0 %v4538
        %4540 = vmatprep.subr.mxu0 0.0
        %4541 = vmatpush1.msra.mxu0 0.0
        %4542 = vmatprep.subr.mxu0 0.0
        %4543 = vmatpush1.msra.mxu0 0.0
        %4544 = vmatprep.subr.mxu0 0.0
        %4545 = vmatpush1.msra.mxu0 0.0
        %4546 = vmatprep.subr.mxu0 0.0
        %4547 = vmatpush1.msra.mxu0 0.0
        %4548 = vmatprep.subr.mxu0 0.0
        %4549 = vmatpush1.msra.mxu0 0.0
        %4550 = vmatprep.subr.mxu0 0.0
        %4551 = vmatpush1.msra.mxu0 0.0
        %4552 = vmatprep.subr.mxu0 0.0
        %4553 = vmatpush1.msra.mxu0 0.0
        %4554 = vmatprep.subr.mxu0 0.0
        %4555 = vmatpush1.msra.mxu0 0.0
        %4556 = vmatprep.subr.mxu0 0.0
        %4557 = vmatpush1.msra.mxu0 0.0
        %4558 = vmatprep.subr.mxu0 0.0
        %4559 = vmatpush1.msra.mxu0 0.0
        %4560 = vmatprep.subr.mxu0 0.0
        %4561 = vmatpush1.msra.mxu0 0.0
        %4562 = vmatprep.subr.mxu0 0.0
        %4563 = vmatpush1.msra.mxu0 0.0
        %4564 = vmatprep.subr.mxu0 0.0
        %4565 = vmatpush1.msra.mxu0 0.0
        %4566 = vmatprep.subr.mxu0 0.0
        %4567 = vmatpush1.msra.mxu0 0.0
        %4568 = vmatprep.subr.mxu0 0.0
        %4569 = vmatpush1.msra.mxu0 0.0
        %4570 = vmatprep.subr.mxu0 0.0
        %4571 = vmatpush1.msra.mxu0 0.0
        %4572 = vmatprep.subr.mxu0 0.0
        %4573 = vmatpush1.msra.mxu0 0.0
        %4574 = vmatprep.subr.mxu0 0.0
        %4575 = vmatpush1.msra.mxu0 0.0
        %4576 = vmatprep.subr.mxu0 0.0
        %4577 = vmatpush1.msra.mxu0 0.0
        %4578 = vmatprep.subr.mxu0 0.0
        %4579 = vmatpush1.msra.mxu0 0.0
        %4580 = vmatprep.subr.mxu0 0.0
        %4581 = vmatpush1.msra.mxu0 0.0
        %4582 = vmatprep.subr.mxu0 0.0
        %4583 = vmatpush1.msra.mxu0 0.0
        %4584 = vmatprep.subr.mxu0 0.0
        %4585 = vmatpush1.msra.mxu0 0.0
        %4586 = vmatprep.subr.mxu0 0.0
        %4587 = vmatpush1.msra.mxu0 0.0
        %4588 = vmatprep.subr.mxu0 0.0
        %4589 = vmatpush1.msra.mxu0 0.0
        %4590 = vmatprep.subr.mxu0 0.0
        %4591 = vmatpush1.msra.mxu0 0.0
        %4592 = vmatprep.subr.mxu0 0.0
        %4593 = vmatpush1.msra.mxu0 0.0
        %4594 = vmatprep.subr.mxu0 0.0
        %4595 = vmatpush1.msra.mxu0 0.0
        %4596 = vmatprep.subr.mxu0 0.0
        %4597 = vmatpush1.msra.mxu0 0.0
        %4598 = vmatprep.subr.mxu0 0.0
        %4599 = vmatpush1.msra.mxu0 0.0
        %4600 = vmatprep.subr.mxu0 0.0
        %4601 = vmatpush1.msra.mxu0 0.0
        %4602 = vmatprep.mubr.f32.mxu0 0.0
        %v4603 = vand.u32 %v4382, 4294901760
        %v4604 = vsub.f32 %v4382, %v4603
        %4605 = vmatmul.mubr.f32.gmra.mrb[0].mxu0 %v4604
        %v4606 = vpop.f32.mrb[0].mxu0
        %v4607 = vadd.f32 %v4533, %v4606
        %v4608 = vpop.f32.mrb[0].mxu0
        %4609 = vdwg.mxu0
        %4610 = vmatprep.subr.mxu0 0.0
        %v4611 = vand.u32 %v3287, 4294901760
        %4612 = vmatpush1.msra.mxu0 %v4611
        %4613 = vmatprep.subr.mxu0 0.0
        %4614 = vmatpush1.msra.mxu0 0.0
        %4615 = vmatprep.subr.mxu0 0.0
        %4616 = vmatpush1.msra.mxu0 0.0
        %4617 = vmatprep.subr.mxu0 0.0
        %4618 = vmatpush1.msra.mxu0 0.0
        %4619 = vmatprep.subr.mxu0 0.0
        %4620 = vmatpush1.msra.mxu0 0.0
        %4621 = vmatprep.subr.mxu0 0.0
        %4622 = vmatpush1.msra.mxu0 0.0
        %4623 = vmatprep.subr.mxu0 0.0
        %4624 = vmatpush1.msra.mxu0 0.0
        %4625 = vmatprep.subr.mxu0 0.0
        %4626 = vmatpush1.msra.mxu0 0.0
        %4627 = vmatprep.subr.mxu0 0.0
        %4628 = vmatpush1.msra.mxu0 0.0
        %4629 = vmatprep.subr.mxu0 0.0
        %4630 = vmatpush1.msra.mxu0 0.0
        %4631 = vmatprep.subr.mxu0 0.0
        %4632 = vmatpush1.msra.mxu0 0.0
        %4633 = vmatprep.subr.mxu0 0.0
        %4634 = vmatpush1.msra.mxu0 0.0
        %4635 = vmatprep.subr.mxu0 0.0
        %4636 = vmatpush1.msra.mxu0 0.0
        %4637 = vmatprep.subr.mxu0 0.0
        %4638 = vmatpush1.msra.mxu0 0.0
        %4639 = vmatprep.subr.mxu0 0.0
        %4640 = vmatpush1.msra.mxu0 0.0
        %4641 = vmatprep.subr.mxu0 0.0
        %4642 = vmatpush1.msra.mxu0 0.0
        %4643 = vmatprep.subr.mxu0 0.0
        %4644 = vmatpush1.msra.mxu0 0.0
        %4645 = vmatprep.subr.mxu0 0.0
        %4646 = vmatpush1.msra.mxu0 0.0
        %4647 = vmatprep.subr.mxu0 0.0
        %4648 = vmatpush1.msra.mxu0 0.0
        %4649 = vmatprep.subr.mxu0 0.0
        %4650 = vmatpush1.msra.mxu0 0.0
        %4651 = vmatprep.subr.mxu0 0.0
        %4652 = vmatpush1.msra.mxu0 0.0
        %4653 = vmatprep.subr.mxu0 0.0
        %4654 = vmatpush1.msra.mxu0 0.0
        %4655 = vmatprep.subr.mxu0 0.0
        %4656 = vmatpush1.msra.mxu0 0.0
        %4657 = vmatprep.subr.mxu0 0.0
        %4658 = vmatpush1.msra.mxu0 0.0
        %4659 = vmatprep.subr.mxu0 0.0
        %4660 = vmatpush1.msra.mxu0 0.0
        %4661 = vmatprep.subr.mxu0 0.0
        %4662 = vmatpush1.msra.mxu0 0.0
        %4663 = vmatprep.subr.mxu0 0.0
        %4664 = vmatpush1.msra.mxu0 0.0
        %4665 = vmatprep.subr.mxu0 0.0
        %4666 = vmatpush1.msra.mxu0 0.0
        %4667 = vmatprep.subr.mxu0 0.0
        %4668 = vmatpush1.msra.mxu0 0.0
        %4669 = vmatprep.subr.mxu0 0.0
        %4670 = vmatpush1.msra.mxu0 0.0
        %4671 = vmatprep.subr.mxu0 0.0
        %4672 = vmatpush1.msra.mxu0 0.0
        %4673 = vmatprep.subr.mxu0 0.0
        %4674 = vmatpush1.msra.mxu0 0.0
        %4675 = vmatprep.mubr.f32.mxu0 0.0
        %v4676 = vand.u32 %v4382, 4294901760
        %v4677 = vsub.f32 %v4382, %v4676
        %v4678 = vand.u32 %v4677, 4294901760
        %4679 = vmatmul.mubr.f32.gmra.mrb[0].mxu0 %v4678
        %v4680 = vpop.f32.mrb[0].mxu0
        %v4681 = vadd.f32 %v4607, %v4680
        %v4682 = vpop.f32.mrb[0].mxu0
        %4683 = vdwg.mxu0
        %4684 = vmatprep.subr.mxu0 0.0
        %v4685 = vand.u32 %v3287, 4294901760
        %v4686 = vsub.f32 %v3287, %v4685
        %v4687 = vand.u32 %v4686, 4294901760
        %4688 = vmatpush1.msra.mxu0 %v4687
        %4689 = vmatprep.subr.mxu0 0.0
        %4690 = vmatpush1.msra.mxu0 0.0
        %4691 = vmatprep.subr.mxu0 0.0
        %4692 = vmatpush1.msra.mxu0 0.0
        %4693 = vmatprep.subr.mxu0 0.0
        %4694 = vmatpush1.msra.mxu0 0.0
        %4695 = vmatprep.subr.mxu0 0.0
        %4696 = vmatpush1.msra.mxu0 0.0
        %4697 = vmatprep.subr.mxu0 0.0
        %4698 = vmatpush1.msra.mxu0 0.0
        %4699 = vmatprep.subr.mxu0 0.0
        %4700 = vmatpush1.msra.mxu0 0.0
        %4701 = vmatprep.subr.mxu0 0.0
        %4702 = vmatpush1.msra.mxu0 0.0
        %4703 = vmatprep.subr.mxu0 0.0
        %4704 = vmatpush1.msra.mxu0 0.0
        %4705 = vmatprep.subr.mxu0 0.0
        %4706 = vmatpush1.msra.mxu0 0.0
        %4707 = vmatprep.subr.mxu0 0.0
        %4708 = vmatpush1.msra.mxu0 0.0
        %4709 = vmatprep.subr.mxu0 0.0
        %4710 = vmatpush1.msra.mxu0 0.0
        %4711 = vmatprep.subr.mxu0 0.0
        %4712 = vmatpush1.msra.mxu0 0.0
        %4713 = vmatprep.subr.mxu0 0.0
        %4714 = vmatpush1.msra.mxu0 0.0
        %4715 = vmatprep.subr.mxu0 0.0
        %4716 = vmatpush1.msra.mxu0 0.0
        %4717 = vmatprep.subr.mxu0 0.0
        %4718 = vmatpush1.msra.mxu0 0.0
        %4719 = vmatprep.subr.mxu0 0.0
        %4720 = vmatpush1.msra.mxu0 0.0
        %4721 = vmatprep.subr.mxu0 0.0
        %4722 = vmatpush1.msra.mxu0 0.0
        %4723 = vmatprep.subr.mxu0 0.0
        %4724 = vmatpush1.msra.mxu0 0.0
        %4725 = vmatprep.subr.mxu0 0.0
        %4726 = vmatpush1.msra.mxu0 0.0
        %4727 = vmatprep.subr.mxu0 0.0
        %4728 = vmatpush1.msra.mxu0 0.0
        %4729 = vmatprep.subr.mxu0 0.0
        %4730 = vmatpush1.msra.mxu0 0.0
        %4731 = vmatprep.subr.mxu0 0.0
        %4732 = vmatpush1.msra.mxu0 0.0
        %4733 = vmatprep.subr.mxu0 0.0
        %4734 = vmatpush1.msra.mxu0 0.0
        %4735 = vmatprep.subr.mxu0 0.0
        %4736 = vmatpush1.msra.mxu0 0.0
        %4737 = vmatprep.subr.mxu0 0.0
        %4738 = vmatpush1.msra.mxu0 0.0
        %4739 = vmatprep.subr.mxu0 0.0
        %4740 = vmatpush1.msra.mxu0 0.0
        %4741 = vmatprep.subr.mxu0 0.0
        %4742 = vmatpush1.msra.mxu0 0.0
        %4743 = vmatprep.subr.mxu0 0.0
        %4744 = vmatpush1.msra.mxu0 0.0
        %4745 = vmatprep.subr.mxu0 0.0
        %4746 = vmatpush1.msra.mxu0 0.0
        %4747 = vmatprep.subr.mxu0 0.0
        %4748 = vmatpush1.msra.mxu0 0.0
        %4749 = vmatprep.subr.mxu0 0.0
        %4750 = vmatpush1.msra.mxu0 0.0
        %4751 = vmatprep.mubr.f32.mxu0 0.0
        %v4752 = vand.u32 %v4382, 4294901760
        %4753 = vmatmul.mubr.f32.gmra.mrb[0].mxu0 %v4752
        %v4754 = vpop.f32.mrb[0].mxu0
        %v4755 = vadd.f32 %v4681, %v4754
        %v4756 = vpop.f32.mrb[0].mxu0
        %4757 = vdwg.mxu0
        %4758 = vmatprep.subr.mxu0 0.0
        %v4759 = vand.u32 %v3287, 4294901760
        %4760 = vmatpush1.msra.mxu0 %v4759
        %4761 = vmatprep.subr.mxu0 0.0
        %4762 = vmatpush1.msra.mxu0 0.0
        %4763 = vmatprep.subr.mxu0 0.0
        %4764 = vmatpush1.msra.mxu0 0.0
        %4765 = vmatprep.subr.mxu0 0.0
        %4766 = vmatpush1.msra.mxu0 0.0
        %4767 = vmatprep.subr.mxu0 0.0
        %4768 = vmatpush1.msra.mxu0 0.0
        %4769 = vmatprep.subr.mxu0 0.0
        %4770 = vmatpush1.msra.mxu0 0.0
        %4771 = vmatprep.subr.mxu0 0.0
        %4772 = vmatpush1.msra.mxu0 0.0
        %4773 = vmatprep.subr.mxu0 0.0
        %4774 = vmatpush1.msra.mxu0 0.0
        %4775 = vmatprep.subr.mxu0 0.0
        %4776 = vmatpush1.msra.mxu0 0.0
        %4777 = vmatprep.subr.mxu0 0.0
        %4778 = vmatpush1.msra.mxu0 0.0
        %4779 = vmatprep.subr.mxu0 0.0
        %4780 = vmatpush1.msra.mxu0 0.0
        %4781 = vmatprep.subr.mxu0 0.0
        %4782 = vmatpush1.msra.mxu0 0.0
        %4783 = vmatprep.subr.mxu0 0.0
        %4784 = vmatpush1.msra.mxu0 0.0
        %4785 = vmatprep.subr.mxu0 0.0
        %4786 = vmatpush1.msra.mxu0 0.0
        %4787 = vmatprep.subr.mxu0 0.0
        %4788 = vmatpush1.msra.mxu0 0.0
        %4789 = vmatprep.subr.mxu0 0.0
        %4790 = vmatpush1.msra.mxu0 0.0
        %4791 = vmatprep.subr.mxu0 0.0
        %4792 = vmatpush1.msra.mxu0 0.0
        %4793 = vmatprep.subr.mxu0 0.0
        %4794 = vmatpush1.msra.mxu0 0.0
        %4795 = vmatprep.subr.mxu0 0.0
        %4796 = vmatpush1.msra.mxu0 0.0
        %4797 = vmatprep.subr.mxu0 0.0
        %4798 = vmatpush1.msra.mxu0 0.0
        %4799 = vmatprep.subr.mxu0 0.0
        %4800 = vmatpush1.msra.mxu0 0.0
        %4801 = vmatprep.subr.mxu0 0.0
        %4802 = vmatpush1.msra.mxu0 0.0
        %4803 = vmatprep.subr.mxu0 0.0
        %4804 = vmatpush1.msra.mxu0 0.0
        %4805 = vmatprep.subr.mxu0 0.0
        %4806 = vmatpush1.msra.mxu0 0.0
        %4807 = vmatprep.subr.mxu0 0.0
        %4808 = vmatpush1.msra.mxu0 0.0
        %4809 = vmatprep.subr.mxu0 0.0
        %4810 = vmatpush1.msra.mxu0 0.0
        %4811 = vmatprep.subr.mxu0 0.0
        %4812 = vmatpush1.msra.mxu0 0.0
        %4813 = vmatprep.subr.mxu0 0.0
        %4814 = vmatpush1.msra.mxu0 0.0
        %4815 = vmatprep.subr.mxu0 0.0
        %4816 = vmatpush1.msra.mxu0 0.0
        %4817 = vmatprep.subr.mxu0 0.0
        %4818 = vmatpush1.msra.mxu0 0.0
        %4819 = vmatprep.subr.mxu0 0.0
        %4820 = vmatpush1.msra.mxu0 0.0
        %4821 = vmatprep.subr.mxu0 0.0
        %4822 = vmatpush1.msra.mxu0 0.0
        %4823 = vmatprep.mubr.f32.mxu0 0.0
        %v4824 = vand.u32 %v4382, 4294901760
        %4825 = vmatmul.mubr.f32.gmra.mrb[0].mxu0 %v4824
        %v4826 = vpop.f32.mrb[0].mxu0
        %v4827 = vadd.f32 %v4755, %v4826
        %v4828 = vpop.f32.mrb[0].mxu0
        %4829 = vdwg.mxu0
        %v4830 = vmul.f32 %v3735, %v4827
        %v4831 = vld [vmem:[%s5] sm:$0x1]
        %v4833 = vlaneseq
        %v4834 = vshrl.u32 %v4833, 7
        %v4835 = vsub.s32 0, %v4834
        %v4836 = vrot.slane %v4831, %v4835
        %v4838 = vmul.f32 %v4830, %v4836
        %v4839 = vld [vmem:[%s7] sm:$0x1]
        %v4841 = vlaneseq
        %v4842 = vshrl.u32 %v4841, 7
        %v4843 = vsub.s32 0, %v4842
        %v4844 = vrot.slane %v4839, %v4843
        %v4846 = vadd.f32 %v4838, %v4844
        %4847 = vst [vmem:[%s375] sm:$0xff] %v4846
        %s4848 = sand.u32 %s225, 1
        %s4849 = scalar_lea.sflag [#allocation3], %s4848
        %s4850 = sand.u32 %s225, 1
        %s4851 = smul.addr %s4850, 8
        %s4852 = scalar_lea.vmem [#allocation2], %s4851
        %s4853 = sand.u32 %s255, 1
        %s4854 = scalar_lea.sflag [#allocation5], %s4853
        %s4855 = sand.u32 %s255, 1
        %s4856 = smul.addr %s4855, 8
        %s4857 = scalar_lea.vmem [#allocation4], %s4856
        // Predicated region
        $region53: #{tpu_custom_call.1} parent=51 // pred_check
          %p4858 = pneg %p235
        $region54: #{tpu_custom_call.1} parent=51 // pred_check_branch
          %4860 = sbr.rel (%p4858) target = $region56
        $region55: #{tpu_custom_call.1} parent=51 // pred_region
          %p4861 = scmp.lt.s32.totalorder %s27, 1
          %s4862 = scalar_select %p4861, %s27, 1
          %s4864 = ssub.s32 128, 128
          %4865 = vsyncadd %s4849, %s4864
          %s4866 = smul.addr %s4862, 128
          %s4867 = scalar_lea.hbm %s8, %s4866
          %s4869 = sshll.u32 %s4852, 4
          %s4870 = int_to_ptr.vmem [resolvable:$true] %s4869
          %4872 = dma.vmem_to_hbm [thread:$0]  %s4870, 128, %s4867, %s4849
        $region56: #{tpu_custom_call.1} parent=51 // pred_fallthru
          _
        // Predicated region
        $region57: #{tpu_custom_call.1} parent=51 // pred_check
          %p4873 = pneg %p265
        $region58: #{tpu_custom_call.1} parent=51 // pred_check_branch
          %4875 = sbr.rel (%p4873) target = $region60
        $region59: #{tpu_custom_call.1} parent=51 // pred_region
          %p4876 = scmp.lt.s32.totalorder %s27, 1
          %s4877 = scalar_select %p4876, %s27, 1
          %s4879 = ssub.s32 128, 128
          %4880 = vsyncadd %s4854, %s4879
          %s4881 = smul.addr %s4877, 128
          %s4882 = scalar_lea.hbm %s9, %s4881
          %s4884 = sshll.u32 %s4857, 4
          %s4885 = int_to_ptr.vmem [resolvable:$true] %s4884
          %4887 = dma.vmem_to_hbm [thread:$0]  %s4885, 128, %s4882, %s4854
        $region60: #{tpu_custom_call.1} parent=51 // pred_fallthru
          _
      $region52: #{tpu_custom_call.1} parent=5 // pred_fallthru
        _
      %p4888 = scmp.le.s32.totalorder 2, %s22
      // Predicated region
      $region61: #{tpu_custom_call.1} parent=5 // pred_check
        %p4889 = pneg %p4888
      $region62: #{tpu_custom_call.1} parent=5 // pred_check_branch
        %4891 = sbr.rel (%p4889) target = $region64
      $region63: #{tpu_custom_call.1} parent=5 // pred_region
        %s4892 = ssub.s32 %s22, 2
        // Predicated region
        $region65: #{tpu_custom_call.1} parent=63 // pred_check
          %p4893 = pneg %p241
        $region66: #{tpu_custom_call.1} parent=63 // pred_check_branch
          %4895 = sbr.rel (%p4893) target = $region68
        $region67: #{tpu_custom_call.1} parent=63 // pred_region
          %s4896 = sand.u32 %s226, 1
          %s4897 = scalar_lea.sflag [#allocation3], %s4896
          %s4898 = sand.u32 %s226, 1
          %s4899 = smul.addr %s4898, 8
          %s4900 = scalar_lea.vmem [#allocation2], %s4899
          %4901 = dma.done %s4897, 128
        $region68: #{tpu_custom_call.1} parent=63 // pred_fallthru
          _
        // Predicated region
        $region69: #{tpu_custom_call.1} parent=63 // pred_check
          %p4902 = pneg %p271
        $region70: #{tpu_custom_call.1} parent=63 // pred_check_branch
          %4904 = sbr.rel (%p4902) target = $region72
        $region71: #{tpu_custom_call.1} parent=63 // pred_region
          %s4905 = sand.u32 %s256, 1
          %s4906 = scalar_lea.sflag [#allocation5], %s4905
          %s4907 = sand.u32 %s256, 1
          %s4908 = smul.addr %s4907, 8
          %s4909 = scalar_lea.vmem [#allocation4], %s4908
          %4910 = dma.done %s4906, 128
        $region72: #{tpu_custom_call.1} parent=63 // pred_fallthru
          _
      $region64: #{tpu_custom_call.1} parent=5 // pred_fallthru
        _
    $region6: #{tpu_custom_call.1} parent=1 // loop_footer
      %s26 = sadd.s32 1, %s22
    $region7: #{tpu_custom_call.1} parent=1 // loop_footer_branch
      %21 = sbr.rel target = $region3
    $region8: #{tpu_custom_call.1} parent=1 // loop_exit
      _
    %4911 = vsyncpa [#allocation3], 1
    %s4912 = scalar_lea.sflag [#allocation3], 1
    %4913 = vsyncpa %s4912, 1
    %4914 = vsyncpa [#allocation5], 1
    %s4915 = scalar_lea.sflag [#allocation5], 1
    %4916 = vsyncpa %s4915, 1

</llo_original>
